<compile_context>
chip_gen: v6e
topology: v6e:2x2x1
jax: 0.10.0
libtpu: 0.0.40
codegen_flags: <defaults>
</compile_context>

<pallas_src>
import functools
import math

import jax
import jax.numpy as jnp
import numpy as np
from jax.experimental import pallas as pl
from jax.experimental.pallas import tpu as pltpu

EPS = 1e-5


def _layernorm(x, g, b):
    """One-pass LayerNorm. x: (R, D); g, b: (1, D)."""
    mu = jnp.mean(x, axis=-1, keepdims=True)
    ex2 = jnp.mean(x * x, axis=-1, keepdims=True)
    var = ex2 - mu * mu
    return (x - mu) * jax.lax.rsqrt(var + EPS) * g + b


def res_attn_kernel(n_heads, matmul_dtype,
                    x_ref, ln1_g, ln1_b,
                    wq_t, wk_t, wv_t, bq, bk, bv,
                    wo_t, bo,
                    ln2_g, ln2_b,
                    w1_t, b1, w2_t, b2,
                    o_ref):
    """One grid step = TB full sequences. x_ref block: (TB, S, D)."""
    TB, S, D = x_ref.shape
    hd = D // n_heads
    R = TB * S

    x = x_ref[...].reshape(R, D)                 # fold batch+seq rows: big-M

    # ---- attention branch: x + Wo @ MHA(LN1(x)) ----
    h1 = _layernorm(x, ln1_g[...], ln1_b[...])
    hm = h1.astype(matmul_dtype)
    # 1/sqrt(hd) is folded into wq_t / bq by the wrapper.
    q = jnp.dot(hm, wq_t[...], preferred_element_type=jnp.float32) + bq[...]
    k = jnp.dot(hm, wk_t[...], preferred_element_type=jnp.float32) + bk[...]
    v = jnp.dot(hm, wv_t[...], preferred_element_type=jnp.float32) + bv[...]

    q3 = q.reshape(TB, S, D)
    k3 = k.reshape(TB, S, D)
    v3 = v.reshape(TB, S, D)

    # Per-head attention, batched over the TB sequences in this tile.  Each
    # head's output goes straight through the matching rows of the output
    # projection (no concat of head outputs).
    # TODO(synk): additive attn_mask path (module config uses attention_mask=None).
    # NOTE: for large S replace the dense (S, S) scores with a flash-style
    # online softmax over KV tiles; dense form kept only for small S.
    attn = jnp.zeros((R, D), jnp.float32)
    for hh in range(n_heads):
        lo, hi = hh * hd, (hh + 1) * hd
        qh = q3[:, :, lo:hi].astype(matmul_dtype)          # (TB, S, hd)
        kh = k3[:, :, lo:hi].astype(matmul_dtype)
        vh = v3[:, :, lo:hi].astype(matmul_dtype)
        s = jnp.einsum("bqd,bkd->bqk", qh, kh,
                       preferred_element_type=jnp.float32)  # (TB, S, S)
        s = s - jnp.max(s, axis=-1, keepdims=True)
        p = jnp.exp(s)
        p = p * pl.reciprocal(jnp.sum(p, axis=-1, keepdims=True), approx=True)
        oh = jnp.einsum("bqk,bkd->bqd", p.astype(matmul_dtype), vh,
                        preferred_element_type=jnp.float32)  # (TB, S, hd)
        attn = attn + jnp.dot(oh.reshape(R, hd).astype(matmul_dtype),
                              wo_t[lo:hi, :],
                              preferred_element_type=jnp.float32)
    x1 = x + attn + bo[...]

    # ---- MLP branch: x1 + W2(relu(W1(LN2(x1)))) ----
    # NOTE: at production S/D, tile the 4*D hidden dim over an extra
    # "arbitrary" grid axis (or pltpu.emit_pipeline) instead of materializing
    # the full (R, 4D) slab.
    h2 = _layernorm(x1, ln2_g[...], ln2_b[...]).astype(matmul_dtype)
    m = jnp.dot(h2, w1_t[...], preferred_element_type=jnp.float32) + b1[...]
    m = jnp.maximum(m, 0.0).astype(matmul_dtype)
    m = jnp.dot(m, w2_t[...], preferred_element_type=jnp.float32) + b2[...]

    o_ref[...] = (x1 + m).reshape(TB, S, D).astype(o_ref.dtype)


def _choose_batch_tile(B, S, target_rows=256):
    """Largest divisor of B whose row count TB*S stays near the MXU-friendly
    target (>=256 rows when possible without blowing up the tile)."""
    tb = 1
    for cand in range(1, B + 1):
        if B % cand == 0 and cand * S <= max(target_rows, S):
            tb = cand
    return tb


def res_attention_block(x, params, n_heads, *, batch_first=False,
                        matmul_dtype=jnp.float32):
    """Forward pass of ResAttentionBlock.

    x: (S, B, D) like the torch module (batch_first=False), or (B, S, D) when
    batch_first=True (skips the two HBM transposes around the kernel).
    """
    if batch_first:
        xb = x
        B, S, D = x.shape
    else:
        S, B, D = x.shape
        xb = jnp.transpose(x, (1, 0, 2))          # (B, S, D) kernel layout
    assert D % n_heads == 0, "dim must be divisible by n_heads"
    hd = D // n_heads
    scale = 1.0 / math.sqrt(hd)

    # Fold the softmax scale into the Q projection (done once, outside the
    # kernel) and pre-cast weights when running bf16 MXU operands.
    wq_t = params["wq_t"] * scale
    bq = params["bq"] * scale
    wcast = lambda w: w.astype(matmul_dtype)

    plist = [
        params["ln1_g"], params["ln1_b"],
        wcast(wq_t), wcast(params["wk_t"]), wcast(params["wv_t"]),
        bq, params["bk"], params["bv"],
        wcast(params["wo_t"]), params["bo"],
        params["ln2_g"], params["ln2_b"],
        wcast(params["w1_t"]), params["b1"],
        wcast(params["w2_t"]), params["b2"],
    ]

    TB = _choose_batch_tile(B, S)
    grid = (B // TB,)
    R = TB * S

    def full_spec(a):
        nd = a.ndim
        # Grid-invariant block (index map constant across the grid).
        # NOTE: at production D these weight blocks should additionally be
        # single-buffered (pl.Buffered(1) / one manual copy) to halve their
        # VMEM footprint; left at the pipeline default here.
        return pl.BlockSpec(a.shape, lambda i, _nd=nd: (0,) * _nd)

    # Size the scoped-VMEM limit from the actual resident footprint + headroom.
    param_bytes = sum(int(p.size) * p.dtype.itemsize for p in plist)
    act_bytes = 4 * (12 * R * D + 2 * n_heads * TB * S * S + 2 * R * 4 * D)
    io_bytes = 4 * (2 * 2 * TB * S * D)           # double-buffered in + out
    vmem_limit = int(min(2 * param_bytes + act_bytes + io_bytes + (8 << 20),
                         64 << 20))

    out = pl.pallas_call(
        functools.partial(res_attn_kernel, n_heads, matmul_dtype),
        out_shape=jax.ShapeDtypeStruct((B, S, D), xb.dtype),
        grid=grid,
        in_specs=[pl.BlockSpec((TB, S, D), lambda i: (i, 0, 0))]
                 + [full_spec(p) for p in plist],
        out_specs=pl.BlockSpec((TB, S, D), lambda i: (i, 0, 0)),
        compiler_params=pltpu.CompilerParams(
            dimension_semantics=("parallel",),
            vmem_limit_bytes=vmem_limit),
    )(xb, *plist)

    if batch_first:
        return out
    return jnp.transpose(out, (1, 0, 2))          # back to (S, B, D)


def make_params(key, dim):
    """Deterministic synthetic parameters matching the torch module's shapes."""
    ks = jax.random.split(key, 8)
    scale = 0.02

    def rnd(k, shape):
        return (scale * jax.random.normal(k, shape)).astype(jnp.float32)

    wq = rnd(ks[0], (dim, dim))
    wk = rnd(ks[1], (dim, dim))
    wv = rnd(ks[2], (dim, dim))
    bq = rnd(ks[3], (dim,))
    bk = rnd(ks[4], (dim,))
    bv = rnd(ks[5], (dim,))
    wo = rnd(ks[6], (dim, dim))                 # out_proj.weight
    bo = jnp.zeros((dim,), jnp.float32)         # out_proj.bias
    k7, k8 = jax.random.split(ks[7])
    w1 = rnd(k7, (4 * dim, dim))                # mlp[0].weight
    b1 = jnp.zeros((4 * dim,), jnp.float32)
    w2 = rnd(k8, (dim, 4 * dim))                # mlp[2].weight
    b2 = jnp.zeros((dim,), jnp.float32)

    # Weights stored transposed (kernel computes x @ W^T as x @ W_t); biases /
    # LN params stored as (1, N) for TPU-friendly layout.
    return {
        "ln1_g": jnp.ones((1, dim), jnp.float32),
        "ln1_b": jnp.zeros((1, dim), jnp.float32),
        "ln2_g": jnp.ones((1, dim), jnp.float32),
        "ln2_b": jnp.zeros((1, dim), jnp.float32),
        "wq_t": wq.T, "wk_t": wk.T, "wv_t": wv.T,
        "bq": bq[None, :], "bk": bk[None, :], "bv": bv[None, :],
        "wo_t": wo.T, "bo": bo[None, :],
        "w1_t": w1.T, "b1": b1[None, :],
        "w2_t": w2.T, "b2": b2[None, :],
    }


def reference(x_sbd, p, n_heads):
    """Pure-JAX (non-Pallas) reference of the same forward pass."""
    S, B, D = x_sbd.shape
    hd = D // n_heads
    scale = 1.0 / math.sqrt(hd)

    def ln(x, g, b):
        mu = jnp.mean(x, -1, keepdims=True)
        var = jnp.mean((x - mu) ** 2, -1, keepdims=True)
        return (x - mu) / jnp.sqrt(var + EPS) * g + b

    x = jnp.transpose(x_sbd, (1, 0, 2))          # (B, S, D)
    h = ln(x, p["ln1_g"][0], p["ln1_b"][0])
    q = h @ p["wq_t"] + p["bq"][0]
    k = h @ p["wk_t"] + p["bk"][0]
    v = h @ p["wv_t"] + p["bv"][0]
    q = q.reshape(B, S, n_heads, hd)
    k = k.reshape(B, S, n_heads, hd)
    v = v.reshape(B, S, n_heads, hd)
    s = jnp.einsum("bqhd,bkhd->bhqk", q, k) * scale
    pr = jax.nn.softmax(s, axis=-1)
    a = jnp.einsum("bhqk,bkhd->bqhd", pr, v).reshape(B, S, D)
    a = a @ p["wo_t"] + p["bo"][0]
    x1 = x + a
    h2 = ln(x1, p["ln2_g"][0], p["ln2_b"][0])
    m = jnp.maximum(h2 @ p["w1_t"] + p["b1"][0], 0.0)
    m = m @ p["w2_t"] + p["b2"][0]
    return jnp.transpose(x1 + m, (1, 0, 2))


if __name__ == "__main__":
    SEQ, BATCH, DIM, N_HEADS = 8, 2, 128, 4      # D % 128 == 0 -> lane-dense IO

    key = jax.random.PRNGKey(0)
    kx, kp = jax.random.split(key)
    x = jax.random.normal(kx, (SEQ, BATCH, DIM), dtype=jnp.float32)
    params = make_params(kp, DIM)

    ref = reference(x, params, N_HEADS)

    # f32 MXU operands: tight check (approx reciprocal + one-pass LN only).
    out = jax.block_until_ready(res_attention_block(x, params, N_HEADS))
    assert out.shape == (SEQ, BATCH, DIM)
    np.testing.assert_allclose(np.asarray(out), np.asarray(ref),
                               rtol=1e-3, atol=1e-3)

    # bf16 MXU operands with f32 accumulation: looser check.
    out_bf16 = jax.block_until_ready(
        res_attention_block(x, params, N_HEADS, matmul_dtype=jnp.bfloat16))
    np.testing.assert_allclose(np.asarray(out_bf16), np.asarray(ref),
                               rtol=2e-2, atol=2e-2)

    # Transpose-free (batch_first) API path.
    out_bfirst = jax.block_until_ready(
        res_attention_block(jnp.transpose(x, (1, 0, 2)), params, N_HEADS,
                            batch_first=True))
    np.testing.assert_allclose(np.asarray(out_bfirst),
                               np.asarray(jnp.transpose(ref, (1, 0, 2))),
                               rtol=1e-3, atol=1e-3)

    print("KERNEL_OK")
</pallas_src>

<mosaic_0001>
module attributes {stable_mosaic.version = 11 : i64} {
  func.func @res_attn_kernel(%arg0: i32, %arg1: memref<2x8x128xf32, #tpu.memory_space<vmem>>, %arg2: memref<1x128xf32, #tpu.memory_space<vmem>>, %arg3: memref<1x128xf32, #tpu.memory_space<vmem>>, %arg4: memref<128x128xf32, #tpu.memory_space<vmem>>, %arg5: memref<128x128xf32, #tpu.memory_space<vmem>>, %arg6: memref<128x128xf32, #tpu.memory_space<vmem>>, %arg7: memref<1x128xf32, #tpu.memory_space<vmem>>, %arg8: memref<1x128xf32, #tpu.memory_space<vmem>>, %arg9: memref<1x128xf32, #tpu.memory_space<vmem>>, %arg10: memref<128x128xf32, #tpu.memory_space<vmem>>, %arg11: memref<1x128xf32, #tpu.memory_space<vmem>>, %arg12: memref<1x128xf32, #tpu.memory_space<vmem>>, %arg13: memref<1x128xf32, #tpu.memory_space<vmem>>, %arg14: memref<128x512xf32, #tpu.memory_space<vmem>>, %arg15: memref<1x512xf32, #tpu.memory_space<vmem>>, %arg16: memref<512x128xf32, #tpu.memory_space<vmem>>, %arg17: memref<1x128xf32, #tpu.memory_space<vmem>>, %arg18: memref<2x8x128xf32, #tpu.memory_space<vmem>>) attributes {dimension_semantics = [#tpu.dimension_semantics<parallel>], iteration_bounds = array<i64: 1>, scalar_prefetch = 0 : i64, scratch_operands = 0 : i64, tpu.core_type = #tpu.core_type<tc>, window_params = [{transform_indices = @transform_0, window_bounds = array<i64: 2, 8, 128>}, {pipeline_mode = #tpu.pipeline_mode<synchronous>, transform_indices = @transform_1, window_bounds = array<i64: 1, 128>}, {pipeline_mode = #tpu.pipeline_mode<synchronous>, transform_indices = @transform_2, window_bounds = array<i64: 1, 128>}, {pipeline_mode = #tpu.pipeline_mode<synchronous>, transform_indices = @transform_3, window_bounds = array<i64: 128, 128>}, {pipeline_mode = #tpu.pipeline_mode<synchronous>, transform_indices = @transform_4, window_bounds = array<i64: 128, 128>}, {pipeline_mode = #tpu.pipeline_mode<synchronous>, transform_indices = @transform_5, window_bounds = array<i64: 128, 128>}, {pipeline_mode = #tpu.pipeline_mode<synchronous>, transform_indices = @transform_6, window_bounds = array<i64: 1, 128>}, {pipeline_mode = #tpu.pipeline_mode<synchronous>, transform_indices = @transform_7, window_bounds = array<i64: 1, 128>}, {pipeline_mode = #tpu.pipeline_mode<synchronous>, transform_indices = @transform_8, window_bounds = array<i64: 1, 128>}, {pipeline_mode = #tpu.pipeline_mode<synchronous>, transform_indices = @transform_9, window_bounds = array<i64: 128, 128>}, {pipeline_mode = #tpu.pipeline_mode<synchronous>, transform_indices = @transform_10, window_bounds = array<i64: 1, 128>}, {pipeline_mode = #tpu.pipeline_mode<synchronous>, transform_indices = @transform_11, window_bounds = array<i64: 1, 128>}, {pipeline_mode = #tpu.pipeline_mode<synchronous>, transform_indices = @transform_12, window_bounds = array<i64: 1, 128>}, {pipeline_mode = #tpu.pipeline_mode<synchronous>, transform_indices = @transform_13, window_bounds = array<i64: 128, 512>}, {pipeline_mode = #tpu.pipeline_mode<synchronous>, transform_indices = @transform_14, window_bounds = array<i64: 1, 512>}, {pipeline_mode = #tpu.pipeline_mode<synchronous>, transform_indices = @transform_15, window_bounds = array<i64: 512, 128>}, {pipeline_mode = #tpu.pipeline_mode<synchronous>, transform_indices = @transform_16, window_bounds = array<i64: 1, 128>}, {transform_indices = @transform_17, window_bounds = array<i64: 2, 8, 128>}]} {
    %c0 = arith.constant 0 : index
    %c0_0 = arith.constant 0 : index
    %c0_1 = arith.constant 0 : index
    %0 = vector.load %arg1[%c0, %c0_0, %c0_1] : memref<2x8x128xf32, #tpu.memory_space<vmem>>, vector<2x8x128xf32>
    %1 = vector.shape_cast %0 : vector<2x8x128xf32> to vector<16x128xf32>
    %c0_2 = arith.constant 0 : index
    %c0_3 = arith.constant 0 : index
    %2 = vector.load %arg2[%c0_2, %c0_3] : memref<1x128xf32, #tpu.memory_space<vmem>>, vector<1x128xf32>
    %c0_4 = arith.constant 0 : index
    %c0_5 = arith.constant 0 : index
    %3 = vector.load %arg3[%c0_4, %c0_5] : memref<1x128xf32, #tpu.memory_space<vmem>>, vector<1x128xf32>
    %cst = arith.constant dense<0.000000e+00> : vector<16xf32>
    %4 = vector.multi_reduction <add>, %1, %cst [1] : vector<16x128xf32> to vector<16xf32>
    %5 = vector.shape_cast %4 : vector<16xf32> to vector<16x1xf32>
    %cst_6 = arith.constant 1.280000e+02 : f32
    %6 = vector.broadcast %cst_6 : f32 to vector<16x1xf32>
    %7 = arith.divf %5, %6 : vector<16x1xf32>
    %8 = arith.mulf %1, %1 : vector<16x128xf32>
    %cst_7 = arith.constant dense<0.000000e+00> : vector<16xf32>
    %9 = vector.multi_reduction <add>, %8, %cst_7 [1] : vector<16x128xf32> to vector<16xf32>
    %10 = vector.shape_cast %9 : vector<16xf32> to vector<16x1xf32>
    %cst_8 = arith.constant 1.280000e+02 : f32
    %11 = vector.broadcast %cst_8 : f32 to vector<16x1xf32>
    %12 = arith.divf %10, %11 : vector<16x1xf32>
    %13 = arith.mulf %7, %7 : vector<16x1xf32>
    %14 = arith.subf %12, %13 : vector<16x1xf32>
    %15 = vector.broadcast %7 : vector<16x1xf32> to vector<16x128xf32>
    %16 = arith.subf %1, %15 : vector<16x128xf32>
    %cst_9 = arith.constant 9.99999974E-6 : f32
    %17 = vector.broadcast %cst_9 : f32 to vector<16x1xf32>
    %18 = arith.addf %14, %17 : vector<16x1xf32>
    %19 = math.rsqrt %18 : vector<16x1xf32>
    %20 = vector.broadcast %19 : vector<16x1xf32> to vector<16x128xf32>
    %21 = arith.mulf %16, %20 : vector<16x128xf32>
    %22 = vector.broadcast %2 : vector<1x128xf32> to vector<16x128xf32>
    %23 = arith.mulf %21, %22 : vector<16x128xf32>
    %24 = vector.broadcast %3 : vector<1x128xf32> to vector<16x128xf32>
    %25 = arith.addf %23, %24 : vector<16x128xf32>
    %c0_10 = arith.constant 0 : index
    %c0_11 = arith.constant 0 : index
    %26 = vector.load %arg4[%c0_10, %c0_11] : memref<128x128xf32, #tpu.memory_space<vmem>>, vector<128x128xf32>
    %cst_12 = arith.constant dense<0.000000e+00> : vector<16x128xf32>
    %27 = tpu.matmul %25, %26, %cst_12 {dimension_numbers = #tpu.dot_dimension_numbers<[1], [0], [0], [1], [0, 0, 1, 1], [], []>} : vector<16x128xf32>, vector<128x128xf32>, vector<16x128xf32> -> vector<16x128xf32>
    %c0_13 = arith.constant 0 : index
    %c0_14 = arith.constant 0 : index
    %28 = vector.load %arg7[%c0_13, %c0_14] : memref<1x128xf32, #tpu.memory_space<vmem>>, vector<1x128xf32>
    %29 = vector.broadcast %28 : vector<1x128xf32> to vector<16x128xf32>
    %30 = arith.addf %27, %29 : vector<16x128xf32>
    %c0_15 = arith.constant 0 : index
    %c0_16 = arith.constant 0 : index
    %31 = vector.load %arg5[%c0_15, %c0_16] : memref<128x128xf32, #tpu.memory_space<vmem>>, vector<128x128xf32>
    %cst_17 = arith.constant dense<0.000000e+00> : vector<16x128xf32>
    %32 = tpu.matmul %25, %31, %cst_17 {dimension_numbers = #tpu.dot_dimension_numbers<[1], [0], [0], [1], [0, 0, 1, 1], [], []>} : vector<16x128xf32>, vector<128x128xf32>, vector<16x128xf32> -> vector<16x128xf32>
    %c0_18 = arith.constant 0 : index
    %c0_19 = arith.constant 0 : index
    %33 = vector.load %arg8[%c0_18, %c0_19] : memref<1x128xf32, #tpu.memory_space<vmem>>, vector<1x128xf32>
    %34 = vector.broadcast %33 : vector<1x128xf32> to vector<16x128xf32>
    %35 = arith.addf %32, %34 : vector<16x128xf32>
    %c0_20 = arith.constant 0 : index
    %c0_21 = arith.constant 0 : index
    %36 = vector.load %arg6[%c0_20, %c0_21] : memref<128x128xf32, #tpu.memory_space<vmem>>, vector<128x128xf32>
    %cst_22 = arith.constant dense<0.000000e+00> : vector<16x128xf32>
    %37 = tpu.matmul %25, %36, %cst_22 {dimension_numbers = #tpu.dot_dimension_numbers<[1], [0], [0], [1], [0, 0, 1, 1], [], []>} : vector<16x128xf32>, vector<128x128xf32>, vector<16x128xf32> -> vector<16x128xf32>
    %c0_23 = arith.constant 0 : index
    %c0_24 = arith.constant 0 : index
    %38 = vector.load %arg9[%c0_23, %c0_24] : memref<1x128xf32, #tpu.memory_space<vmem>>, vector<1x128xf32>
    %39 = vector.broadcast %38 : vector<1x128xf32> to vector<16x128xf32>
    %40 = arith.addf %37, %39 : vector<16x128xf32>
    %41 = vector.shape_cast %30 : vector<16x128xf32> to vector<2x8x128xf32>
    %42 = vector.shape_cast %35 : vector<16x128xf32> to vector<2x8x128xf32>
    %43 = vector.shape_cast %40 : vector<16x128xf32> to vector<2x8x128xf32>
    %cst_25 = arith.constant 0.000000e+00 : f32
    %44 = vector.broadcast %cst_25 : f32 to vector<16x128xf32>
    %45 = vector.extract_strided_slice %41 {offsets = [0, 0, 0], sizes = [2, 8, 32], strides = [1, 1, 1]} : vector<2x8x128xf32> to vector<2x8x32xf32>
    %46 = vector.extract_strided_slice %42 {offsets = [0, 0, 0], sizes = [2, 8, 32], strides = [1, 1, 1]} : vector<2x8x128xf32> to vector<2x8x32xf32>
    %47 = vector.extract_strided_slice %43 {offsets = [0, 0, 0], sizes = [2, 8, 32], strides = [1, 1, 1]} : vector<2x8x128xf32> to vector<2x8x32xf32>
    "tpu.trace_start"() <{level = 10 : i32, message = "bqd,bkd->bqk"}> : () -> ()
    %cst_26 = arith.constant dense<0.000000e+00> : vector<2x8x8xf32>
    %48 = tpu.matmul %45, %46, %cst_26 {dimension_numbers = #tpu.dot_dimension_numbers<[2], [2], [1], [1], [0, 0, 0, 1, 1, 1], [0], [0]>} : vector<2x8x32xf32>, vector<2x8x32xf32>, vector<2x8x8xf32> -> vector<2x8x8xf32>
    "tpu.trace_stop"() : () -> ()
    %cst_27 = arith.constant dense<0xFF800000> : vector<2x8xf32>
    %49 = vector.multi_reduction <maximumf>, %48, %cst_27 [2] : vector<2x8x8xf32> to vector<2x8xf32>
    %50 = vector.shape_cast %49 : vector<2x8xf32> to vector<2x8x1xf32>
    %51 = vector.broadcast %50 : vector<2x8x1xf32> to vector<2x8x8xf32>
    %52 = arith.subf %48, %51 : vector<2x8x8xf32>
    %53 = math.exp %52 : vector<2x8x8xf32>
    %cst_28 = arith.constant dense<0.000000e+00> : vector<2x8xf32>
    %54 = vector.multi_reduction <add>, %53, %cst_28 [2] : vector<2x8x8xf32> to vector<2x8xf32>
    %55 = vector.shape_cast %54 : vector<2x8xf32> to vector<2x8x1xf32>
    %56 = tpu.reciprocal %55 {approx = true} : vector<2x8x1xf32> -> vector<2x8x1xf32>
    %57 = vector.broadcast %56 : vector<2x8x1xf32> to vector<2x8x8xf32>
    %58 = arith.mulf %53, %57 : vector<2x8x8xf32>
    "tpu.trace_start"() <{level = 10 : i32, message = "bqk,bkd->bqd"}> : () -> ()
    %cst_29 = arith.constant dense<0.000000e+00> : vector<2x8x32xf32>
    %59 = tpu.matmul %58, %47, %cst_29 {dimension_numbers = #tpu.dot_dimension_numbers<[2], [1], [1], [2], [0, 0, 0, 1, 1, 2], [0], [0]>} : vector<2x8x8xf32>, vector<2x8x32xf32>, vector<2x8x32xf32> -> vector<2x8x32xf32>
    "tpu.trace_stop"() : () -> ()
    %60 = vector.shape_cast %59 : vector<2x8x32xf32> to vector<16x32xf32>
    %c0_30 = arith.constant 0 : index
    %c0_31 = arith.constant 0 : index
    %61 = vector.load %arg10[%c0_30, %c0_31] : memref<128x128xf32, #tpu.memory_space<vmem>>, vector<32x128xf32>
    %cst_32 = arith.constant dense<0.000000e+00> : vector<16x128xf32>
    %62 = tpu.matmul %60, %61, %cst_32 {dimension_numbers = #tpu.dot_dimension_numbers<[1], [0], [0], [1], [0, 0, 1, 1], [], []>} : vector<16x32xf32>, vector<32x128xf32>, vector<16x128xf32> -> vector<16x128xf32>
    %63 = arith.addf %44, %62 : vector<16x128xf32>
    %64 = vector.extract_strided_slice %41 {offsets = [0, 0, 32], sizes = [2, 8, 32], strides = [1, 1, 1]} : vector<2x8x128xf32> to vector<2x8x32xf32>
    %65 = vector.extract_strided_slice %42 {offsets = [0, 0, 32], sizes = [2, 8, 32], strides = [1, 1, 1]} : vector<2x8x128xf32> to vector<2x8x32xf32>
    %66 = vector.extract_strided_slice %43 {offsets = [0, 0, 32], sizes = [2, 8, 32], strides = [1, 1, 1]} : vector<2x8x128xf32> to vector<2x8x32xf32>
    "tpu.trace_start"() <{level = 10 : i32, message = "bqd,bkd->bqk"}> : () -> ()
    %cst_33 = arith.constant dense<0.000000e+00> : vector<2x8x8xf32>
    %67 = tpu.matmul %64, %65, %cst_33 {dimension_numbers = #tpu.dot_dimension_numbers<[2], [2], [1], [1], [0, 0, 0, 1, 1, 1], [0], [0]>} : vector<2x8x32xf32>, vector<2x8x32xf32>, vector<2x8x8xf32> -> vector<2x8x8xf32>
    "tpu.trace_stop"() : () -> ()
    %cst_34 = arith.constant dense<0xFF800000> : vector<2x8xf32>
    %68 = vector.multi_reduction <maximumf>, %67, %cst_34 [2] : vector<2x8x8xf32> to vector<2x8xf32>
    %69 = vector.shape_cast %68 : vector<2x8xf32> to vector<2x8x1xf32>
    %70 = vector.broadcast %69 : vector<2x8x1xf32> to vector<2x8x8xf32>
    %71 = arith.subf %67, %70 : vector<2x8x8xf32>
    %72 = math.exp %71 : vector<2x8x8xf32>
    %cst_35 = arith.constant dense<0.000000e+00> : vector<2x8xf32>
    %73 = vector.multi_reduction <add>, %72, %cst_35 [2] : vector<2x8x8xf32> to vector<2x8xf32>
    %74 = vector.shape_cast %73 : vector<2x8xf32> to vector<2x8x1xf32>
    %75 = tpu.reciprocal %74 {approx = true} : vector<2x8x1xf32> -> vector<2x8x1xf32>
    %76 = vector.broadcast %75 : vector<2x8x1xf32> to vector<2x8x8xf32>
    %77 = arith.mulf %72, %76 : vector<2x8x8xf32>
    "tpu.trace_start"() <{level = 10 : i32, message = "bqk,bkd->bqd"}> : () -> ()
    %cst_36 = arith.constant dense<0.000000e+00> : vector<2x8x32xf32>
    %78 = tpu.matmul %77, %66, %cst_36 {dimension_numbers = #tpu.dot_dimension_numbers<[2], [1], [1], [2], [0, 0, 0, 1, 1, 2], [0], [0]>} : vector<2x8x8xf32>, vector<2x8x32xf32>, vector<2x8x32xf32> -> vector<2x8x32xf32>
    "tpu.trace_stop"() : () -> ()
    %79 = vector.shape_cast %78 : vector<2x8x32xf32> to vector<16x32xf32>
    %c32 = arith.constant 32 : index
    %c0_37 = arith.constant 0 : index
    %80 = vector.load %arg10[%c32, %c0_37] : memref<128x128xf32, #tpu.memory_space<vmem>>, vector<32x128xf32>
    %cst_38 = arith.constant dense<0.000000e+00> : vector<16x128xf32>
    %81 = tpu.matmul %79, %80, %cst_38 {dimension_numbers = #tpu.dot_dimension_numbers<[1], [0], [0], [1], [0, 0, 1, 1], [], []>} : vector<16x32xf32>, vector<32x128xf32>, vector<16x128xf32> -> vector<16x128xf32>
    %82 = arith.addf %63, %81 : vector<16x128xf32>
    %83 = vector.extract_strided_slice %41 {offsets = [0, 0, 64], sizes = [2, 8, 32], strides = [1, 1, 1]} : vector<2x8x128xf32> to vector<2x8x32xf32>
    %84 = vector.extract_strided_slice %42 {offsets = [0, 0, 64], sizes = [2, 8, 32], strides = [1, 1, 1]} : vector<2x8x128xf32> to vector<2x8x32xf32>
    %85 = vector.extract_strided_slice %43 {offsets = [0, 0, 64], sizes = [2, 8, 32], strides = [1, 1, 1]} : vector<2x8x128xf32> to vector<2x8x32xf32>
    "tpu.trace_start"() <{level = 10 : i32, message = "bqd,bkd->bqk"}> : () -> ()
    %cst_39 = arith.constant dense<0.000000e+00> : vector<2x8x8xf32>
    %86 = tpu.matmul %83, %84, %cst_39 {dimension_numbers = #tpu.dot_dimension_numbers<[2], [2], [1], [1], [0, 0, 0, 1, 1, 1], [0], [0]>} : vector<2x8x32xf32>, vector<2x8x32xf32>, vector<2x8x8xf32> -> vector<2x8x8xf32>
    "tpu.trace_stop"() : () -> ()
    %cst_40 = arith.constant dense<0xFF800000> : vector<2x8xf32>
    %87 = vector.multi_reduction <maximumf>, %86, %cst_40 [2] : vector<2x8x8xf32> to vector<2x8xf32>
    %88 = vector.shape_cast %87 : vector<2x8xf32> to vector<2x8x1xf32>
    %89 = vector.broadcast %88 : vector<2x8x1xf32> to vector<2x8x8xf32>
    %90 = arith.subf %86, %89 : vector<2x8x8xf32>
    %91 = math.exp %90 : vector<2x8x8xf32>
    %cst_41 = arith.constant dense<0.000000e+00> : vector<2x8xf32>
    %92 = vector.multi_reduction <add>, %91, %cst_41 [2] : vector<2x8x8xf32> to vector<2x8xf32>
    %93 = vector.shape_cast %92 : vector<2x8xf32> to vector<2x8x1xf32>
    %94 = tpu.reciprocal %93 {approx = true} : vector<2x8x1xf32> -> vector<2x8x1xf32>
    %95 = vector.broadcast %94 : vector<2x8x1xf32> to vector<2x8x8xf32>
    %96 = arith.mulf %91, %95 : vector<2x8x8xf32>
    "tpu.trace_start"() <{level = 10 : i32, message = "bqk,bkd->bqd"}> : () -> ()
    %cst_42 = arith.constant dense<0.000000e+00> : vector<2x8x32xf32>
    %97 = tpu.matmul %96, %85, %cst_42 {dimension_numbers = #tpu.dot_dimension_numbers<[2], [1], [1], [2], [0, 0, 0, 1, 1, 2], [0], [0]>} : vector<2x8x8xf32>, vector<2x8x32xf32>, vector<2x8x32xf32> -> vector<2x8x32xf32>
    "tpu.trace_stop"() : () -> ()
    %98 = vector.shape_cast %97 : vector<2x8x32xf32> to vector<16x32xf32>
    %c64 = arith.constant 64 : index
    %c0_43 = arith.constant 0 : index
    %99 = vector.load %arg10[%c64, %c0_43] : memref<128x128xf32, #tpu.memory_space<vmem>>, vector<32x128xf32>
    %cst_44 = arith.constant dense<0.000000e+00> : vector<16x128xf32>
    %100 = tpu.matmul %98, %99, %cst_44 {dimension_numbers = #tpu.dot_dimension_numbers<[1], [0], [0], [1], [0, 0, 1, 1], [], []>} : vector<16x32xf32>, vector<32x128xf32>, vector<16x128xf32> -> vector<16x128xf32>
    %101 = arith.addf %82, %100 : vector<16x128xf32>
    %102 = vector.extract_strided_slice %41 {offsets = [0, 0, 96], sizes = [2, 8, 32], strides = [1, 1, 1]} : vector<2x8x128xf32> to vector<2x8x32xf32>
    %103 = vector.extract_strided_slice %42 {offsets = [0, 0, 96], sizes = [2, 8, 32], strides = [1, 1, 1]} : vector<2x8x128xf32> to vector<2x8x32xf32>
    %104 = vector.extract_strided_slice %43 {offsets = [0, 0, 96], sizes = [2, 8, 32], strides = [1, 1, 1]} : vector<2x8x128xf32> to vector<2x8x32xf32>
    "tpu.trace_start"() <{level = 10 : i32, message = "bqd,bkd->bqk"}> : () -> ()
    %cst_45 = arith.constant dense<0.000000e+00> : vector<2x8x8xf32>
    %105 = tpu.matmul %102, %103, %cst_45 {dimension_numbers = #tpu.dot_dimension_numbers<[2], [2], [1], [1], [0, 0, 0, 1, 1, 1], [0], [0]>} : vector<2x8x32xf32>, vector<2x8x32xf32>, vector<2x8x8xf32> -> vector<2x8x8xf32>
    "tpu.trace_stop"() : () -> ()
    %cst_46 = arith.constant dense<0xFF800000> : vector<2x8xf32>
    %106 = vector.multi_reduction <maximumf>, %105, %cst_46 [2] : vector<2x8x8xf32> to vector<2x8xf32>
    %107 = vector.shape_cast %106 : vector<2x8xf32> to vector<2x8x1xf32>
    %108 = vector.broadcast %107 : vector<2x8x1xf32> to vector<2x8x8xf32>
    %109 = arith.subf %105, %108 : vector<2x8x8xf32>
    %110 = math.exp %109 : vector<2x8x8xf32>
    %cst_47 = arith.constant dense<0.000000e+00> : vector<2x8xf32>
    %111 = vector.multi_reduction <add>, %110, %cst_47 [2] : vector<2x8x8xf32> to vector<2x8xf32>
    %112 = vector.shape_cast %111 : vector<2x8xf32> to vector<2x8x1xf32>
    %113 = tpu.reciprocal %112 {approx = true} : vector<2x8x1xf32> -> vector<2x8x1xf32>
    %114 = vector.broadcast %113 : vector<2x8x1xf32> to vector<2x8x8xf32>
    %115 = arith.mulf %110, %114 : vector<2x8x8xf32>
    "tpu.trace_start"() <{level = 10 : i32, message = "bqk,bkd->bqd"}> : () -> ()
    %cst_48 = arith.constant dense<0.000000e+00> : vector<2x8x32xf32>
    %116 = tpu.matmul %115, %104, %cst_48 {dimension_numbers = #tpu.dot_dimension_numbers<[2], [1], [1], [2], [0, 0, 0, 1, 1, 2], [0], [0]>} : vector<2x8x8xf32>, vector<2x8x32xf32>, vector<2x8x32xf32> -> vector<2x8x32xf32>
    "tpu.trace_stop"() : () -> ()
    %117 = vector.shape_cast %116 : vector<2x8x32xf32> to vector<16x32xf32>
    %c96 = arith.constant 96 : index
    %c0_49 = arith.constant 0 : index
    %118 = vector.load %arg10[%c96, %c0_49] : memref<128x128xf32, #tpu.memory_space<vmem>>, vector<32x128xf32>
    %cst_50 = arith.constant dense<0.000000e+00> : vector<16x128xf32>
    %119 = tpu.matmul %117, %118, %cst_50 {dimension_numbers = #tpu.dot_dimension_numbers<[1], [0], [0], [1], [0, 0, 1, 1], [], []>} : vector<16x32xf32>, vector<32x128xf32>, vector<16x128xf32> -> vector<16x128xf32>
    %120 = arith.addf %101, %119 : vector<16x128xf32>
    %121 = arith.addf %1, %120 : vector<16x128xf32>
    %c0_51 = arith.constant 0 : index
    %c0_52 = arith.constant 0 : index
    %122 = vector.load %arg11[%c0_51, %c0_52] : memref<1x128xf32, #tpu.memory_space<vmem>>, vector<1x128xf32>
    %123 = vector.broadcast %122 : vector<1x128xf32> to vector<16x128xf32>
    %124 = arith.addf %121, %123 : vector<16x128xf32>
    %c0_53 = arith.constant 0 : index
    %c0_54 = arith.constant 0 : index
    %125 = vector.load %arg12[%c0_53, %c0_54] : memref<1x128xf32, #tpu.memory_space<vmem>>, vector<1x128xf32>
    %c0_55 = arith.constant 0 : index
    %c0_56 = arith.constant 0 : index
    %126 = vector.load %arg13[%c0_55, %c0_56] : memref<1x128xf32, #tpu.memory_space<vmem>>, vector<1x128xf32>
    %cst_57 = arith.constant dense<0.000000e+00> : vector<16xf32>
    %127 = vector.multi_reduction <add>, %124, %cst_57 [1] : vector<16x128xf32> to vector<16xf32>
    %128 = vector.shape_cast %127 : vector<16xf32> to vector<16x1xf32>
    %cst_58 = arith.constant 1.280000e+02 : f32
    %129 = vector.broadcast %cst_58 : f32 to vector<16x1xf32>
    %130 = arith.divf %128, %129 : vector<16x1xf32>
    %131 = arith.mulf %124, %124 : vector<16x128xf32>
    %cst_59 = arith.constant dense<0.000000e+00> : vector<16xf32>
    %132 = vector.multi_reduction <add>, %131, %cst_59 [1] : vector<16x128xf32> to vector<16xf32>
    %133 = vector.shape_cast %132 : vector<16xf32> to vector<16x1xf32>
    %cst_60 = arith.constant 1.280000e+02 : f32
    %134 = vector.broadcast %cst_60 : f32 to vector<16x1xf32>
    %135 = arith.divf %133, %134 : vector<16x1xf32>
    %136 = arith.mulf %130, %130 : vector<16x1xf32>
    %137 = arith.subf %135, %136 : vector<16x1xf32>
    %138 = vector.broadcast %130 : vector<16x1xf32> to vector<16x128xf32>
    %139 = arith.subf %124, %138 : vector<16x128xf32>
    %cst_61 = arith.constant 9.99999974E-6 : f32
    %140 = vector.broadcast %cst_61 : f32 to vector<16x1xf32>
    %141 = arith.addf %137, %140 : vector<16x1xf32>
    %142 = math.rsqrt %141 : vector<16x1xf32>
    %143 = vector.broadcast %142 : vector<16x1xf32> to vector<16x128xf32>
    %144 = arith.mulf %139, %143 : vector<16x128xf32>
    %145 = vector.broadcast %125 : vector<1x128xf32> to vector<16x128xf32>
    %146 = arith.mulf %144, %145 : vector<16x128xf32>
    %147 = vector.broadcast %126 : vector<1x128xf32> to vector<16x128xf32>
    %148 = arith.addf %146, %147 : vector<16x128xf32>
    %c0_62 = arith.constant 0 : index
    %c0_63 = arith.constant 0 : index
    %149 = vector.load %arg14[%c0_62, %c0_63] : memref<128x512xf32, #tpu.memory_space<vmem>>, vector<128x512xf32>
    %cst_64 = arith.constant dense<0.000000e+00> : vector<16x512xf32>
    %150 = tpu.matmul %148, %149, %cst_64 {dimension_numbers = #tpu.dot_dimension_numbers<[1], [0], [0], [1], [0, 0, 1, 1], [], []>} : vector<16x128xf32>, vector<128x512xf32>, vector<16x512xf32> -> vector<16x512xf32>
    %c0_65 = arith.constant 0 : index
    %c0_66 = arith.constant 0 : index
    %151 = vector.load %arg15[%c0_65, %c0_66] : memref<1x512xf32, #tpu.memory_space<vmem>>, vector<1x512xf32>
    %152 = vector.broadcast %151 : vector<1x512xf32> to vector<16x512xf32>
    %153 = arith.addf %150, %152 : vector<16x512xf32>
    %cst_67 = arith.constant 0.000000e+00 : f32
    %154 = vector.broadcast %cst_67 : f32 to vector<16x512xf32>
    %155 = arith.maximumf %153, %154 : vector<16x512xf32>
    %c0_68 = arith.constant 0 : index
    %c0_69 = arith.constant 0 : index
    %156 = vector.load %arg16[%c0_68, %c0_69] : memref<512x128xf32, #tpu.memory_space<vmem>>, vector<512x128xf32>
    %cst_70 = arith.constant dense<0.000000e+00> : vector<16x128xf32>
    %157 = tpu.matmul %155, %156, %cst_70 {dimension_numbers = #tpu.dot_dimension_numbers<[1], [0], [0], [1], [0, 0, 1, 1], [], []>} : vector<16x512xf32>, vector<512x128xf32>, vector<16x128xf32> -> vector<16x128xf32>
    %c0_71 = arith.constant 0 : index
    %c0_72 = arith.constant 0 : index
    %158 = vector.load %arg17[%c0_71, %c0_72] : memref<1x128xf32, #tpu.memory_space<vmem>>, vector<1x128xf32>
    %159 = vector.broadcast %158 : vector<1x128xf32> to vector<16x128xf32>
    %160 = arith.addf %157, %159 : vector<16x128xf32>
    %161 = arith.addf %124, %160 : vector<16x128xf32>
    %162 = vector.shape_cast %161 : vector<16x128xf32> to vector<2x8x128xf32>
    %c0_73 = arith.constant 0 : index
    %c0_74 = arith.constant 0 : index
    %c0_75 = arith.constant 0 : index
    %163 = vector.load %arg18[%c0_73, %c0_74, %c0_75] : memref<2x8x128xf32, #tpu.memory_space<vmem>>, vector<2x8x128xf32>
    tpu.vector_store %arg18[%c0_73, %c0_74, %c0_75], %162 {strides = array<i32>} : memref<2x8x128xf32, #tpu.memory_space<vmem>>, vector<2x8x128xf32>,
    return
  }
  func.func @transform_0(%arg0: i32) -> (i32, i32, i32) {
    %c0_i32 = arith.constant 0 : i32
    %c0_i32_0 = arith.constant 0 : i32
    %c0_i32_1 = arith.constant 0 : i32
    return %arg0, %c0_i32, %c0_i32_0 : i32, i32, i32
  }
  func.func @transform_1(%arg0: i32) -> (i32, i32) {
    %c0_i32 = arith.constant 0 : i32
    %c0_i32_0 = arith.constant 0 : i32
    %c0_i32_1 = arith.constant 0 : i32
    return %c0_i32, %c0_i32_0 : i32, i32
  }
  func.func @transform_2(%arg0: i32) -> (i32, i32) {
    %c0_i32 = arith.constant 0 : i32
    %c0_i32_0 = arith.constant 0 : i32
    %c0_i32_1 = arith.constant 0 : i32
    return %c0_i32, %c0_i32_0 : i32, i32
  }
  func.func @transform_3(%arg0: i32) -> (i32, i32) {
    %c0_i32 = arith.constant 0 : i32
    %c0_i32_0 = arith.constant 0 : i32
    %c0_i32_1 = arith.constant 0 : i32
    return %c0_i32, %c0_i32_0 : i32, i32
  }
  func.func @transform_4(%arg0: i32) -> (i32, i32) {
    %c0_i32 = arith.constant 0 : i32
    %c0_i32_0 = arith.constant 0 : i32
    %c0_i32_1 = arith.constant 0 : i32
    return %c0_i32, %c0_i32_0 : i32, i32
  }
  func.func @transform_5(%arg0: i32) -> (i32, i32) {
    %c0_i32 = arith.constant 0 : i32
    %c0_i32_0 = arith.constant 0 : i32
    %c0_i32_1 = arith.constant 0 : i32
    return %c0_i32, %c0_i32_0 : i32, i32
  }
  func.func @transform_6(%arg0: i32) -> (i32, i32) {
    %c0_i32 = arith.constant 0 : i32
    %c0_i32_0 = arith.constant 0 : i32
    %c0_i32_1 = arith.constant 0 : i32
    return %c0_i32, %c0_i32_0 : i32, i32
  }
  func.func @transform_7(%arg0: i32) -> (i32, i32) {
    %c0_i32 = arith.constant 0 : i32
    %c0_i32_0 = arith.constant 0 : i32
    %c0_i32_1 = arith.constant 0 : i32
    return %c0_i32, %c0_i32_0 : i32, i32
  }
  func.func @transform_8(%arg0: i32) -> (i32, i32) {
    %c0_i32 = arith.constant 0 : i32
    %c0_i32_0 = arith.constant 0 : i32
    %c0_i32_1 = arith.constant 0 : i32
    return %c0_i32, %c0_i32_0 : i32, i32
  }
  func.func @transform_9(%arg0: i32) -> (i32, i32) {
    %c0_i32 = arith.constant 0 : i32
    %c0_i32_0 = arith.constant 0 : i32
    %c0_i32_1 = arith.constant 0 : i32
    return %c0_i32, %c0_i32_0 : i32, i32
  }
  func.func @transform_10(%arg0: i32) -> (i32, i32) {
    %c0_i32 = arith.constant 0 : i32
    %c0_i32_0 = arith.constant 0 : i32
    %c0_i32_1 = arith.constant 0 : i32
    return %c0_i32, %c0_i32_0 : i32, i32
  }
  func.func @transform_11(%arg0: i32) -> (i32, i32) {
    %c0_i32 = arith.constant 0 : i32
    %c0_i32_0 = arith.constant 0 : i32
    %c0_i32_1 = arith.constant 0 : i32
    return %c0_i32, %c0_i32_0 : i32, i32
  }
  func.func @transform_12(%arg0: i32) -> (i32, i32) {
    %c0_i32 = arith.constant 0 : i32
    %c0_i32_0 = arith.constant 0 : i32
    %c0_i32_1 = arith.constant 0 : i32
    return %c0_i32, %c0_i32_0 : i32, i32
  }
  func.func @transform_13(%arg0: i32) -> (i32, i32) {
    %c0_i32 = arith.constant 0 : i32
    %c0_i32_0 = arith.constant 0 : i32
    %c0_i32_1 = arith.constant 0 : i32
    return %c0_i32, %c0_i32_0 : i32, i32
  }
  func.func @transform_14(%arg0: i32) -> (i32, i32) {
    %c0_i32 = arith.constant 0 : i32
    %c0_i32_0 = arith.constant 0 : i32
    %c0_i32_1 = arith.constant 0 : i32
    return %c0_i32, %c0_i32_0 : i32, i32
  }
  func.func @transform_15(%arg0: i32) -> (i32, i32) {
    %c0_i32 = arith.constant 0 : i32
    %c0_i32_0 = arith.constant 0 : i32
    %c0_i32_1 = arith.constant 0 : i32
    return %c0_i32, %c0_i32_0 : i32, i32
  }
  func.func @transform_16(%arg0: i32) -> (i32, i32) {
    %c0_i32 = arith.constant 0 : i32
    %c0_i32_0 = arith.constant 0 : i32
    %c0_i32_1 = arith.constant 0 : i32
    return %c0_i32, %c0_i32_0 : i32, i32
  }
  func.func @transform_17(%arg0: i32) -> (i32, i32, i32) {
    %c0_i32 = arith.constant 0 : i32
    %c0_i32_0 = arith.constant 0 : i32
    %c0_i32_1 = arith.constant 0 : i32
    return %arg0, %c0_i32, %c0_i32_0 : i32, i32, i32
  }
}

</mosaic_0001>

<llo_original>
// kernel: tpu_custom_call.1
$region0: #{tpu_custom_call.1}
  #allocation0 [shape = 'u32[]', space=smem, size = 0x4, offset = 0x4, fixed_abs, tag = 'smem constant byte address 0x4 - core index']
  #allocation1 [shape = 'u32[144,128]{1,0:T(1,128)}', space=vmem, size = 0x12000, scoped, tag = 'internal scratch']
  %s0 = inlined_call_operand.hbm [shape: f32[2,8,128], index: 0, kind: input, shape index: {}]
  %s1 = inlined_call_operand.vmem [shape: f32[1,128], index: 1, kind: input, shape index: {}]
  %s2 = inlined_call_operand.vmem [shape: f32[1,128], index: 2, kind: input, shape index: {}]
  %s3 = inlined_call_operand.hbm [shape: f32[128,128], index: 3, kind: input, shape index: {}]
  %s4 = inlined_call_operand.hbm [shape: f32[128,128], index: 4, kind: input, shape index: {}]
  %s5 = inlined_call_operand.hbm [shape: f32[128,128], index: 5, kind: input, shape index: {}]
  %s6 = inlined_call_operand.vmem [shape: f32[1,128], index: 6, kind: input, shape index: {}]
  %s7 = inlined_call_operand.vmem [shape: f32[1,128], index: 7, kind: input, shape index: {}]
  %s8 = inlined_call_operand.vmem [shape: f32[1,128], index: 8, kind: input, shape index: {}]
  %s9 = inlined_call_operand.hbm [shape: f32[128,128], index: 9, kind: input, shape index: {}]
  %s10 = inlined_call_operand.vmem [shape: f32[1,128], index: 10, kind: input, shape index: {}]
  %s11 = inlined_call_operand.vmem [shape: f32[1,128], index: 11, kind: input, shape index: {}]
  %s12 = inlined_call_operand.vmem [shape: f32[1,128], index: 12, kind: input, shape index: {}]
  %s13 = inlined_call_operand.hbm [shape: f32[128,512], index: 13, kind: input, shape index: {}]
  %s14 = inlined_call_operand.vmem [shape: f32[1,512], index: 14, kind: input, shape index: {}]
  %s15 = inlined_call_operand.hbm [shape: f32[512,128], index: 15, kind: input, shape index: {}]
  %s16 = inlined_call_operand.vmem [shape: f32[1,128], index: 16, kind: input, shape index: {}]
  %s17 = inlined_call_operand.hbm [shape: f32[2,8,128], index: 17, kind: output, shape index: {}]
  %s18 = sld [smem:[#allocation0]]
  $region106: #{tpu_custom_call.1} parent=0
    _
  %s20 = ssub.s32 1, %s18
  %s21 = scalar_select 0, %s20, %s18
  $region1: #{tpu_custom_call.1} parent=0
    #allocation2 [shape = 'u8[8192]{0}', space=vmem, size = 0x2000, scoped, tag = 'input window, operand 0, single buffered']
    #allocation3 [shape = 's32[1]{0}', space=sflag, size = 0x4, scoped, tag = 'scoped memory for tpu_custom_call.1']
    #allocation4 [shape = 's32[1]{0}', space=sflag, size = 0x4, scoped, tag = 'scoped memory for tpu_custom_call.1']
    #allocation5 [shape = 'u8[65536]{0}', space=vmem, size = 0x10000, scoped, tag = 'input window, operand 3, single buffered']
    #allocation6 [shape = 's32[1]{0}', space=sflag, size = 0x4, scoped, tag = 'scoped memory for tpu_custom_call.1']
    #allocation7 [shape = 'u8[65536]{0}', space=vmem, size = 0x10000, scoped, tag = 'input window, operand 4, single buffered']
    #allocation8 [shape = 'u8[65536]{0}', space=vmem, size = 0x10000, scoped, tag = 'input window, operand 5, single buffered']
    #allocation9 [shape = 's32[1]{0}', space=sflag, size = 0x4, scoped, tag = 'scoped memory for tpu_custom_call.1']
    #allocation10 [shape = 'u8[65536]{0}', space=vmem, size = 0x10000, scoped, tag = 'input window, operand 9, single buffered']
    #allocation11 [shape = 'u8[262144]{0}', space=vmem, size = 0x40000, scoped, tag = 'input window, operand 13, single buffered']
    #allocation12 [shape = 's32[1]{0}', space=sflag, size = 0x4, scoped, tag = 'scoped memory for tpu_custom_call.1']
    #allocation13 [shape = 'u8[262144]{0}', space=vmem, size = 0x40000, scoped, tag = 'input window, operand 15, single buffered']
    #allocation14 [shape = 'u8[8192]{0}', space=vmem, size = 0x2000, scoped, tag = 'output window, operand 0, single buffered']
    %22 = vsyncpa [#allocation3], 0
    %23 = vsyncpa [#allocation6], 0
    %24 = vsyncpa [#allocation9], 0
    %25 = vsyncpa [#allocation12], 0
    %26 = vsyncpa [#allocation4], 0
    // Predicated region
    $region2: #{tpu_custom_call.1} parent=1 // pred_check
      _
    $region3: #{tpu_custom_call.1} parent=1 // pred_check_branch
      %28 = sbr.rel (0) target = $region5
    $region4: #{tpu_custom_call.1} parent=1 // pred_region
      %s30 = ssub.s32 256, 256
      %31 = vsyncadd [#allocation3], %s30
      %s32 = sshll.u32 [#allocation2], 4
      %s33 = int_to_ptr.vmem [resolvable:$true] %s32
      %38 = dma.hbm_to_vmem [thread:$0]  %s0, 256, %s33, [#allocation3], 128, 128, 8
    $region5: #{tpu_custom_call.1} parent=1 // pred_fallthru
      _
    // Predicated region
    $region6: #{tpu_custom_call.1} parent=1 // pred_check
      _
    $region7: #{tpu_custom_call.1} parent=1 // pred_check_branch
      %40 = sbr.rel (0) target = $region9
    $region8: #{tpu_custom_call.1} parent=1 // pred_region
      _
    $region9: #{tpu_custom_call.1} parent=1 // pred_fallthru
      _
    // Predicated region
    $region10: #{tpu_custom_call.1} parent=1 // pred_check
      _
    $region11: #{tpu_custom_call.1} parent=1 // pred_check_branch
      %42 = sbr.rel (0) target = $region13
    $region12: #{tpu_custom_call.1} parent=1 // pred_region
      _
    $region13: #{tpu_custom_call.1} parent=1 // pred_fallthru
      _
    // Predicated region
    $region14: #{tpu_custom_call.1} parent=1 // pred_check
      _
    $region15: #{tpu_custom_call.1} parent=1 // pred_check_branch
      %44 = sbr.rel (0) target = $region17
    $region16: #{tpu_custom_call.1} parent=1 // pred_region
      %s46 = ssub.s32 2048, 2048
      %47 = vsyncadd [#allocation6], %s46
      %s48 = sshll.u32 [#allocation5], 4
      %s49 = int_to_ptr.vmem [resolvable:$true] %s48
      %54 = dma.hbm_to_vmem [thread:$0]  %s3, 2048, %s49, [#allocation6], 128, 128, 8
    $region17: #{tpu_custom_call.1} parent=1 // pred_fallthru
      _
    // Predicated region
    $region18: #{tpu_custom_call.1} parent=1 // pred_check
      _
    $region19: #{tpu_custom_call.1} parent=1 // pred_check_branch
      %56 = sbr.rel (0) target = $region21
    $region20: #{tpu_custom_call.1} parent=1 // pred_region
      %s58 = ssub.s32 2048, 2048
      %59 = vsyncadd [#allocation6], %s58
      %s60 = sshll.u32 [#allocation7], 4
      %s61 = int_to_ptr.vmem [resolvable:$true] %s60
      %66 = dma.hbm_to_vmem [thread:$0]  %s4, 2048, %s61, [#allocation6], 128, 128, 8
    $region21: #{tpu_custom_call.1} parent=1 // pred_fallthru
      _
    // Predicated region
    $region22: #{tpu_custom_call.1} parent=1 // pred_check
      _
    $region23: #{tpu_custom_call.1} parent=1 // pred_check_branch
      %68 = sbr.rel (0) target = $region25
    $region24: #{tpu_custom_call.1} parent=1 // pred_region
      %s70 = ssub.s32 2048, 2048
      %71 = vsyncadd [#allocation9], %s70
      %s72 = sshll.u32 [#allocation8], 4
      %s73 = int_to_ptr.vmem [resolvable:$true] %s72
      %78 = dma.hbm_to_vmem [thread:$0]  %s5, 2048, %s73, [#allocation9], 128, 128, 8
    $region25: #{tpu_custom_call.1} parent=1 // pred_fallthru
      _
    // Predicated region
    $region26: #{tpu_custom_call.1} parent=1 // pred_check
      _
    $region27: #{tpu_custom_call.1} parent=1 // pred_check_branch
      %80 = sbr.rel (0) target = $region29
    $region28: #{tpu_custom_call.1} parent=1 // pred_region
      _
    $region29: #{tpu_custom_call.1} parent=1 // pred_fallthru
      _
    // Predicated region
    $region30: #{tpu_custom_call.1} parent=1 // pred_check
      _
    $region31: #{tpu_custom_call.1} parent=1 // pred_check_branch
      %82 = sbr.rel (0) target = $region33
    $region32: #{tpu_custom_call.1} parent=1 // pred_region
      _
    $region33: #{tpu_custom_call.1} parent=1 // pred_fallthru
      _
    // Predicated region
    $region34: #{tpu_custom_call.1} parent=1 // pred_check
      _
    $region35: #{tpu_custom_call.1} parent=1 // pred_check_branch
      %84 = sbr.rel (0) target = $region37
    $region36: #{tpu_custom_call.1} parent=1 // pred_region
      _
    $region37: #{tpu_custom_call.1} parent=1 // pred_fallthru
      _
    // Predicated region
    $region38: #{tpu_custom_call.1} parent=1 // pred_check
      _
    $region39: #{tpu_custom_call.1} parent=1 // pred_check_branch
      %86 = sbr.rel (0) target = $region41
    $region40: #{tpu_custom_call.1} parent=1 // pred_region
      %s88 = ssub.s32 2048, 2048
      %89 = vsyncadd [#allocation9], %s88
      %s90 = sshll.u32 [#allocation10], 4
      %s91 = int_to_ptr.vmem [resolvable:$true] %s90
      %96 = dma.hbm_to_vmem [thread:$0]  %s9, 2048, %s91, [#allocation9], 128, 128, 8
    $region41: #{tpu_custom_call.1} parent=1 // pred_fallthru
      _
    // Predicated region
    $region42: #{tpu_custom_call.1} parent=1 // pred_check
      _
    $region43: #{tpu_custom_call.1} parent=1 // pred_check_branch
      %98 = sbr.rel (0) target = $region45
    $region44: #{tpu_custom_call.1} parent=1 // pred_region
      _
    $region45: #{tpu_custom_call.1} parent=1 // pred_fallthru
      _
    // Predicated region
    $region46: #{tpu_custom_call.1} parent=1 // pred_check
      _
    $region47: #{tpu_custom_call.1} parent=1 // pred_check_branch
      %100 = sbr.rel (0) target = $region49
    $region48: #{tpu_custom_call.1} parent=1 // pred_region
      _
    $region49: #{tpu_custom_call.1} parent=1 // pred_fallthru
      _
    // Predicated region
    $region50: #{tpu_custom_call.1} parent=1 // pred_check
      _
    $region51: #{tpu_custom_call.1} parent=1 // pred_check_branch
      %102 = sbr.rel (0) target = $region53
    $region52: #{tpu_custom_call.1} parent=1 // pred_region
      _
    $region53: #{tpu_custom_call.1} parent=1 // pred_fallthru
      _
    // Predicated region
    $region54: #{tpu_custom_call.1} parent=1 // pred_check
      _
    $region55: #{tpu_custom_call.1} parent=1 // pred_check_branch
      %104 = sbr.rel (0) target = $region57
    $region56: #{tpu_custom_call.1} parent=1 // pred_region
      %s106 = ssub.s32 8192, 8192
      %107 = vsyncadd [#allocation12], %s106
      %s108 = sshll.u32 [#allocation11], 4
      %s109 = int_to_ptr.vmem [resolvable:$true] %s108
      %114 = dma.hbm_to_vmem [thread:$0]  %s13, 8192, %s109, [#allocation12], 512, 512, 32
    $region57: #{tpu_custom_call.1} parent=1 // pred_fallthru
      _
    // Predicated region
    $region58: #{tpu_custom_call.1} parent=1 // pred_check
      _
    $region59: #{tpu_custom_call.1} parent=1 // pred_check_branch
      %116 = sbr.rel (0) target = $region61
    $region60: #{tpu_custom_call.1} parent=1 // pred_region
      _
    $region61: #{tpu_custom_call.1} parent=1 // pred_fallthru
      _
    // Predicated region
    $region62: #{tpu_custom_call.1} parent=1 // pred_check
      _
    $region63: #{tpu_custom_call.1} parent=1 // pred_check_branch
      %118 = sbr.rel (0) target = $region65
    $region64: #{tpu_custom_call.1} parent=1 // pred_region
      %s120 = ssub.s32 8192, 8192
      %121 = vsyncadd [#allocation12], %s120
      %s122 = sshll.u32 [#allocation13], 4
      %s123 = int_to_ptr.vmem [resolvable:$true] %s122
      %128 = dma.hbm_to_vmem [thread:$0]  %s15, 8192, %s123, [#allocation12], 128, 128, 8
    $region65: #{tpu_custom_call.1} parent=1 // pred_fallthru
      _
    // Predicated region
    $region66: #{tpu_custom_call.1} parent=1 // pred_check
      _
    $region67: #{tpu_custom_call.1} parent=1 // pred_check_branch
      %130 = sbr.rel (0) target = $region69
    $region68: #{tpu_custom_call.1} parent=1 // pred_region
      _
    $region69: #{tpu_custom_call.1} parent=1 // pred_fallthru
      _
    // Predicated region
    $region70: #{tpu_custom_call.1} parent=1 // pred_check
      _
    $region71: #{tpu_custom_call.1} parent=1 // pred_check_branch
      %132 = sbr.rel (0) target = $region73
    $region72: #{tpu_custom_call.1} parent=1 // pred_region
      %133 = dma.done [#allocation3], 256
    $region73: #{tpu_custom_call.1} parent=1 // pred_fallthru
      _
    // Predicated region
    $region74: #{tpu_custom_call.1} parent=1 // pred_check
      _
    $region75: #{tpu_custom_call.1} parent=1 // pred_check_branch
      %135 = sbr.rel (0) target = $region77
    $region76: #{tpu_custom_call.1} parent=1 // pred_region
      %136 = dma.done [#allocation6], 2048
    $region77: #{tpu_custom_call.1} parent=1 // pred_fallthru
      _
    // Predicated region
    $region78: #{tpu_custom_call.1} parent=1 // pred_check
      _
    $region79: #{tpu_custom_call.1} parent=1 // pred_check_branch
      %138 = sbr.rel (0) target = $region81
    $region80: #{tpu_custom_call.1} parent=1 // pred_region
      %139 = dma.done [#allocation6], 2048
    $region81: #{tpu_custom_call.1} parent=1 // pred_fallthru
      _
    // Predicated region
    $region82: #{tpu_custom_call.1} parent=1 // pred_check
      _
    $region83: #{tpu_custom_call.1} parent=1 // pred_check_branch
      %141 = sbr.rel (0) target = $region85
    $region84: #{tpu_custom_call.1} parent=1 // pred_region
      %142 = dma.done [#allocation9], 2048
    $region85: #{tpu_custom_call.1} parent=1 // pred_fallthru
      _
    // Predicated region
    $region86: #{tpu_custom_call.1} parent=1 // pred_check
      _
    $region87: #{tpu_custom_call.1} parent=1 // pred_check_branch
      %144 = sbr.rel (0) target = $region89
    $region88: #{tpu_custom_call.1} parent=1 // pred_region
      %145 = dma.done [#allocation9], 2048
    $region89: #{tpu_custom_call.1} parent=1 // pred_fallthru
      _
    // Predicated region
    $region90: #{tpu_custom_call.1} parent=1 // pred_check
      _
    $region91: #{tpu_custom_call.1} parent=1 // pred_check_branch
      %147 = sbr.rel (0) target = $region93
    $region92: #{tpu_custom_call.1} parent=1 // pred_region
      %148 = dma.done [#allocation12], 8192
    $region93: #{tpu_custom_call.1} parent=1 // pred_fallthru
      _
    // Predicated region
    $region94: #{tpu_custom_call.1} parent=1 // pred_check
      _
    $region95: #{tpu_custom_call.1} parent=1 // pred_check_branch
      %150 = sbr.rel (0) target = $region97
    $region96: #{tpu_custom_call.1} parent=1 // pred_region
      %151 = dma.done [#allocation12], 8192
    $region97: #{tpu_custom_call.1} parent=1 // pred_fallthru
      _
    %v152 = vld [vmem:[#allocation2] sm:$0xff]
    %v153 = vld [vmem:[#allocation2 + $0x8] sm:$0xff]
    %v154 = vld [vmem:[%s1] sm:$0x1]
    %v155 = vld [vmem:[%s2] sm:$0x1]
    %156 = vadd.xlane.f32.xlu0 %v152
    %v157 = vpop.xlane.xlu0 %156
    %158 = vadd.xlane.f32.xlu0 %v153
    %v159 = vpop.xlane.xlu0 %158
    %v160 = vrcp.pop 128.0
    %v161 = vmul.f32 %v157, %v160
    %v162 = vmul.f32 %v159, %v160
    %v163 = vmul.f32 %v152, %v152
    %v164 = vmul.f32 %v153, %v153
    %165 = vadd.xlane.f32.xlu0 %v163
    %v166 = vpop.xlane.xlu0 %165
    %167 = vadd.xlane.f32.xlu0 %v164
    %v168 = vpop.xlane.xlu0 %167
    %v169 = vmul.f32 %v166, %v160
    %v170 = vmul.f32 %v168, %v160
    %v171 = vmul.f32 %v161, %v161
    %v172 = vmul.f32 %v162, %v162
    %v173 = vsub.f32 %v169, %v171
    %v174 = vsub.f32 %v170, %v172
    %v175 = vsub.f32 %v152, %v161
    %v176 = vsub.f32 %v153, %v162
    %v177 = vadd.f32 %v173, 1e-05
    %v178 = vadd.f32 %v174, 1e-05
    %v179 = vrsqrt.pop %v177
    %v180 = vrsqrt.pop %v178
    %v181 = vmul.f32 %v175, %v179
    %v182 = vmul.f32 %v176, %v180
    %v184 = vlaneseq
    %v185 = vshrl.u32 %v184, 7
    %v186 = vsub.s32 0, %v185
    %v187 = vrot.slane %v154, %v186
    %v189 = vmul.f32 %v181, %v187
    %v190 = vmul.f32 %v182, %v187
    %v192 = vlaneseq
    %v193 = vshrl.u32 %v192, 7
    %v194 = vsub.s32 0, %v193
    %v195 = vrot.slane %v155, %v194
    %v197 = vadd.f32 %v189, %v195
    %v198 = vadd.f32 %v190, %v195
    %v199 = vld [vmem:[#allocation5] sm:$0xff]
    %v200 = vld [vmem:[#allocation5 + $0x8] sm:$0xff]
    %v201 = vld [vmem:[#allocation5 + $0x10] sm:$0xff]
    %v202 = vld [vmem:[#allocation5 + $0x18] sm:$0xff]
    %v203 = vld [vmem:[#allocation5 + $0x20] sm:$0xff]
    %v204 = vld [vmem:[#allocation5 + $0x28] sm:$0xff]
    %v205 = vld [vmem:[#allocation5 + $0x30] sm:$0xff]
    %v206 = vld [vmem:[#allocation5 + $0x38] sm:$0xff]
    %v207 = vld [vmem:[#allocation5 + $0x40] sm:$0xff]
    %v208 = vld [vmem:[#allocation5 + $0x48] sm:$0xff]
    %v209 = vld [vmem:[#allocation5 + $0x50] sm:$0xff]
    %v210 = vld [vmem:[#allocation5 + $0x58] sm:$0xff]
    %v211 = vld [vmem:[#allocation5 + $0x60] sm:$0xff]
    %v212 = vld [vmem:[#allocation5 + $0x68] sm:$0xff]
    %v213 = vld [vmem:[#allocation5 + $0x70] sm:$0xff]
    %v214 = vld [vmem:[#allocation5 + $0x78] sm:$0xff]
    %v215 = vld [vmem:[%s6] sm:$0x1]
    %v217 = vlaneseq
    %v218 = vshrl.u32 %v217, 7
    %v219 = vsub.s32 0, %v218
    %v220 = vrot.slane %v215, %v219
    %222 = vmatprep.subr.mxu0 0.0
    %223 = vmatpush1.msra.mxu0 %v214
    %224 = vmatprep.subr.mxu0 0.0
    %225 = vmatpush1.msra.mxu0 %v213
    %226 = vmatprep.subr.mxu0 0.0
    %227 = vmatpush1.msra.mxu0 %v212
    %228 = vmatprep.subr.mxu0 0.0
    %229 = vmatpush1.msra.mxu0 %v211
    %230 = vmatprep.subr.mxu0 0.0
    %231 = vmatpush1.msra.mxu0 %v210
    %232 = vmatprep.subr.mxu0 0.0
    %233 = vmatpush1.msra.mxu0 %v209
    %234 = vmatprep.subr.mxu0 0.0
    %235 = vmatpush1.msra.mxu0 %v208
    %236 = vmatprep.subr.mxu0 0.0
    %237 = vmatpush1.msra.mxu0 %v207
    %238 = vmatprep.subr.mxu0 0.0
    %239 = vmatpush1.msra.mxu0 %v206
    %240 = vmatprep.subr.mxu0 0.0
    %241 = vmatpush1.msra.mxu0 %v205
    %242 = vmatprep.subr.mxu0 0.0
    %243 = vmatpush1.msra.mxu0 %v204
    %244 = vmatprep.subr.mxu0 0.0
    %245 = vmatpush1.msra.mxu0 %v203
    %246 = vmatprep.subr.mxu0 0.0
    %247 = vmatpush1.msra.mxu0 %v202
    %248 = vmatprep.subr.mxu0 0.0
    %249 = vmatpush1.msra.mxu0 %v201
    %250 = vmatprep.subr.mxu0 0.0
    %251 = vmatpush1.msra.mxu0 %v200
    %252 = vmatprep.subr.mxu0 0.0
    %253 = vmatpush1.msra.mxu0 %v199
    %254 = vmatprep.subr.mxu0 0.0
    %255 = vmatpush2.msra.mxu0 0.0
    %256 = vmatprep.subr.mxu0 0.0
    %257 = vmatpush2.msra.mxu0 0.0
    %258 = vmatprep.subr.mxu0 0.0
    %259 = vmatpush2.msra.mxu0 0.0
    %260 = vmatprep.subr.mxu0 0.0
    %261 = vmatpush2.msra.mxu0 0.0
    %262 = vmatprep.subr.mxu0 0.0
    %263 = vmatpush2.msra.mxu0 0.0
    %264 = vmatprep.subr.mxu0 0.0
    %265 = vmatpush2.msra.mxu0 0.0
    %266 = vmatprep.subr.mxu0 0.0
    %267 = vmatpush2.msra.mxu0 0.0
    %268 = vmatprep.subr.mxu0 0.0
    %269 = vmatpush2.msra.mxu0 0.0
    %270 = vmatprep.subr.mxu0 0.0
    %271 = vmatpush2.msra.mxu0 0.0
    %272 = vmatprep.subr.mxu0 0.0
    %273 = vmatpush2.msra.mxu0 0.0
    %274 = vmatprep.subr.mxu0 0.0
    %275 = vmatpush2.msra.mxu0 0.0
    %276 = vmatprep.subr.mxu0 0.0
    %277 = vmatpush2.msra.mxu0 0.0
    %278 = vmatprep.subr.mxu0 0.0
    %279 = vmatpush2.msra.mxu0 0.0
    %280 = vmatprep.subr.mxu0 0.0
    %281 = vmatpush2.msra.mxu0 0.0
    %282 = vmatprep.subr.mxu0 0.0
    %283 = vmatpush2.msra.mxu0 0.0
    %284 = vmatprep.subr.mxu0 0.0
    %285 = vmatpush2.msra.mxu0 0.0
    %286 = vmatprep.mubr.f32.mxu0 0.0
    %287 = vmatmul.mubr.f32.gmra.mxu0 %v197
    %v288 = vpop.f32.mrf.mxu0
    %v289 = vadd.f32 %v220, %v288
    %v290 = vpop.f32.mrf.mxu0
    %291 = vmatprep.mubr.f32.mxu0 0.0
    %292 = vmatmul.mubr.f32.gmra.mxu0 %v198
    %v293 = vpop.f32.mrf.mxu0
    %v294 = vadd.f32 %v220, %v293
    %v295 = vpop.f32.mrf.mxu0
    %296 = vdwg.mxu0
    %v297 = vld [vmem:[#allocation7] sm:$0xff]
    %v298 = vld [vmem:[#allocation7 + $0x8] sm:$0xff]
    %v299 = vld [vmem:[#allocation7 + $0x10] sm:$0xff]
    %v300 = vld [vmem:[#allocation7 + $0x18] sm:$0xff]
    %v301 = vld [vmem:[#allocation7 + $0x20] sm:$0xff]
    %v302 = vld [vmem:[#allocation7 + $0x28] sm:$0xff]
    %v303 = vld [vmem:[#allocation7 + $0x30] sm:$0xff]
    %v304 = vld [vmem:[#allocation7 + $0x38] sm:$0xff]
    %v305 = vld [vmem:[#allocation7 + $0x40] sm:$0xff]
    %v306 = vld [vmem:[#allocation7 + $0x48] sm:$0xff]
    %v307 = vld [vmem:[#allocation7 + $0x50] sm:$0xff]
    %v308 = vld [vmem:[#allocation7 + $0x58] sm:$0xff]
    %v309 = vld [vmem:[#allocation7 + $0x60] sm:$0xff]
    %v310 = vld [vmem:[#allocation7 + $0x68] sm:$0xff]
    %v311 = vld [vmem:[#allocation7 + $0x70] sm:$0xff]
    %v312 = vld [vmem:[#allocation7 + $0x78] sm:$0xff]
    %v313 = vld [vmem:[%s7] sm:$0x1]
    %v315 = vlaneseq
    %v316 = vshrl.u32 %v315, 7
    %v317 = vsub.s32 0, %v316
    %v318 = vrot.slane %v313, %v317
    %320 = vmatprep.subr.mxu0 0.0
    %321 = vmatpush1.msra.mxu0 %v312
    %322 = vmatprep.subr.mxu0 0.0
    %323 = vmatpush1.msra.mxu0 %v311
    %324 = vmatprep.subr.mxu0 0.0
    %325 = vmatpush1.msra.mxu0 %v310
    %326 = vmatprep.subr.mxu0 0.0
    %327 = vmatpush1.msra.mxu0 %v309
    %328 = vmatprep.subr.mxu0 0.0
    %329 = vmatpush1.msra.mxu0 %v308
    %330 = vmatprep.subr.mxu0 0.0
    %331 = vmatpush1.msra.mxu0 %v307
    %332 = vmatprep.subr.mxu0 0.0
    %333 = vmatpush1.msra.mxu0 %v306
    %334 = vmatprep.subr.mxu0 0.0
    %335 = vmatpush1.msra.mxu0 %v305
    %336 = vmatprep.subr.mxu0 0.0
    %337 = vmatpush1.msra.mxu0 %v304
    %338 = vmatprep.subr.mxu0 0.0
    %339 = vmatpush1.msra.mxu0 %v303
    %340 = vmatprep.subr.mxu0 0.0
    %341 = vmatpush1.msra.mxu0 %v302
    %342 = vmatprep.subr.mxu0 0.0
    %343 = vmatpush1.msra.mxu0 %v301
    %344 = vmatprep.subr.mxu0 0.0
    %345 = vmatpush1.msra.mxu0 %v300
    %346 = vmatprep.subr.mxu0 0.0
    %347 = vmatpush1.msra.mxu0 %v299
    %348 = vmatprep.subr.mxu0 0.0
    %349 = vmatpush1.msra.mxu0 %v298
    %350 = vmatprep.subr.mxu0 0.0
    %351 = vmatpush1.msra.mxu0 %v297
    %352 = vmatprep.subr.mxu0 0.0
    %353 = vmatpush2.msra.mxu0 0.0
    %354 = vmatprep.subr.mxu0 0.0
    %355 = vmatpush2.msra.mxu0 0.0
    %356 = vmatprep.subr.mxu0 0.0
    %357 = vmatpush2.msra.mxu0 0.0
    %358 = vmatprep.subr.mxu0 0.0
    %359 = vmatpush2.msra.mxu0 0.0
    %360 = vmatprep.subr.mxu0 0.0
    %361 = vmatpush2.msra.mxu0 0.0
    %362 = vmatprep.subr.mxu0 0.0
    %363 = vmatpush2.msra.mxu0 0.0
    %364 = vmatprep.subr.mxu0 0.0
    %365 = vmatpush2.msra.mxu0 0.0
    %366 = vmatprep.subr.mxu0 0.0
    %367 = vmatpush2.msra.mxu0 0.0
    %368 = vmatprep.subr.mxu0 0.0
    %369 = vmatpush2.msra.mxu0 0.0
    %370 = vmatprep.subr.mxu0 0.0
    %371 = vmatpush2.msra.mxu0 0.0
    %372 = vmatprep.subr.mxu0 0.0
    %373 = vmatpush2.msra.mxu0 0.0
    %374 = vmatprep.subr.mxu0 0.0
    %375 = vmatpush2.msra.mxu0 0.0
    %376 = vmatprep.subr.mxu0 0.0
    %377 = vmatpush2.msra.mxu0 0.0
    %378 = vmatprep.subr.mxu0 0.0
    %379 = vmatpush2.msra.mxu0 0.0
    %380 = vmatprep.subr.mxu0 0.0
    %381 = vmatpush2.msra.mxu0 0.0
    %382 = vmatprep.subr.mxu0 0.0
    %383 = vmatpush2.msra.mxu0 0.0
    %384 = vmatprep.mubr.f32.mxu0 0.0
    %385 = vmatmul.mubr.f32.gmra.mxu0 %v197
    %v386 = vpop.f32.mrf.mxu0
    %v387 = vadd.f32 %v318, %v386
    %v388 = vpop.f32.mrf.mxu0
    %389 = vmatprep.mubr.f32.mxu0 0.0
    %390 = vmatmul.mubr.f32.gmra.mxu0 %v198
    %v391 = vpop.f32.mrf.mxu0
    %v392 = vadd.f32 %v318, %v391
    %v393 = vpop.f32.mrf.mxu0
    %394 = vdwg.mxu0
    %v395 = vld [vmem:[#allocation8] sm:$0xff]
    %v396 = vld [vmem:[#allocation8 + $0x8] sm:$0xff]
    %v397 = vld [vmem:[#allocation8 + $0x10] sm:$0xff]
    %v398 = vld [vmem:[#allocation8 + $0x18] sm:$0xff]
    %v399 = vld [vmem:[#allocation8 + $0x20] sm:$0xff]
    %v400 = vld [vmem:[#allocation8 + $0x28] sm:$0xff]
    %v401 = vld [vmem:[#allocation8 + $0x30] sm:$0xff]
    %v402 = vld [vmem:[#allocation8 + $0x38] sm:$0xff]
    %v403 = vld [vmem:[#allocation8 + $0x40] sm:$0xff]
    %v404 = vld [vmem:[#allocation8 + $0x48] sm:$0xff]
    %v405 = vld [vmem:[#allocation8 + $0x50] sm:$0xff]
    %v406 = vld [vmem:[#allocation8 + $0x58] sm:$0xff]
    %v407 = vld [vmem:[#allocation8 + $0x60] sm:$0xff]
    %v408 = vld [vmem:[#allocation8 + $0x68] sm:$0xff]
    %v409 = vld [vmem:[#allocation8 + $0x70] sm:$0xff]
    %v410 = vld [vmem:[#allocation8 + $0x78] sm:$0xff]
    %v411 = vld [vmem:[%s8] sm:$0x1]
    %v413 = vlaneseq
    %v414 = vshrl.u32 %v413, 7
    %v415 = vsub.s32 0, %v414
    %v416 = vrot.slane %v411, %v415
    %418 = vmatprep.subr.mxu0 0.0
    %419 = vmatpush1.msra.mxu0 %v410
    %420 = vmatprep.subr.mxu0 0.0
    %421 = vmatpush1.msra.mxu0 %v409
    %422 = vmatprep.subr.mxu0 0.0
    %423 = vmatpush1.msra.mxu0 %v408
    %424 = vmatprep.subr.mxu0 0.0
    %425 = vmatpush1.msra.mxu0 %v407
    %426 = vmatprep.subr.mxu0 0.0
    %427 = vmatpush1.msra.mxu0 %v406
    %428 = vmatprep.subr.mxu0 0.0
    %429 = vmatpush1.msra.mxu0 %v405
    %430 = vmatprep.subr.mxu0 0.0
    %431 = vmatpush1.msra.mxu0 %v404
    %432 = vmatprep.subr.mxu0 0.0
    %433 = vmatpush1.msra.mxu0 %v403
    %434 = vmatprep.subr.mxu0 0.0
    %435 = vmatpush1.msra.mxu0 %v402
    %436 = vmatprep.subr.mxu0 0.0
    %437 = vmatpush1.msra.mxu0 %v401
    %438 = vmatprep.subr.mxu0 0.0
    %439 = vmatpush1.msra.mxu0 %v400
    %440 = vmatprep.subr.mxu0 0.0
    %441 = vmatpush1.msra.mxu0 %v399
    %442 = vmatprep.subr.mxu0 0.0
    %443 = vmatpush1.msra.mxu0 %v398
    %444 = vmatprep.subr.mxu0 0.0
    %445 = vmatpush1.msra.mxu0 %v397
    %446 = vmatprep.subr.mxu0 0.0
    %447 = vmatpush1.msra.mxu0 %v396
    %448 = vmatprep.subr.mxu0 0.0
    %449 = vmatpush1.msra.mxu0 %v395
    %450 = vmatprep.subr.mxu0 0.0
    %451 = vmatpush2.msra.mxu0 0.0
    %452 = vmatprep.subr.mxu0 0.0
    %453 = vmatpush2.msra.mxu0 0.0
    %454 = vmatprep.subr.mxu0 0.0
    %455 = vmatpush2.msra.mxu0 0.0
    %456 = vmatprep.subr.mxu0 0.0
    %457 = vmatpush2.msra.mxu0 0.0
    %458 = vmatprep.subr.mxu0 0.0
    %459 = vmatpush2.msra.mxu0 0.0
    %460 = vmatprep.subr.mxu0 0.0
    %461 = vmatpush2.msra.mxu0 0.0
    %462 = vmatprep.subr.mxu0 0.0
    %463 = vmatpush2.msra.mxu0 0.0
    %464 = vmatprep.subr.mxu0 0.0
    %465 = vmatpush2.msra.mxu0 0.0
    %466 = vmatprep.subr.mxu0 0.0
    %467 = vmatpush2.msra.mxu0 0.0
    %468 = vmatprep.subr.mxu0 0.0
    %469 = vmatpush2.msra.mxu0 0.0
    %470 = vmatprep.subr.mxu0 0.0
    %471 = vmatpush2.msra.mxu0 0.0
    %472 = vmatprep.subr.mxu0 0.0
    %473 = vmatpush2.msra.mxu0 0.0
    %474 = vmatprep.subr.mxu0 0.0
    %475 = vmatpush2.msra.mxu0 0.0
    %476 = vmatprep.subr.mxu0 0.0
    %477 = vmatpush2.msra.mxu0 0.0
    %478 = vmatprep.subr.mxu0 0.0
    %479 = vmatpush2.msra.mxu0 0.0
    %480 = vmatprep.subr.mxu0 0.0
    %481 = vmatpush2.msra.mxu0 0.0
    %482 = vmatprep.mubr.f32.mxu0 0.0
    %483 = vmatmul.mubr.f32.gmra.mxu0 %v197
    %v484 = vpop.f32.mrf.mxu0
    %v485 = vadd.f32 %v416, %v484
    %v486 = vpop.f32.mrf.mxu0
    %487 = vmatprep.mubr.f32.mxu0 0.0
    %488 = vmatmul.mubr.f32.gmra.mxu0 %v198
    %v489 = vpop.f32.mrf.mxu0
    %v490 = vadd.f32 %v416, %v489
    %v491 = vpop.f32.mrf.mxu0
    %492 = vdwg.mxu0
    %vm493 = vcmask 261120
    %v495 = vsel %vm493, %v289, 0
    %v498 = vsel %vm493, %v387, 0
    %500 = vmatprep.subr.mxu0 0.0
    %501 = vmatpush1.xpose.msra.mxu0 0.0
    %502 = vmatprep.subr.mxu0 0.0
    %503 = vmatpush1.xpose.msra.mxu0 0.0
    %504 = vmatprep.subr.mxu0 0.0
    %505 = vmatpush1.xpose.msra.mxu0 0.0
    %506 = vmatprep.subr.mxu0 0.0
    %507 = vmatpush1.xpose.msra.mxu0 0.0
    %508 = vmatprep.subr.mxu0 0.0
    %509 = vmatpush1.xpose.msra.mxu0 0.0
    %510 = vmatprep.subr.mxu0 0.0
    %511 = vmatpush1.xpose.msra.mxu0 0.0
    %512 = vmatprep.subr.mxu0 0.0
    %513 = vmatpush1.xpose.msra.mxu0 0.0
    %514 = vmatprep.subr.mxu0 0.0
    %515 = vmatpush1.xpose.msra.mxu0 0.0
    %516 = vmatprep.subr.mxu0 0.0
    %517 = vmatpush1.xpose.msra.mxu0 0.0
    %518 = vmatprep.subr.mxu0 0.0
    %519 = vmatpush1.xpose.msra.mxu0 0.0
    %520 = vmatprep.subr.mxu0 0.0
    %521 = vmatpush1.xpose.msra.mxu0 0.0
    %522 = vmatprep.subr.mxu0 0.0
    %523 = vmatpush1.xpose.msra.mxu0 0.0
    %524 = vmatprep.subr.mxu0 0.0
    %525 = vmatpush1.xpose.msra.mxu0 0.0
    %526 = vmatprep.subr.mxu0 0.0
    %527 = vmatpush1.xpose.msra.mxu0 0.0
    %528 = vmatprep.subr.mxu0 0.0
    %529 = vmatpush1.xpose.msra.mxu0 0.0
    %530 = vmatprep.subr.mxu0 0.0
    %531 = vmatpush1.xpose.msra.mxu0 %v498
    %532 = vmatprep.subr.mxu0 0.0
    %533 = vmatpush2.xpose.msra.mxu0 0.0
    %534 = vmatprep.subr.mxu0 0.0
    %535 = vmatpush2.xpose.msra.mxu0 0.0
    %536 = vmatprep.subr.mxu0 0.0
    %537 = vmatpush2.xpose.msra.mxu0 0.0
    %538 = vmatprep.subr.mxu0 0.0
    %539 = vmatpush2.xpose.msra.mxu0 0.0
    %540 = vmatprep.subr.mxu0 0.0
    %541 = vmatpush2.xpose.msra.mxu0 0.0
    %542 = vmatprep.subr.mxu0 0.0
    %543 = vmatpush2.xpose.msra.mxu0 0.0
    %544 = vmatprep.subr.mxu0 0.0
    %545 = vmatpush2.xpose.msra.mxu0 0.0
    %546 = vmatprep.subr.mxu0 0.0
    %547 = vmatpush2.xpose.msra.mxu0 0.0
    %548 = vmatprep.subr.mxu0 0.0
    %549 = vmatpush2.xpose.msra.mxu0 0.0
    %550 = vmatprep.subr.mxu0 0.0
    %551 = vmatpush2.xpose.msra.mxu0 0.0
    %552 = vmatprep.subr.mxu0 0.0
    %553 = vmatpush2.xpose.msra.mxu0 0.0
    %554 = vmatprep.subr.mxu0 0.0
    %555 = vmatpush2.xpose.msra.mxu0 0.0
    %556 = vmatprep.subr.mxu0 0.0
    %557 = vmatpush2.xpose.msra.mxu0 0.0
    %558 = vmatprep.subr.mxu0 0.0
    %559 = vmatpush2.xpose.msra.mxu0 0.0
    %560 = vmatprep.subr.mxu0 0.0
    %561 = vmatpush2.xpose.msra.mxu0 0.0
    %562 = vmatprep.subr.mxu0 0.0
    %563 = vmatpush2.xpose.msra.mxu0 0.0
    %564 = vmatprep.mubr.f32.mxu0 0.0
    %565 = vmatmul.mubr.f32.gmra.mxu0 %v495
    %v566 = vpop.f32.mrf.mxu0
    %v567 = vadd.f32 0.0, %v566
    %v568 = vpop.f32.mrf.mxu0
    %569 = vdwg.mxu0
    %v571 = vsel %vm493, %v294, 0
    %v574 = vsel %vm493, %v392, 0
    %576 = vmatprep.subr.mxu0 0.0
    %577 = vmatpush1.xpose.msra.mxu0 0.0
    %578 = vmatprep.subr.mxu0 0.0
    %579 = vmatpush1.xpose.msra.mxu0 0.0
    %580 = vmatprep.subr.mxu0 0.0
    %581 = vmatpush1.xpose.msra.mxu0 0.0
    %582 = vmatprep.subr.mxu0 0.0
    %583 = vmatpush1.xpose.msra.mxu0 0.0
    %584 = vmatprep.subr.mxu0 0.0
    %585 = vmatpush1.xpose.msra.mxu0 0.0
    %586 = vmatprep.subr.mxu0 0.0
    %587 = vmatpush1.xpose.msra.mxu0 0.0
    %588 = vmatprep.subr.mxu0 0.0
    %589 = vmatpush1.xpose.msra.mxu0 0.0
    %590 = vmatprep.subr.mxu0 0.0
    %591 = vmatpush1.xpose.msra.mxu0 0.0
    %592 = vmatprep.subr.mxu0 0.0
    %593 = vmatpush1.xpose.msra.mxu0 0.0
    %594 = vmatprep.subr.mxu0 0.0
    %595 = vmatpush1.xpose.msra.mxu0 0.0
    %596 = vmatprep.subr.mxu0 0.0
    %597 = vmatpush1.xpose.msra.mxu0 0.0
    %598 = vmatprep.subr.mxu0 0.0
    %599 = vmatpush1.xpose.msra.mxu0 0.0
    %600 = vmatprep.subr.mxu0 0.0
    %601 = vmatpush1.xpose.msra.mxu0 0.0
    %602 = vmatprep.subr.mxu0 0.0
    %603 = vmatpush1.xpose.msra.mxu0 0.0
    %604 = vmatprep.subr.mxu0 0.0
    %605 = vmatpush1.xpose.msra.mxu0 0.0
    %606 = vmatprep.subr.mxu0 0.0
    %607 = vmatpush1.xpose.msra.mxu0 %v574
    %608 = vmatprep.subr.mxu0 0.0
    %609 = vmatpush2.xpose.msra.mxu0 0.0
    %610 = vmatprep.subr.mxu0 0.0
    %611 = vmatpush2.xpose.msra.mxu0 0.0
    %612 = vmatprep.subr.mxu0 0.0
    %613 = vmatpush2.xpose.msra.mxu0 0.0
    %614 = vmatprep.subr.mxu0 0.0
    %615 = vmatpush2.xpose.msra.mxu0 0.0
    %616 = vmatprep.subr.mxu0 0.0
    %617 = vmatpush2.xpose.msra.mxu0 0.0
    %618 = vmatprep.subr.mxu0 0.0
    %619 = vmatpush2.xpose.msra.mxu0 0.0
    %620 = vmatprep.subr.mxu0 0.0
    %621 = vmatpush2.xpose.msra.mxu0 0.0
    %622 = vmatprep.subr.mxu0 0.0
    %623 = vmatpush2.xpose.msra.mxu0 0.0
    %624 = vmatprep.subr.mxu0 0.0
    %625 = vmatpush2.xpose.msra.mxu0 0.0
    %626 = vmatprep.subr.mxu0 0.0
    %627 = vmatpush2.xpose.msra.mxu0 0.0
    %628 = vmatprep.subr.mxu0 0.0
    %629 = vmatpush2.xpose.msra.mxu0 0.0
    %630 = vmatprep.subr.mxu0 0.0
    %631 = vmatpush2.xpose.msra.mxu0 0.0
    %632 = vmatprep.subr.mxu0 0.0
    %633 = vmatpush2.xpose.msra.mxu0 0.0
    %634 = vmatprep.subr.mxu0 0.0
    %635 = vmatpush2.xpose.msra.mxu0 0.0
    %636 = vmatprep.subr.mxu0 0.0
    %637 = vmatpush2.xpose.msra.mxu0 0.0
    %638 = vmatprep.subr.mxu0 0.0
    %639 = vmatpush2.xpose.msra.mxu0 0.0
    %640 = vmatprep.mubr.f32.mxu0 0.0
    %641 = vmatmul.mubr.f32.gmra.mxu0 %v571
    %v642 = vpop.f32.mrf.mxu0
    %v643 = vadd.f32 0.0, %v642
    %v644 = vpop.f32.mrf.mxu0
    %645 = vdwg.mxu0
    %vm646 = vcmask 64512
    %v647 = vsel %vm646, %v567, -inf
    %648 = vmax.xlane.f32.xlu0 %v647
    %v649 = vpop.xlane.xlu0 %648
    %v650 = vsel %vm646, %v643, -inf
    %651 = vmax.xlane.f32.xlu0 %v650
    %v652 = vpop.xlane.xlu0 %651
    %v653 = vsub.f32 %v567, %v649
    %v654 = vsub.f32 %v643, %v652
    %v655 = vmul.f32 %v653, 1.442695
    %v656 = vpow.pop %v655
    %v657 = vmul.f32 %v654, 1.442695
    %v658 = vpow.pop %v657
    %v659 = vsel %vm646, %v656, 0.0
    %660 = vadd.xlane.f32.xlu0 %v659
    %v661 = vpop.xlane.xlu0 %660
    %v662 = vsel %vm646, %v658, 0.0
    %663 = vadd.xlane.f32.xlu0 %v662
    %v664 = vpop.xlane.xlu0 %663
    %v665 = vrcp.pop %v661
    %v666 = vrcp.pop %v664
    %v667 = vmul.f32 %v656, %v665
    %v668 = vmul.f32 %v658, %v666
    %v670 = vsel %vm646, %v667, 0
    %672 = vmatprep.subr.mxu0 0.0
    %673 = vmatpush1.msra.mxu0 0.0
    %674 = vmatprep.subr.mxu0 0.0
    %675 = vmatpush1.msra.mxu0 0.0
    %676 = vmatprep.subr.mxu0 0.0
    %677 = vmatpush1.msra.mxu0 0.0
    %678 = vmatprep.subr.mxu0 0.0
    %679 = vmatpush1.msra.mxu0 0.0
    %680 = vmatprep.subr.mxu0 0.0
    %681 = vmatpush1.msra.mxu0 0.0
    %682 = vmatprep.subr.mxu0 0.0
    %683 = vmatpush1.msra.mxu0 0.0
    %684 = vmatprep.subr.mxu0 0.0
    %685 = vmatpush1.msra.mxu0 0.0
    %686 = vmatprep.subr.mxu0 0.0
    %687 = vmatpush1.msra.mxu0 0.0
    %688 = vmatprep.subr.mxu0 0.0
    %689 = vmatpush1.msra.mxu0 0.0
    %690 = vmatprep.subr.mxu0 0.0
    %691 = vmatpush1.msra.mxu0 0.0
    %692 = vmatprep.subr.mxu0 0.0
    %693 = vmatpush1.msra.mxu0 0.0
    %694 = vmatprep.subr.mxu0 0.0
    %695 = vmatpush1.msra.mxu0 0.0
    %696 = vmatprep.subr.mxu0 0.0
    %697 = vmatpush1.msra.mxu0 0.0
    %698 = vmatprep.subr.mxu0 0.0
    %699 = vmatpush1.msra.mxu0 0.0
    %700 = vmatprep.subr.mxu0 0.0
    %701 = vmatpush1.msra.mxu0 0.0
    %702 = vmatprep.subr.mxu0 0.0
    %703 = vmatpush1.msra.mxu0 %v485
    %704 = vmatprep.subr.mxu0 0.0
    %705 = vmatpush2.msra.mxu0 0.0
    %706 = vmatprep.subr.mxu0 0.0
    %707 = vmatpush2.msra.mxu0 0.0
    %708 = vmatprep.subr.mxu0 0.0
    %709 = vmatpush2.msra.mxu0 0.0
    %710 = vmatprep.subr.mxu0 0.0
    %711 = vmatpush2.msra.mxu0 0.0
    %712 = vmatprep.subr.mxu0 0.0
    %713 = vmatpush2.msra.mxu0 0.0
    %714 = vmatprep.subr.mxu0 0.0
    %715 = vmatpush2.msra.mxu0 0.0
    %716 = vmatprep.subr.mxu0 0.0
    %717 = vmatpush2.msra.mxu0 0.0
    %718 = vmatprep.subr.mxu0 0.0
    %719 = vmatpush2.msra.mxu0 0.0
    %720 = vmatprep.subr.mxu0 0.0
    %721 = vmatpush2.msra.mxu0 0.0
    %722 = vmatprep.subr.mxu0 0.0
    %723 = vmatpush2.msra.mxu0 0.0
    %724 = vmatprep.subr.mxu0 0.0
    %725 = vmatpush2.msra.mxu0 0.0
    %726 = vmatprep.subr.mxu0 0.0
    %727 = vmatpush2.msra.mxu0 0.0
    %728 = vmatprep.subr.mxu0 0.0
    %729 = vmatpush2.msra.mxu0 0.0
    %730 = vmatprep.subr.mxu0 0.0
    %731 = vmatpush2.msra.mxu0 0.0
    %732 = vmatprep.subr.mxu0 0.0
    %733 = vmatpush2.msra.mxu0 0.0
    %734 = vmatprep.subr.mxu0 0.0
    %735 = vmatpush2.msra.mxu0 0.0
    %736 = vmatprep.mubr.f32.mxu0 0.0
    %737 = vmatmul.mubr.f32.gmra.mxu0 %v670
    %v738 = vpop.f32.mrf.mxu0
    %v739 = vadd.f32 0.0, %v738
    %v740 = vpop.f32.mrf.mxu0
    %741 = vdwg.mxu0
    %v743 = vsel %vm646, %v668, 0
    %745 = vmatprep.subr.mxu0 0.0
    %746 = vmatpush1.msra.mxu0 0.0
    %747 = vmatprep.subr.mxu0 0.0
    %748 = vmatpush1.msra.mxu0 0.0
    %749 = vmatprep.subr.mxu0 0.0
    %750 = vmatpush1.msra.mxu0 0.0
    %751 = vmatprep.subr.mxu0 0.0
    %752 = vmatpush1.msra.mxu0 0.0
    %753 = vmatprep.subr.mxu0 0.0
    %754 = vmatpush1.msra.mxu0 0.0
    %755 = vmatprep.subr.mxu0 0.0
    %756 = vmatpush1.msra.mxu0 0.0
    %757 = vmatprep.subr.mxu0 0.0
    %758 = vmatpush1.msra.mxu0 0.0
    %759 = vmatprep.subr.mxu0 0.0
    %760 = vmatpush1.msra.mxu0 0.0
    %761 = vmatprep.subr.mxu0 0.0
    %762 = vmatpush1.msra.mxu0 0.0
    %763 = vmatprep.subr.mxu0 0.0
    %764 = vmatpush1.msra.mxu0 0.0
    %765 = vmatprep.subr.mxu0 0.0
    %766 = vmatpush1.msra.mxu0 0.0
    %767 = vmatprep.subr.mxu0 0.0
    %768 = vmatpush1.msra.mxu0 0.0
    %769 = vmatprep.subr.mxu0 0.0
    %770 = vmatpush1.msra.mxu0 0.0
    %771 = vmatprep.subr.mxu0 0.0
    %772 = vmatpush1.msra.mxu0 0.0
    %773 = vmatprep.subr.mxu0 0.0
    %774 = vmatpush1.msra.mxu0 0.0
    %775 = vmatprep.subr.mxu0 0.0
    %776 = vmatpush1.msra.mxu0 %v490
    %777 = vmatprep.subr.mxu0 0.0
    %778 = vmatpush2.msra.mxu0 0.0
    %779 = vmatprep.subr.mxu0 0.0
    %780 = vmatpush2.msra.mxu0 0.0
    %781 = vmatprep.subr.mxu0 0.0
    %782 = vmatpush2.msra.mxu0 0.0
    %783 = vmatprep.subr.mxu0 0.0
    %784 = vmatpush2.msra.mxu0 0.0
    %785 = vmatprep.subr.mxu0 0.0
    %786 = vmatpush2.msra.mxu0 0.0
    %787 = vmatprep.subr.mxu0 0.0
    %788 = vmatpush2.msra.mxu0 0.0
    %789 = vmatprep.subr.mxu0 0.0
    %790 = vmatpush2.msra.mxu0 0.0
    %791 = vmatprep.subr.mxu0 0.0
    %792 = vmatpush2.msra.mxu0 0.0
    %793 = vmatprep.subr.mxu0 0.0
    %794 = vmatpush2.msra.mxu0 0.0
    %795 = vmatprep.subr.mxu0 0.0
    %796 = vmatpush2.msra.mxu0 0.0
    %797 = vmatprep.subr.mxu0 0.0
    %798 = vmatpush2.msra.mxu0 0.0
    %799 = vmatprep.subr.mxu0 0.0
    %800 = vmatpush2.msra.mxu0 0.0
    %801 = vmatprep.subr.mxu0 0.0
    %802 = vmatpush2.msra.mxu0 0.0
    %803 = vmatprep.subr.mxu0 0.0
    %804 = vmatpush2.msra.mxu0 0.0
    %805 = vmatprep.subr.mxu0 0.0
    %806 = vmatpush2.msra.mxu0 0.0
    %807 = vmatprep.subr.mxu0 0.0
    %808 = vmatpush2.msra.mxu0 0.0
    %809 = vmatprep.mubr.f32.mxu0 0.0
    %810 = vmatmul.mubr.f32.gmra.mxu0 %v743
    %v811 = vpop.f32.mrf.mxu0
    %v812 = vadd.f32 0.0, %v811
    %v813 = vpop.f32.mrf.mxu0
    %814 = vdwg.mxu0
    %v815 = vld [vmem:[#allocation10] sm:$0xff]
    %v816 = vld [vmem:[#allocation10 + $0x8] sm:$0xff]
    %v817 = vld [vmem:[#allocation10 + $0x10] sm:$0xff]
    %v818 = vld [vmem:[#allocation10 + $0x18] sm:$0xff]
    %819 = vrot.lane.b32.xlu0 %v289, 96
    %v820 = vpop.permute.xlu0 %819
    %821 = vrot.lane.b32.xlu0 %v387, 96
    %v822 = vpop.permute.xlu0 %821
    %v823 = vsel %vm493, %v820, 0
    %v825 = vsel %vm493, %v822, 0
    %827 = vmatprep.subr.mxu0 0.0
    %828 = vmatpush1.xpose.msra.mxu0 0.0
    %829 = vmatprep.subr.mxu0 0.0
    %830 = vmatpush1.xpose.msra.mxu0 0.0
    %831 = vmatprep.subr.mxu0 0.0
    %832 = vmatpush1.xpose.msra.mxu0 0.0
    %833 = vmatprep.subr.mxu0 0.0
    %834 = vmatpush1.xpose.msra.mxu0 0.0
    %835 = vmatprep.subr.mxu0 0.0
    %836 = vmatpush1.xpose.msra.mxu0 0.0
    %837 = vmatprep.subr.mxu0 0.0
    %838 = vmatpush1.xpose.msra.mxu0 0.0
    %839 = vmatprep.subr.mxu0 0.0
    %840 = vmatpush1.xpose.msra.mxu0 0.0
    %841 = vmatprep.subr.mxu0 0.0
    %842 = vmatpush1.xpose.msra.mxu0 0.0
    %843 = vmatprep.subr.mxu0 0.0
    %844 = vmatpush1.xpose.msra.mxu0 0.0
    %845 = vmatprep.subr.mxu0 0.0
    %846 = vmatpush1.xpose.msra.mxu0 0.0
    %847 = vmatprep.subr.mxu0 0.0
    %848 = vmatpush1.xpose.msra.mxu0 0.0
    %849 = vmatprep.subr.mxu0 0.0
    %850 = vmatpush1.xpose.msra.mxu0 0.0
    %851 = vmatprep.subr.mxu0 0.0
    %852 = vmatpush1.xpose.msra.mxu0 0.0
    %853 = vmatprep.subr.mxu0 0.0
    %854 = vmatpush1.xpose.msra.mxu0 0.0
    %855 = vmatprep.subr.mxu0 0.0
    %856 = vmatpush1.xpose.msra.mxu0 0.0
    %857 = vmatprep.subr.mxu0 0.0
    %858 = vmatpush1.xpose.msra.mxu0 %v825
    %859 = vmatprep.subr.mxu0 0.0
    %860 = vmatpush2.xpose.msra.mxu0 0.0
    %861 = vmatprep.subr.mxu0 0.0
    %862 = vmatpush2.xpose.msra.mxu0 0.0
    %863 = vmatprep.subr.mxu0 0.0
    %864 = vmatpush2.xpose.msra.mxu0 0.0
    %865 = vmatprep.subr.mxu0 0.0
    %866 = vmatpush2.xpose.msra.mxu0 0.0
    %867 = vmatprep.subr.mxu0 0.0
    %868 = vmatpush2.xpose.msra.mxu0 0.0
    %869 = vmatprep.subr.mxu0 0.0
    %870 = vmatpush2.xpose.msra.mxu0 0.0
    %871 = vmatprep.subr.mxu0 0.0
    %872 = vmatpush2.xpose.msra.mxu0 0.0
    %873 = vmatprep.subr.mxu0 0.0
    %874 = vmatpush2.xpose.msra.mxu0 0.0
    %875 = vmatprep.subr.mxu0 0.0
    %876 = vmatpush2.xpose.msra.mxu0 0.0
    %877 = vmatprep.subr.mxu0 0.0
    %878 = vmatpush2.xpose.msra.mxu0 0.0
    %879 = vmatprep.subr.mxu0 0.0
    %880 = vmatpush2.xpose.msra.mxu0 0.0
    %881 = vmatprep.subr.mxu0 0.0
    %882 = vmatpush2.xpose.msra.mxu0 0.0
    %883 = vmatprep.subr.mxu0 0.0
    %884 = vmatpush2.xpose.msra.mxu0 0.0
    %885 = vmatprep.subr.mxu0 0.0
    %886 = vmatpush2.xpose.msra.mxu0 0.0
    %887 = vmatprep.subr.mxu0 0.0
    %888 = vmatpush2.xpose.msra.mxu0 0.0
    %889 = vmatprep.subr.mxu0 0.0
    %890 = vmatpush2.xpose.msra.mxu0 0.0
    %891 = vmatprep.mubr.f32.mxu0 0.0
    %892 = vmatmul.mubr.f32.gmra.mxu0 %v823
    %v893 = vpop.f32.mrf.mxu0
    %v894 = vadd.f32 0.0, %v893
    %v895 = vpop.f32.mrf.mxu0
    %896 = vdwg.mxu0
    %897 = vrot.lane.b32.xlu0 %v294, 96
    %v898 = vpop.permute.xlu0 %897
    %899 = vrot.lane.b32.xlu0 %v392, 96
    %v900 = vpop.permute.xlu0 %899
    %v901 = vsel %vm493, %v898, 0
    %v903 = vsel %vm493, %v900, 0
    %905 = vmatprep.subr.mxu0 0.0
    %906 = vmatpush1.xpose.msra.mxu0 0.0
    %907 = vmatprep.subr.mxu0 0.0
    %908 = vmatpush1.xpose.msra.mxu0 0.0
    %909 = vmatprep.subr.mxu0 0.0
    %910 = vmatpush1.xpose.msra.mxu0 0.0
    %911 = vmatprep.subr.mxu0 0.0
    %912 = vmatpush1.xpose.msra.mxu0 0.0
    %913 = vmatprep.subr.mxu0 0.0
    %914 = vmatpush1.xpose.msra.mxu0 0.0
    %915 = vmatprep.subr.mxu0 0.0
    %916 = vmatpush1.xpose.msra.mxu0 0.0
    %917 = vmatprep.subr.mxu0 0.0
    %918 = vmatpush1.xpose.msra.mxu0 0.0
    %919 = vmatprep.subr.mxu0 0.0
    %920 = vmatpush1.xpose.msra.mxu0 0.0
    %921 = vmatprep.subr.mxu0 0.0
    %922 = vmatpush1.xpose.msra.mxu0 0.0
    %923 = vmatprep.subr.mxu0 0.0
    %924 = vmatpush1.xpose.msra.mxu0 0.0
    %925 = vmatprep.subr.mxu0 0.0
    %926 = vmatpush1.xpose.msra.mxu0 0.0
    %927 = vmatprep.subr.mxu0 0.0
    %928 = vmatpush1.xpose.msra.mxu0 0.0
    %929 = vmatprep.subr.mxu0 0.0
    %930 = vmatpush1.xpose.msra.mxu0 0.0
    %931 = vmatprep.subr.mxu0 0.0
    %932 = vmatpush1.xpose.msra.mxu0 0.0
    %933 = vmatprep.subr.mxu0 0.0
    %934 = vmatpush1.xpose.msra.mxu0 0.0
    %935 = vmatprep.subr.mxu0 0.0
    %936 = vmatpush1.xpose.msra.mxu0 %v903
    %937 = vmatprep.subr.mxu0 0.0
    %938 = vmatpush2.xpose.msra.mxu0 0.0
    %939 = vmatprep.subr.mxu0 0.0
    %940 = vmatpush2.xpose.msra.mxu0 0.0
    %941 = vmatprep.subr.mxu0 0.0
    %942 = vmatpush2.xpose.msra.mxu0 0.0
    %943 = vmatprep.subr.mxu0 0.0
    %944 = vmatpush2.xpose.msra.mxu0 0.0
    %945 = vmatprep.subr.mxu0 0.0
    %946 = vmatpush2.xpose.msra.mxu0 0.0
    %947 = vmatprep.subr.mxu0 0.0
    %948 = vmatpush2.xpose.msra.mxu0 0.0
    %949 = vmatprep.subr.mxu0 0.0
    %950 = vmatpush2.xpose.msra.mxu0 0.0
    %951 = vmatprep.subr.mxu0 0.0
    %952 = vmatpush2.xpose.msra.mxu0 0.0
    %953 = vmatprep.subr.mxu0 0.0
    %954 = vmatpush2.xpose.msra.mxu0 0.0
    %955 = vmatprep.subr.mxu0 0.0
    %956 = vmatpush2.xpose.msra.mxu0 0.0
    %957 = vmatprep.subr.mxu0 0.0
    %958 = vmatpush2.xpose.msra.mxu0 0.0
    %959 = vmatprep.subr.mxu0 0.0
    %960 = vmatpush2.xpose.msra.mxu0 0.0
    %961 = vmatprep.subr.mxu0 0.0
    %962 = vmatpush2.xpose.msra.mxu0 0.0
    %963 = vmatprep.subr.mxu0 0.0
    %964 = vmatpush2.xpose.msra.mxu0 0.0
    %965 = vmatprep.subr.mxu0 0.0
    %966 = vmatpush2.xpose.msra.mxu0 0.0
    %967 = vmatprep.subr.mxu0 0.0
    %968 = vmatpush2.xpose.msra.mxu0 0.0
    %969 = vmatprep.mubr.f32.mxu0 0.0
    %970 = vmatmul.mubr.f32.gmra.mxu0 %v901
    %v971 = vpop.f32.mrf.mxu0
    %v972 = vadd.f32 0.0, %v971
    %v973 = vpop.f32.mrf.mxu0
    %974 = vdwg.mxu0
    %v975 = vsel %vm646, %v894, -inf
    %976 = vmax.xlane.f32.xlu0 %v975
    %v977 = vpop.xlane.xlu0 %976
    %v978 = vsel %vm646, %v972, -inf
    %979 = vmax.xlane.f32.xlu0 %v978
    %v980 = vpop.xlane.xlu0 %979
    %v981 = vsub.f32 %v894, %v977
    %v982 = vsub.f32 %v972, %v980
    %v983 = vmul.f32 %v981, 1.442695
    %v984 = vpow.pop %v983
    %v985 = vmul.f32 %v982, 1.442695
    %v986 = vpow.pop %v985
    %v987 = vsel %vm646, %v984, 0.0
    %988 = vadd.xlane.f32.xlu0 %v987
    %v989 = vpop.xlane.xlu0 %988
    %v990 = vsel %vm646, %v986, 0.0
    %991 = vadd.xlane.f32.xlu0 %v990
    %v992 = vpop.xlane.xlu0 %991
    %v993 = vrcp.pop %v989
    %v994 = vrcp.pop %v992
    %v995 = vmul.f32 %v984, %v993
    %v996 = vmul.f32 %v986, %v994
    %998 = vrot.lane.b32.xlu0 %v485, 96
    %v999 = vpop.permute.xlu0 %998
    %v1002 = vsel %vm646, %v995, 0
    %1004 = vmatprep.subr.mxu0 0.0
    %1005 = vmatpush1.msra.mxu0 0.0
    %1006 = vmatprep.subr.mxu0 0.0
    %1007 = vmatpush1.msra.mxu0 0.0
    %1008 = vmatprep.subr.mxu0 0.0
    %1009 = vmatpush1.msra.mxu0 0.0
    %1010 = vmatprep.subr.mxu0 0.0
    %1011 = vmatpush1.msra.mxu0 0.0
    %1012 = vmatprep.subr.mxu0 0.0
    %1013 = vmatpush1.msra.mxu0 0.0
    %1014 = vmatprep.subr.mxu0 0.0
    %1015 = vmatpush1.msra.mxu0 0.0
    %1016 = vmatprep.subr.mxu0 0.0
    %1017 = vmatpush1.msra.mxu0 0.0
    %1018 = vmatprep.subr.mxu0 0.0
    %1019 = vmatpush1.msra.mxu0 0.0
    %1020 = vmatprep.subr.mxu0 0.0
    %1021 = vmatpush1.msra.mxu0 0.0
    %1022 = vmatprep.subr.mxu0 0.0
    %1023 = vmatpush1.msra.mxu0 0.0
    %1024 = vmatprep.subr.mxu0 0.0
    %1025 = vmatpush1.msra.mxu0 0.0
    %1026 = vmatprep.subr.mxu0 0.0
    %1027 = vmatpush1.msra.mxu0 0.0
    %1028 = vmatprep.subr.mxu0 0.0
    %1029 = vmatpush1.msra.mxu0 0.0
    %1030 = vmatprep.subr.mxu0 0.0
    %1031 = vmatpush1.msra.mxu0 0.0
    %1032 = vmatprep.subr.mxu0 0.0
    %1033 = vmatpush1.msra.mxu0 0.0
    %1034 = vmatprep.subr.mxu0 0.0
    %1035 = vmatpush1.msra.mxu0 %v999
    %1036 = vmatprep.subr.mxu0 0.0
    %1037 = vmatpush2.msra.mxu0 0.0
    %1038 = vmatprep.subr.mxu0 0.0
    %1039 = vmatpush2.msra.mxu0 0.0
    %1040 = vmatprep.subr.mxu0 0.0
    %1041 = vmatpush2.msra.mxu0 0.0
    %1042 = vmatprep.subr.mxu0 0.0
    %1043 = vmatpush2.msra.mxu0 0.0
    %1044 = vmatprep.subr.mxu0 0.0
    %1045 = vmatpush2.msra.mxu0 0.0
    %1046 = vmatprep.subr.mxu0 0.0
    %1047 = vmatpush2.msra.mxu0 0.0
    %1048 = vmatprep.subr.mxu0 0.0
    %1049 = vmatpush2.msra.mxu0 0.0
    %1050 = vmatprep.subr.mxu0 0.0
    %1051 = vmatpush2.msra.mxu0 0.0
    %1052 = vmatprep.subr.mxu0 0.0
    %1053 = vmatpush2.msra.mxu0 0.0
    %1054 = vmatprep.subr.mxu0 0.0
    %1055 = vmatpush2.msra.mxu0 0.0
    %1056 = vmatprep.subr.mxu0 0.0
    %1057 = vmatpush2.msra.mxu0 0.0
    %1058 = vmatprep.subr.mxu0 0.0
    %1059 = vmatpush2.msra.mxu0 0.0
    %1060 = vmatprep.subr.mxu0 0.0
    %1061 = vmatpush2.msra.mxu0 0.0
    %1062 = vmatprep.subr.mxu0 0.0
    %1063 = vmatpush2.msra.mxu0 0.0
    %1064 = vmatprep.subr.mxu0 0.0
    %1065 = vmatpush2.msra.mxu0 0.0
    %1066 = vmatprep.subr.mxu0 0.0
    %1067 = vmatpush2.msra.mxu0 0.0
    %1068 = vmatprep.mubr.f32.mxu0 0.0
    %1069 = vmatmul.mubr.f32.gmra.mxu0 %v1002
    %v1070 = vpop.f32.mrf.mxu0
    %v1071 = vadd.f32 0.0, %v1070
    %v1072 = vpop.f32.mrf.mxu0
    %1073 = vdwg.mxu0
    %1075 = vrot.lane.b32.xlu0 %v490, 96
    %v1076 = vpop.permute.xlu0 %1075
    %v1079 = vsel %vm646, %v996, 0
    %1081 = vmatprep.subr.mxu0 0.0
    %1082 = vmatpush1.msra.mxu0 0.0
    %1083 = vmatprep.subr.mxu0 0.0
    %1084 = vmatpush1.msra.mxu0 0.0
    %1085 = vmatprep.subr.mxu0 0.0
    %1086 = vmatpush1.msra.mxu0 0.0
    %1087 = vmatprep.subr.mxu0 0.0
    %1088 = vmatpush1.msra.mxu0 0.0
    %1089 = vmatprep.subr.mxu0 0.0
    %1090 = vmatpush1.msra.mxu0 0.0
    %1091 = vmatprep.subr.mxu0 0.0
    %1092 = vmatpush1.msra.mxu0 0.0
    %1093 = vmatprep.subr.mxu0 0.0
    %1094 = vmatpush1.msra.mxu0 0.0
    %1095 = vmatprep.subr.mxu0 0.0
    %1096 = vmatpush1.msra.mxu0 0.0
    %1097 = vmatprep.subr.mxu0 0.0
    %1098 = vmatpush1.msra.mxu0 0.0
    %1099 = vmatprep.subr.mxu0 0.0
    %1100 = vmatpush1.msra.mxu0 0.0
    %1101 = vmatprep.subr.mxu0 0.0
    %1102 = vmatpush1.msra.mxu0 0.0
    %1103 = vmatprep.subr.mxu0 0.0
    %1104 = vmatpush1.msra.mxu0 0.0
    %1105 = vmatprep.subr.mxu0 0.0
    %1106 = vmatpush1.msra.mxu0 0.0
    %1107 = vmatprep.subr.mxu0 0.0
    %1108 = vmatpush1.msra.mxu0 0.0
    %1109 = vmatprep.subr.mxu0 0.0
    %1110 = vmatpush1.msra.mxu0 0.0
    %1111 = vmatprep.subr.mxu0 0.0
    %1112 = vmatpush1.msra.mxu0 %v1076
    %1113 = vmatprep.subr.mxu0 0.0
    %1114 = vmatpush2.msra.mxu0 0.0
    %1115 = vmatprep.subr.mxu0 0.0
    %1116 = vmatpush2.msra.mxu0 0.0
    %1117 = vmatprep.subr.mxu0 0.0
    %1118 = vmatpush2.msra.mxu0 0.0
    %1119 = vmatprep.subr.mxu0 0.0
    %1120 = vmatpush2.msra.mxu0 0.0
    %1121 = vmatprep.subr.mxu0 0.0
    %1122 = vmatpush2.msra.mxu0 0.0
    %1123 = vmatprep.subr.mxu0 0.0
    %1124 = vmatpush2.msra.mxu0 0.0
    %1125 = vmatprep.subr.mxu0 0.0
    %1126 = vmatpush2.msra.mxu0 0.0
    %1127 = vmatprep.subr.mxu0 0.0
    %1128 = vmatpush2.msra.mxu0 0.0
    %1129 = vmatprep.subr.mxu0 0.0
    %1130 = vmatpush2.msra.mxu0 0.0
    %1131 = vmatprep.subr.mxu0 0.0
    %1132 = vmatpush2.msra.mxu0 0.0
    %1133 = vmatprep.subr.mxu0 0.0
    %1134 = vmatpush2.msra.mxu0 0.0
    %1135 = vmatprep.subr.mxu0 0.0
    %1136 = vmatpush2.msra.mxu0 0.0
    %1137 = vmatprep.subr.mxu0 0.0
    %1138 = vmatpush2.msra.mxu0 0.0
    %1139 = vmatprep.subr.mxu0 0.0
    %1140 = vmatpush2.msra.mxu0 0.0
    %1141 = vmatprep.subr.mxu0 0.0
    %1142 = vmatpush2.msra.mxu0 0.0
    %1143 = vmatprep.subr.mxu0 0.0
    %1144 = vmatpush2.msra.mxu0 0.0
    %1145 = vmatprep.mubr.f32.mxu0 0.0
    %1146 = vmatmul.mubr.f32.gmra.mxu0 %v1079
    %v1147 = vpop.f32.mrf.mxu0
    %v1148 = vadd.f32 0.0, %v1147
    %v1149 = vpop.f32.mrf.mxu0
    %1150 = vdwg.mxu0
    %v1151 = vld [vmem:[#allocation10 + $0x20] sm:$0xff]
    %v1152 = vld [vmem:[#allocation10 + $0x28] sm:$0xff]
    %v1153 = vld [vmem:[#allocation10 + $0x30] sm:$0xff]
    %v1154 = vld [vmem:[#allocation10 + $0x38] sm:$0xff]
    %v1156 = vsel %vm493, %v1071, 0
    %v1159 = vsel %vm493, %v1148, 0
    %1161 = vmatprep.subr.mxu0 0.0
    %1162 = vmatpush1.msra.mxu0 0.0
    %1163 = vmatprep.subr.mxu0 0.0
    %1164 = vmatpush1.msra.mxu0 0.0
    %1165 = vmatprep.subr.mxu0 0.0
    %1166 = vmatpush1.msra.mxu0 0.0
    %1167 = vmatprep.subr.mxu0 0.0
    %1168 = vmatpush1.msra.mxu0 0.0
    %1169 = vmatprep.subr.mxu0 0.0
    %1170 = vmatpush1.msra.mxu0 0.0
    %1171 = vmatprep.subr.mxu0 0.0
    %1172 = vmatpush1.msra.mxu0 0.0
    %1173 = vmatprep.subr.mxu0 0.0
    %1174 = vmatpush1.msra.mxu0 0.0
    %1175 = vmatprep.subr.mxu0 0.0
    %1176 = vmatpush1.msra.mxu0 0.0
    %1177 = vmatprep.subr.mxu0 0.0
    %1178 = vmatpush1.msra.mxu0 0.0
    %1179 = vmatprep.subr.mxu0 0.0
    %1180 = vmatpush1.msra.mxu0 0.0
    %1181 = vmatprep.subr.mxu0 0.0
    %1182 = vmatpush1.msra.mxu0 0.0
    %1183 = vmatprep.subr.mxu0 0.0
    %1184 = vmatpush1.msra.mxu0 0.0
    %1185 = vmatprep.subr.mxu0 0.0
    %1186 = vmatpush1.msra.mxu0 %v1154
    %1187 = vmatprep.subr.mxu0 0.0
    %1188 = vmatpush1.msra.mxu0 %v1153
    %1189 = vmatprep.subr.mxu0 0.0
    %1190 = vmatpush1.msra.mxu0 %v1152
    %1191 = vmatprep.subr.mxu0 0.0
    %1192 = vmatpush1.msra.mxu0 %v1151
    %1193 = vmatprep.subr.mxu0 0.0
    %1194 = vmatpush2.msra.mxu0 0.0
    %1195 = vmatprep.subr.mxu0 0.0
    %1196 = vmatpush2.msra.mxu0 0.0
    %1197 = vmatprep.subr.mxu0 0.0
    %1198 = vmatpush2.msra.mxu0 0.0
    %1199 = vmatprep.subr.mxu0 0.0
    %1200 = vmatpush2.msra.mxu0 0.0
    %1201 = vmatprep.subr.mxu0 0.0
    %1202 = vmatpush2.msra.mxu0 0.0
    %1203 = vmatprep.subr.mxu0 0.0
    %1204 = vmatpush2.msra.mxu0 0.0
    %1205 = vmatprep.subr.mxu0 0.0
    %1206 = vmatpush2.msra.mxu0 0.0
    %1207 = vmatprep.subr.mxu0 0.0
    %1208 = vmatpush2.msra.mxu0 0.0
    %1209 = vmatprep.subr.mxu0 0.0
    %1210 = vmatpush2.msra.mxu0 0.0
    %1211 = vmatprep.subr.mxu0 0.0
    %1212 = vmatpush2.msra.mxu0 0.0
    %1213 = vmatprep.subr.mxu0 0.0
    %1214 = vmatpush2.msra.mxu0 0.0
    %1215 = vmatprep.subr.mxu0 0.0
    %1216 = vmatpush2.msra.mxu0 0.0
    %1217 = vmatprep.subr.mxu0 0.0
    %1218 = vmatpush2.msra.mxu0 0.0
    %1219 = vmatprep.subr.mxu0 0.0
    %1220 = vmatpush2.msra.mxu0 0.0
    %1221 = vmatprep.subr.mxu0 0.0
    %1222 = vmatpush2.msra.mxu0 0.0
    %1223 = vmatprep.subr.mxu0 0.0
    %1224 = vmatpush2.msra.mxu0 0.0
    %1225 = vmatprep.mubr.f32.mxu0 0.0
    %1226 = vmatmul.mubr.f32.gmra.mxu0 %v1156
    %v1227 = vpop.f32.mrf.mxu0
    %v1228 = vadd.f32 0.0, %v1227
    %v1229 = vpop.f32.mrf.mxu0
    %1230 = vmatprep.mubr.f32.mxu0 0.0
    %1231 = vmatmul.mubr.f32.gmra.mxu0 %v1159
    %v1232 = vpop.f32.mrf.mxu0
    %v1233 = vadd.f32 0.0, %v1232
    %v1234 = vpop.f32.mrf.mxu0
    %1235 = vdwg.mxu0
    %v1237 = vsel %vm493, %v739, 0
    %v1240 = vsel %vm493, %v812, 0
    %1242 = vmatprep.subr.mxu0 0.0
    %1243 = vmatpush1.msra.mxu0 0.0
    %1244 = vmatprep.subr.mxu0 0.0
    %1245 = vmatpush1.msra.mxu0 0.0
    %1246 = vmatprep.subr.mxu0 0.0
    %1247 = vmatpush1.msra.mxu0 0.0
    %1248 = vmatprep.subr.mxu0 0.0
    %1249 = vmatpush1.msra.mxu0 0.0
    %1250 = vmatprep.subr.mxu0 0.0
    %1251 = vmatpush1.msra.mxu0 0.0
    %1252 = vmatprep.subr.mxu0 0.0
    %1253 = vmatpush1.msra.mxu0 0.0
    %1254 = vmatprep.subr.mxu0 0.0
    %1255 = vmatpush1.msra.mxu0 0.0
    %1256 = vmatprep.subr.mxu0 0.0
    %1257 = vmatpush1.msra.mxu0 0.0
    %1258 = vmatprep.subr.mxu0 0.0
    %1259 = vmatpush1.msra.mxu0 0.0
    %1260 = vmatprep.subr.mxu0 0.0
    %1261 = vmatpush1.msra.mxu0 0.0
    %1262 = vmatprep.subr.mxu0 0.0
    %1263 = vmatpush1.msra.mxu0 0.0
    %1264 = vmatprep.subr.mxu0 0.0
    %1265 = vmatpush1.msra.mxu0 0.0
    %1266 = vmatprep.subr.mxu0 0.0
    %1267 = vmatpush1.msra.mxu0 %v818
    %1268 = vmatprep.subr.mxu0 0.0
    %1269 = vmatpush1.msra.mxu0 %v817
    %1270 = vmatprep.subr.mxu0 0.0
    %1271 = vmatpush1.msra.mxu0 %v816
    %1272 = vmatprep.subr.mxu0 0.0
    %1273 = vmatpush1.msra.mxu0 %v815
    %1274 = vmatprep.subr.mxu0 0.0
    %1275 = vmatpush2.msra.mxu0 0.0
    %1276 = vmatprep.subr.mxu0 0.0
    %1277 = vmatpush2.msra.mxu0 0.0
    %1278 = vmatprep.subr.mxu0 0.0
    %1279 = vmatpush2.msra.mxu0 0.0
    %1280 = vmatprep.subr.mxu0 0.0
    %1281 = vmatpush2.msra.mxu0 0.0
    %1282 = vmatprep.subr.mxu0 0.0
    %1283 = vmatpush2.msra.mxu0 0.0
    %1284 = vmatprep.subr.mxu0 0.0
    %1285 = vmatpush2.msra.mxu0 0.0
    %1286 = vmatprep.subr.mxu0 0.0
    %1287 = vmatpush2.msra.mxu0 0.0
    %1288 = vmatprep.subr.mxu0 0.0
    %1289 = vmatpush2.msra.mxu0 0.0
    %1290 = vmatprep.subr.mxu0 0.0
    %1291 = vmatpush2.msra.mxu0 0.0
    %1292 = vmatprep.subr.mxu0 0.0
    %1293 = vmatpush2.msra.mxu0 0.0
    %1294 = vmatprep.subr.mxu0 0.0
    %1295 = vmatpush2.msra.mxu0 0.0
    %1296 = vmatprep.subr.mxu0 0.0
    %1297 = vmatpush2.msra.mxu0 0.0
    %1298 = vmatprep.subr.mxu0 0.0
    %1299 = vmatpush2.msra.mxu0 0.0
    %1300 = vmatprep.subr.mxu0 0.0
    %1301 = vmatpush2.msra.mxu0 0.0
    %1302 = vmatprep.subr.mxu0 0.0
    %1303 = vmatpush2.msra.mxu0 0.0
    %1304 = vmatprep.subr.mxu0 0.0
    %1305 = vmatpush2.msra.mxu0 0.0
    %1306 = vmatprep.mubr.f32.mxu0 0.0
    %1307 = vmatmul.mubr.f32.gmra.mxu0 %v1237
    %v1308 = vpop.f32.mrf.mxu0
    %v1309 = vadd.f32 %v1228, %v1308
    %v1310 = vpop.f32.mrf.mxu0
    %1311 = vmatprep.mubr.f32.mxu0 0.0
    %1312 = vmatmul.mubr.f32.gmra.mxu0 %v1240
    %v1313 = vpop.f32.mrf.mxu0
    %v1314 = vadd.f32 %v1233, %v1313
    %v1315 = vpop.f32.mrf.mxu0
    %1316 = vdwg.mxu0
    %1317 = vrot.lane.b32.xlu0 %v289, 64
    %v1318 = vpop.permute.xlu0 %1317
    %1319 = vrot.lane.b32.xlu0 %v387, 64
    %v1320 = vpop.permute.xlu0 %1319
    %v1321 = vsel %vm493, %v1318, 0
    %v1323 = vsel %vm493, %v1320, 0
    %1325 = vmatprep.subr.mxu0 0.0
    %1326 = vmatpush1.xpose.msra.mxu0 0.0
    %1327 = vmatprep.subr.mxu0 0.0
    %1328 = vmatpush1.xpose.msra.mxu0 0.0
    %1329 = vmatprep.subr.mxu0 0.0
    %1330 = vmatpush1.xpose.msra.mxu0 0.0
    %1331 = vmatprep.subr.mxu0 0.0
    %1332 = vmatpush1.xpose.msra.mxu0 0.0
    %1333 = vmatprep.subr.mxu0 0.0
    %1334 = vmatpush1.xpose.msra.mxu0 0.0
    %1335 = vmatprep.subr.mxu0 0.0
    %1336 = vmatpush1.xpose.msra.mxu0 0.0
    %1337 = vmatprep.subr.mxu0 0.0
    %1338 = vmatpush1.xpose.msra.mxu0 0.0
    %1339 = vmatprep.subr.mxu0 0.0
    %1340 = vmatpush1.xpose.msra.mxu0 0.0
    %1341 = vmatprep.subr.mxu0 0.0
    %1342 = vmatpush1.xpose.msra.mxu0 0.0
    %1343 = vmatprep.subr.mxu0 0.0
    %1344 = vmatpush1.xpose.msra.mxu0 0.0
    %1345 = vmatprep.subr.mxu0 0.0
    %1346 = vmatpush1.xpose.msra.mxu0 0.0
    %1347 = vmatprep.subr.mxu0 0.0
    %1348 = vmatpush1.xpose.msra.mxu0 0.0
    %1349 = vmatprep.subr.mxu0 0.0
    %1350 = vmatpush1.xpose.msra.mxu0 0.0
    %1351 = vmatprep.subr.mxu0 0.0
    %1352 = vmatpush1.xpose.msra.mxu0 0.0
    %1353 = vmatprep.subr.mxu0 0.0
    %1354 = vmatpush1.xpose.msra.mxu0 0.0
    %1355 = vmatprep.subr.mxu0 0.0
    %1356 = vmatpush1.xpose.msra.mxu0 %v1323
    %1357 = vmatprep.subr.mxu0 0.0
    %1358 = vmatpush2.xpose.msra.mxu0 0.0
    %1359 = vmatprep.subr.mxu0 0.0
    %1360 = vmatpush2.xpose.msra.mxu0 0.0
    %1361 = vmatprep.subr.mxu0 0.0
    %1362 = vmatpush2.xpose.msra.mxu0 0.0
    %1363 = vmatprep.subr.mxu0 0.0
    %1364 = vmatpush2.xpose.msra.mxu0 0.0
    %1365 = vmatprep.subr.mxu0 0.0
    %1366 = vmatpush2.xpose.msra.mxu0 0.0
    %1367 = vmatprep.subr.mxu0 0.0
    %1368 = vmatpush2.xpose.msra.mxu0 0.0
    %1369 = vmatprep.subr.mxu0 0.0
    %1370 = vmatpush2.xpose.msra.mxu0 0.0
    %1371 = vmatprep.subr.mxu0 0.0
    %1372 = vmatpush2.xpose.msra.mxu0 0.0
    %1373 = vmatprep.subr.mxu0 0.0
    %1374 = vmatpush2.xpose.msra.mxu0 0.0
    %1375 = vmatprep.subr.mxu0 0.0
    %1376 = vmatpush2.xpose.msra.mxu0 0.0
    %1377 = vmatprep.subr.mxu0 0.0
    %1378 = vmatpush2.xpose.msra.mxu0 0.0
    %1379 = vmatprep.subr.mxu0 0.0
    %1380 = vmatpush2.xpose.msra.mxu0 0.0
    %1381 = vmatprep.subr.mxu0 0.0
    %1382 = vmatpush2.xpose.msra.mxu0 0.0
    %1383 = vmatprep.subr.mxu0 0.0
    %1384 = vmatpush2.xpose.msra.mxu0 0.0
    %1385 = vmatprep.subr.mxu0 0.0
    %1386 = vmatpush2.xpose.msra.mxu0 0.0
    %1387 = vmatprep.subr.mxu0 0.0
    %1388 = vmatpush2.xpose.msra.mxu0 0.0
    %1389 = vmatprep.mubr.f32.mxu0 0.0
    %1390 = vmatmul.mubr.f32.gmra.mxu0 %v1321
    %v1391 = vpop.f32.mrf.mxu0
    %v1392 = vadd.f32 0.0, %v1391
    %v1393 = vpop.f32.mrf.mxu0
    %1394 = vdwg.mxu0
    %1395 = vrot.lane.b32.xlu0 %v294, 64
    %v1396 = vpop.permute.xlu0 %1395
    %1397 = vrot.lane.b32.xlu0 %v392, 64
    %v1398 = vpop.permute.xlu0 %1397
    %v1399 = vsel %vm493, %v1396, 0
    %v1401 = vsel %vm493, %v1398, 0
    %1403 = vmatprep.subr.mxu0 0.0
    %1404 = vmatpush1.xpose.msra.mxu0 0.0
    %1405 = vmatprep.subr.mxu0 0.0
    %1406 = vmatpush1.xpose.msra.mxu0 0.0
    %1407 = vmatprep.subr.mxu0 0.0
    %1408 = vmatpush1.xpose.msra.mxu0 0.0
    %1409 = vmatprep.subr.mxu0 0.0
    %1410 = vmatpush1.xpose.msra.mxu0 0.0
    %1411 = vmatprep.subr.mxu0 0.0
    %1412 = vmatpush1.xpose.msra.mxu0 0.0
    %1413 = vmatprep.subr.mxu0 0.0
    %1414 = vmatpush1.xpose.msra.mxu0 0.0
    %1415 = vmatprep.subr.mxu0 0.0
    %1416 = vmatpush1.xpose.msra.mxu0 0.0
    %1417 = vmatprep.subr.mxu0 0.0
    %1418 = vmatpush1.xpose.msra.mxu0 0.0
    %1419 = vmatprep.subr.mxu0 0.0
    %1420 = vmatpush1.xpose.msra.mxu0 0.0
    %1421 = vmatprep.subr.mxu0 0.0
    %1422 = vmatpush1.xpose.msra.mxu0 0.0
    %1423 = vmatprep.subr.mxu0 0.0
    %1424 = vmatpush1.xpose.msra.mxu0 0.0
    %1425 = vmatprep.subr.mxu0 0.0
    %1426 = vmatpush1.xpose.msra.mxu0 0.0
    %1427 = vmatprep.subr.mxu0 0.0
    %1428 = vmatpush1.xpose.msra.mxu0 0.0
    %1429 = vmatprep.subr.mxu0 0.0
    %1430 = vmatpush1.xpose.msra.mxu0 0.0
    %1431 = vmatprep.subr.mxu0 0.0
    %1432 = vmatpush1.xpose.msra.mxu0 0.0
    %1433 = vmatprep.subr.mxu0 0.0
    %1434 = vmatpush1.xpose.msra.mxu0 %v1401
    %1435 = vmatprep.subr.mxu0 0.0
    %1436 = vmatpush2.xpose.msra.mxu0 0.0
    %1437 = vmatprep.subr.mxu0 0.0
    %1438 = vmatpush2.xpose.msra.mxu0 0.0
    %1439 = vmatprep.subr.mxu0 0.0
    %1440 = vmatpush2.xpose.msra.mxu0 0.0
    %1441 = vmatprep.subr.mxu0 0.0
    %1442 = vmatpush2.xpose.msra.mxu0 0.0
    %1443 = vmatprep.subr.mxu0 0.0
    %1444 = vmatpush2.xpose.msra.mxu0 0.0
    %1445 = vmatprep.subr.mxu0 0.0
    %1446 = vmatpush2.xpose.msra.mxu0 0.0
    %1447 = vmatprep.subr.mxu0 0.0
    %1448 = vmatpush2.xpose.msra.mxu0 0.0
    %1449 = vmatprep.subr.mxu0 0.0
    %1450 = vmatpush2.xpose.msra.mxu0 0.0
    %1451 = vmatprep.subr.mxu0 0.0
    %1452 = vmatpush2.xpose.msra.mxu0 0.0
    %1453 = vmatprep.subr.mxu0 0.0
    %1454 = vmatpush2.xpose.msra.mxu0 0.0
    %1455 = vmatprep.subr.mxu0 0.0
    %1456 = vmatpush2.xpose.msra.mxu0 0.0
    %1457 = vmatprep.subr.mxu0 0.0
    %1458 = vmatpush2.xpose.msra.mxu0 0.0
    %1459 = vmatprep.subr.mxu0 0.0
    %1460 = vmatpush2.xpose.msra.mxu0 0.0
    %1461 = vmatprep.subr.mxu0 0.0
    %1462 = vmatpush2.xpose.msra.mxu0 0.0
    %1463 = vmatprep.subr.mxu0 0.0
    %1464 = vmatpush2.xpose.msra.mxu0 0.0
    %1465 = vmatprep.subr.mxu0 0.0
    %1466 = vmatpush2.xpose.msra.mxu0 0.0
    %1467 = vmatprep.mubr.f32.mxu0 0.0
    %1468 = vmatmul.mubr.f32.gmra.mxu0 %v1399
    %v1469 = vpop.f32.mrf.mxu0
    %v1470 = vadd.f32 0.0, %v1469
    %v1471 = vpop.f32.mrf.mxu0
    %1472 = vdwg.mxu0
    %v1473 = vsel %vm646, %v1392, -inf
    %1474 = vmax.xlane.f32.xlu0 %v1473
    %v1475 = vpop.xlane.xlu0 %1474
    %v1476 = vsel %vm646, %v1470, -inf
    %1477 = vmax.xlane.f32.xlu0 %v1476
    %v1478 = vpop.xlane.xlu0 %1477
    %v1479 = vsub.f32 %v1392, %v1475
    %v1480 = vsub.f32 %v1470, %v1478
    %v1481 = vmul.f32 %v1479, 1.442695
    %v1482 = vpow.pop %v1481
    %v1483 = vmul.f32 %v1480, 1.442695
    %v1484 = vpow.pop %v1483
    %v1485 = vsel %vm646, %v1482, 0.0
    %1486 = vadd.xlane.f32.xlu0 %v1485
    %v1487 = vpop.xlane.xlu0 %1486
    %v1488 = vsel %vm646, %v1484, 0.0
    %1489 = vadd.xlane.f32.xlu0 %v1488
    %v1490 = vpop.xlane.xlu0 %1489
    %v1491 = vrcp.pop %v1487
    %v1492 = vrcp.pop %v1490
    %v1493 = vmul.f32 %v1482, %v1491
    %v1494 = vmul.f32 %v1484, %v1492
    %1495 = vrot.lane.b32.xlu0 %v485, 64
    %v1496 = vpop.permute.xlu0 %1495
    %v1499 = vsel %vm646, %v1493, 0
    %1501 = vmatprep.subr.mxu0 0.0
    %1502 = vmatpush1.msra.mxu0 0.0
    %1503 = vmatprep.subr.mxu0 0.0
    %1504 = vmatpush1.msra.mxu0 0.0
    %1505 = vmatprep.subr.mxu0 0.0
    %1506 = vmatpush1.msra.mxu0 0.0
    %1507 = vmatprep.subr.mxu0 0.0
    %1508 = vmatpush1.msra.mxu0 0.0
    %1509 = vmatprep.subr.mxu0 0.0
    %1510 = vmatpush1.msra.mxu0 0.0
    %1511 = vmatprep.subr.mxu0 0.0
    %1512 = vmatpush1.msra.mxu0 0.0
    %1513 = vmatprep.subr.mxu0 0.0
    %1514 = vmatpush1.msra.mxu0 0.0
    %1515 = vmatprep.subr.mxu0 0.0
    %1516 = vmatpush1.msra.mxu0 0.0
    %1517 = vmatprep.subr.mxu0 0.0
    %1518 = vmatpush1.msra.mxu0 0.0
    %1519 = vmatprep.subr.mxu0 0.0
    %1520 = vmatpush1.msra.mxu0 0.0
    %1521 = vmatprep.subr.mxu0 0.0
    %1522 = vmatpush1.msra.mxu0 0.0
    %1523 = vmatprep.subr.mxu0 0.0
    %1524 = vmatpush1.msra.mxu0 0.0
    %1525 = vmatprep.subr.mxu0 0.0
    %1526 = vmatpush1.msra.mxu0 0.0
    %1527 = vmatprep.subr.mxu0 0.0
    %1528 = vmatpush1.msra.mxu0 0.0
    %1529 = vmatprep.subr.mxu0 0.0
    %1530 = vmatpush1.msra.mxu0 0.0
    %1531 = vmatprep.subr.mxu0 0.0
    %1532 = vmatpush1.msra.mxu0 %v1496
    %1533 = vmatprep.subr.mxu0 0.0
    %1534 = vmatpush2.msra.mxu0 0.0
    %1535 = vmatprep.subr.mxu0 0.0
    %1536 = vmatpush2.msra.mxu0 0.0
    %1537 = vmatprep.subr.mxu0 0.0
    %1538 = vmatpush2.msra.mxu0 0.0
    %1539 = vmatprep.subr.mxu0 0.0
    %1540 = vmatpush2.msra.mxu0 0.0
    %1541 = vmatprep.subr.mxu0 0.0
    %1542 = vmatpush2.msra.mxu0 0.0
    %1543 = vmatprep.subr.mxu0 0.0
    %1544 = vmatpush2.msra.mxu0 0.0
    %1545 = vmatprep.subr.mxu0 0.0
    %1546 = vmatpush2.msra.mxu0 0.0
    %1547 = vmatprep.subr.mxu0 0.0
    %1548 = vmatpush2.msra.mxu0 0.0
    %1549 = vmatprep.subr.mxu0 0.0
    %1550 = vmatpush2.msra.mxu0 0.0
    %1551 = vmatprep.subr.mxu0 0.0
    %1552 = vmatpush2.msra.mxu0 0.0
    %1553 = vmatprep.subr.mxu0 0.0
    %1554 = vmatpush2.msra.mxu0 0.0
    %1555 = vmatprep.subr.mxu0 0.0
    %1556 = vmatpush2.msra.mxu0 0.0
    %1557 = vmatprep.subr.mxu0 0.0
    %1558 = vmatpush2.msra.mxu0 0.0
    %1559 = vmatprep.subr.mxu0 0.0
    %1560 = vmatpush2.msra.mxu0 0.0
    %1561 = vmatprep.subr.mxu0 0.0
    %1562 = vmatpush2.msra.mxu0 0.0
    %1563 = vmatprep.subr.mxu0 0.0
    %1564 = vmatpush2.msra.mxu0 0.0
    %1565 = vmatprep.mubr.f32.mxu0 0.0
    %1566 = vmatmul.mubr.f32.gmra.mxu0 %v1499
    %v1567 = vpop.f32.mrf.mxu0
    %v1568 = vadd.f32 0.0, %v1567
    %v1569 = vpop.f32.mrf.mxu0
    %1570 = vdwg.mxu0
    %1571 = vrot.lane.b32.xlu0 %v490, 64
    %v1572 = vpop.permute.xlu0 %1571
    %v1575 = vsel %vm646, %v1494, 0
    %1577 = vmatprep.subr.mxu0 0.0
    %1578 = vmatpush1.msra.mxu0 0.0
    %1579 = vmatprep.subr.mxu0 0.0
    %1580 = vmatpush1.msra.mxu0 0.0
    %1581 = vmatprep.subr.mxu0 0.0
    %1582 = vmatpush1.msra.mxu0 0.0
    %1583 = vmatprep.subr.mxu0 0.0
    %1584 = vmatpush1.msra.mxu0 0.0
    %1585 = vmatprep.subr.mxu0 0.0
    %1586 = vmatpush1.msra.mxu0 0.0
    %1587 = vmatprep.subr.mxu0 0.0
    %1588 = vmatpush1.msra.mxu0 0.0
    %1589 = vmatprep.subr.mxu0 0.0
    %1590 = vmatpush1.msra.mxu0 0.0
    %1591 = vmatprep.subr.mxu0 0.0
    %1592 = vmatpush1.msra.mxu0 0.0
    %1593 = vmatprep.subr.mxu0 0.0
    %1594 = vmatpush1.msra.mxu0 0.0
    %1595 = vmatprep.subr.mxu0 0.0
    %1596 = vmatpush1.msra.mxu0 0.0
    %1597 = vmatprep.subr.mxu0 0.0
    %1598 = vmatpush1.msra.mxu0 0.0
    %1599 = vmatprep.subr.mxu0 0.0
    %1600 = vmatpush1.msra.mxu0 0.0
    %1601 = vmatprep.subr.mxu0 0.0
    %1602 = vmatpush1.msra.mxu0 0.0
    %1603 = vmatprep.subr.mxu0 0.0
    %1604 = vmatpush1.msra.mxu0 0.0
    %1605 = vmatprep.subr.mxu0 0.0
    %1606 = vmatpush1.msra.mxu0 0.0
    %1607 = vmatprep.subr.mxu0 0.0
    %1608 = vmatpush1.msra.mxu0 %v1572
    %1609 = vmatprep.subr.mxu0 0.0
    %1610 = vmatpush2.msra.mxu0 0.0
    %1611 = vmatprep.subr.mxu0 0.0
    %1612 = vmatpush2.msra.mxu0 0.0
    %1613 = vmatprep.subr.mxu0 0.0
    %1614 = vmatpush2.msra.mxu0 0.0
    %1615 = vmatprep.subr.mxu0 0.0
    %1616 = vmatpush2.msra.mxu0 0.0
    %1617 = vmatprep.subr.mxu0 0.0
    %1618 = vmatpush2.msra.mxu0 0.0
    %1619 = vmatprep.subr.mxu0 0.0
    %1620 = vmatpush2.msra.mxu0 0.0
    %1621 = vmatprep.subr.mxu0 0.0
    %1622 = vmatpush2.msra.mxu0 0.0
    %1623 = vmatprep.subr.mxu0 0.0
    %1624 = vmatpush2.msra.mxu0 0.0
    %1625 = vmatprep.subr.mxu0 0.0
    %1626 = vmatpush2.msra.mxu0 0.0
    %1627 = vmatprep.subr.mxu0 0.0
    %1628 = vmatpush2.msra.mxu0 0.0
    %1629 = vmatprep.subr.mxu0 0.0
    %1630 = vmatpush2.msra.mxu0 0.0
    %1631 = vmatprep.subr.mxu0 0.0
    %1632 = vmatpush2.msra.mxu0 0.0
    %1633 = vmatprep.subr.mxu0 0.0
    %1634 = vmatpush2.msra.mxu0 0.0
    %1635 = vmatprep.subr.mxu0 0.0
    %1636 = vmatpush2.msra.mxu0 0.0
    %1637 = vmatprep.subr.mxu0 0.0
    %1638 = vmatpush2.msra.mxu0 0.0
    %1639 = vmatprep.subr.mxu0 0.0
    %1640 = vmatpush2.msra.mxu0 0.0
    %1641 = vmatprep.mubr.f32.mxu0 0.0
    %1642 = vmatmul.mubr.f32.gmra.mxu0 %v1575
    %v1643 = vpop.f32.mrf.mxu0
    %v1644 = vadd.f32 0.0, %v1643
    %v1645 = vpop.f32.mrf.mxu0
    %1646 = vdwg.mxu0
    %v1647 = vld [vmem:[#allocation10 + $0x40] sm:$0xff]
    %v1648 = vld [vmem:[#allocation10 + $0x48] sm:$0xff]
    %v1649 = vld [vmem:[#allocation10 + $0x50] sm:$0xff]
    %v1650 = vld [vmem:[#allocation10 + $0x58] sm:$0xff]
    %v1652 = vsel %vm493, %v1568, 0
    %v1655 = vsel %vm493, %v1644, 0
    %1657 = vmatprep.subr.mxu0 0.0
    %1658 = vmatpush1.msra.mxu0 0.0
    %1659 = vmatprep.subr.mxu0 0.0
    %1660 = vmatpush1.msra.mxu0 0.0
    %1661 = vmatprep.subr.mxu0 0.0
    %1662 = vmatpush1.msra.mxu0 0.0
    %1663 = vmatprep.subr.mxu0 0.0
    %1664 = vmatpush1.msra.mxu0 0.0
    %1665 = vmatprep.subr.mxu0 0.0
    %1666 = vmatpush1.msra.mxu0 0.0
    %1667 = vmatprep.subr.mxu0 0.0
    %1668 = vmatpush1.msra.mxu0 0.0
    %1669 = vmatprep.subr.mxu0 0.0
    %1670 = vmatpush1.msra.mxu0 0.0
    %1671 = vmatprep.subr.mxu0 0.0
    %1672 = vmatpush1.msra.mxu0 0.0
    %1673 = vmatprep.subr.mxu0 0.0
    %1674 = vmatpush1.msra.mxu0 0.0
    %1675 = vmatprep.subr.mxu0 0.0
    %1676 = vmatpush1.msra.mxu0 0.0
    %1677 = vmatprep.subr.mxu0 0.0
    %1678 = vmatpush1.msra.mxu0 0.0
    %1679 = vmatprep.subr.mxu0 0.0
    %1680 = vmatpush1.msra.mxu0 0.0
    %1681 = vmatprep.subr.mxu0 0.0
    %1682 = vmatpush1.msra.mxu0 %v1650
    %1683 = vmatprep.subr.mxu0 0.0
    %1684 = vmatpush1.msra.mxu0 %v1649
    %1685 = vmatprep.subr.mxu0 0.0
    %1686 = vmatpush1.msra.mxu0 %v1648
    %1687 = vmatprep.subr.mxu0 0.0
    %1688 = vmatpush1.msra.mxu0 %v1647
    %1689 = vmatprep.subr.mxu0 0.0
    %1690 = vmatpush2.msra.mxu0 0.0
    %1691 = vmatprep.subr.mxu0 0.0
    %1692 = vmatpush2.msra.mxu0 0.0
    %1693 = vmatprep.subr.mxu0 0.0
    %1694 = vmatpush2.msra.mxu0 0.0
    %1695 = vmatprep.subr.mxu0 0.0
    %1696 = vmatpush2.msra.mxu0 0.0
    %1697 = vmatprep.subr.mxu0 0.0
    %1698 = vmatpush2.msra.mxu0 0.0
    %1699 = vmatprep.subr.mxu0 0.0
    %1700 = vmatpush2.msra.mxu0 0.0
    %1701 = vmatprep.subr.mxu0 0.0
    %1702 = vmatpush2.msra.mxu0 0.0
    %1703 = vmatprep.subr.mxu0 0.0
    %1704 = vmatpush2.msra.mxu0 0.0
    %1705 = vmatprep.subr.mxu0 0.0
    %1706 = vmatpush2.msra.mxu0 0.0
    %1707 = vmatprep.subr.mxu0 0.0
    %1708 = vmatpush2.msra.mxu0 0.0
    %1709 = vmatprep.subr.mxu0 0.0
    %1710 = vmatpush2.msra.mxu0 0.0
    %1711 = vmatprep.subr.mxu0 0.0
    %1712 = vmatpush2.msra.mxu0 0.0
    %1713 = vmatprep.subr.mxu0 0.0
    %1714 = vmatpush2.msra.mxu0 0.0
    %1715 = vmatprep.subr.mxu0 0.0
    %1716 = vmatpush2.msra.mxu0 0.0
    %1717 = vmatprep.subr.mxu0 0.0
    %1718 = vmatpush2.msra.mxu0 0.0
    %1719 = vmatprep.subr.mxu0 0.0
    %1720 = vmatpush2.msra.mxu0 0.0
    %1721 = vmatprep.mubr.f32.mxu0 0.0
    %1722 = vmatmul.mubr.f32.gmra.mxu0 %v1652
    %v1723 = vpop.f32.mrf.mxu0
    %v1724 = vadd.f32 0.0, %v1723
    %v1725 = vpop.f32.mrf.mxu0
    %1726 = vmatprep.mubr.f32.mxu0 0.0
    %1727 = vmatmul.mubr.f32.gmra.mxu0 %v1655
    %v1728 = vpop.f32.mrf.mxu0
    %v1729 = vadd.f32 0.0, %v1728
    %v1730 = vpop.f32.mrf.mxu0
    %1731 = vdwg.mxu0
    %v1732 = vadd.f32 %v1309, %v1724
    %v1733 = vadd.f32 %v1314, %v1729
    %1734 = vrot.lane.b32.xlu0 %v289, 32
    %v1735 = vpop.permute.xlu0 %1734
    %1736 = vrot.lane.b32.xlu0 %v387, 32
    %v1737 = vpop.permute.xlu0 %1736
    %v1738 = vsel %vm493, %v1735, 0
    %v1740 = vsel %vm493, %v1737, 0
    %1742 = vmatprep.subr.mxu0 0.0
    %1743 = vmatpush1.xpose.msra.mxu0 0.0
    %1744 = vmatprep.subr.mxu0 0.0
    %1745 = vmatpush1.xpose.msra.mxu0 0.0
    %1746 = vmatprep.subr.mxu0 0.0
    %1747 = vmatpush1.xpose.msra.mxu0 0.0
    %1748 = vmatprep.subr.mxu0 0.0
    %1749 = vmatpush1.xpose.msra.mxu0 0.0
    %1750 = vmatprep.subr.mxu0 0.0
    %1751 = vmatpush1.xpose.msra.mxu0 0.0
    %1752 = vmatprep.subr.mxu0 0.0
    %1753 = vmatpush1.xpose.msra.mxu0 0.0
    %1754 = vmatprep.subr.mxu0 0.0
    %1755 = vmatpush1.xpose.msra.mxu0 0.0
    %1756 = vmatprep.subr.mxu0 0.0
    %1757 = vmatpush1.xpose.msra.mxu0 0.0
    %1758 = vmatprep.subr.mxu0 0.0
    %1759 = vmatpush1.xpose.msra.mxu0 0.0
    %1760 = vmatprep.subr.mxu0 0.0
    %1761 = vmatpush1.xpose.msra.mxu0 0.0
    %1762 = vmatprep.subr.mxu0 0.0
    %1763 = vmatpush1.xpose.msra.mxu0 0.0
    %1764 = vmatprep.subr.mxu0 0.0
    %1765 = vmatpush1.xpose.msra.mxu0 0.0
    %1766 = vmatprep.subr.mxu0 0.0
    %1767 = vmatpush1.xpose.msra.mxu0 0.0
    %1768 = vmatprep.subr.mxu0 0.0
    %1769 = vmatpush1.xpose.msra.mxu0 0.0
    %1770 = vmatprep.subr.mxu0 0.0
    %1771 = vmatpush1.xpose.msra.mxu0 0.0
    %1772 = vmatprep.subr.mxu0 0.0
    %1773 = vmatpush1.xpose.msra.mxu0 %v1740
    %1774 = vmatprep.subr.mxu0 0.0
    %1775 = vmatpush2.xpose.msra.mxu0 0.0
    %1776 = vmatprep.subr.mxu0 0.0
    %1777 = vmatpush2.xpose.msra.mxu0 0.0
    %1778 = vmatprep.subr.mxu0 0.0
    %1779 = vmatpush2.xpose.msra.mxu0 0.0
    %1780 = vmatprep.subr.mxu0 0.0
    %1781 = vmatpush2.xpose.msra.mxu0 0.0
    %1782 = vmatprep.subr.mxu0 0.0
    %1783 = vmatpush2.xpose.msra.mxu0 0.0
    %1784 = vmatprep.subr.mxu0 0.0
    %1785 = vmatpush2.xpose.msra.mxu0 0.0
    %1786 = vmatprep.subr.mxu0 0.0
    %1787 = vmatpush2.xpose.msra.mxu0 0.0
    %1788 = vmatprep.subr.mxu0 0.0
    %1789 = vmatpush2.xpose.msra.mxu0 0.0
    %1790 = vmatprep.subr.mxu0 0.0
    %1791 = vmatpush2.xpose.msra.mxu0 0.0
    %1792 = vmatprep.subr.mxu0 0.0
    %1793 = vmatpush2.xpose.msra.mxu0 0.0
    %1794 = vmatprep.subr.mxu0 0.0
    %1795 = vmatpush2.xpose.msra.mxu0 0.0
    %1796 = vmatprep.subr.mxu0 0.0
    %1797 = vmatpush2.xpose.msra.mxu0 0.0
    %1798 = vmatprep.subr.mxu0 0.0
    %1799 = vmatpush2.xpose.msra.mxu0 0.0
    %1800 = vmatprep.subr.mxu0 0.0
    %1801 = vmatpush2.xpose.msra.mxu0 0.0
    %1802 = vmatprep.subr.mxu0 0.0
    %1803 = vmatpush2.xpose.msra.mxu0 0.0
    %1804 = vmatprep.subr.mxu0 0.0
    %1805 = vmatpush2.xpose.msra.mxu0 0.0
    %1806 = vmatprep.mubr.f32.mxu0 0.0
    %1807 = vmatmul.mubr.f32.gmra.mxu0 %v1738
    %v1808 = vpop.f32.mrf.mxu0
    %v1809 = vadd.f32 0.0, %v1808
    %v1810 = vpop.f32.mrf.mxu0
    %1811 = vdwg.mxu0
    %1812 = vrot.lane.b32.xlu0 %v294, 32
    %v1813 = vpop.permute.xlu0 %1812
    %1814 = vrot.lane.b32.xlu0 %v392, 32
    %v1815 = vpop.permute.xlu0 %1814
    %v1816 = vsel %vm493, %v1813, 0
    %v1818 = vsel %vm493, %v1815, 0
    %1820 = vmatprep.subr.mxu0 0.0
    %1821 = vmatpush1.xpose.msra.mxu0 0.0
    %1822 = vmatprep.subr.mxu0 0.0
    %1823 = vmatpush1.xpose.msra.mxu0 0.0
    %1824 = vmatprep.subr.mxu0 0.0
    %1825 = vmatpush1.xpose.msra.mxu0 0.0
    %1826 = vmatprep.subr.mxu0 0.0
    %1827 = vmatpush1.xpose.msra.mxu0 0.0
    %1828 = vmatprep.subr.mxu0 0.0
    %1829 = vmatpush1.xpose.msra.mxu0 0.0
    %1830 = vmatprep.subr.mxu0 0.0
    %1831 = vmatpush1.xpose.msra.mxu0 0.0
    %1832 = vmatprep.subr.mxu0 0.0
    %1833 = vmatpush1.xpose.msra.mxu0 0.0
    %1834 = vmatprep.subr.mxu0 0.0
    %1835 = vmatpush1.xpose.msra.mxu0 0.0
    %1836 = vmatprep.subr.mxu0 0.0
    %1837 = vmatpush1.xpose.msra.mxu0 0.0
    %1838 = vmatprep.subr.mxu0 0.0
    %1839 = vmatpush1.xpose.msra.mxu0 0.0
    %1840 = vmatprep.subr.mxu0 0.0
    %1841 = vmatpush1.xpose.msra.mxu0 0.0
    %1842 = vmatprep.subr.mxu0 0.0
    %1843 = vmatpush1.xpose.msra.mxu0 0.0
    %1844 = vmatprep.subr.mxu0 0.0
    %1845 = vmatpush1.xpose.msra.mxu0 0.0
    %1846 = vmatprep.subr.mxu0 0.0
    %1847 = vmatpush1.xpose.msra.mxu0 0.0
    %1848 = vmatprep.subr.mxu0 0.0
    %1849 = vmatpush1.xpose.msra.mxu0 0.0
    %1850 = vmatprep.subr.mxu0 0.0
    %1851 = vmatpush1.xpose.msra.mxu0 %v1818
    %1852 = vmatprep.subr.mxu0 0.0
    %1853 = vmatpush2.xpose.msra.mxu0 0.0
    %1854 = vmatprep.subr.mxu0 0.0
    %1855 = vmatpush2.xpose.msra.mxu0 0.0
    %1856 = vmatprep.subr.mxu0 0.0
    %1857 = vmatpush2.xpose.msra.mxu0 0.0
    %1858 = vmatprep.subr.mxu0 0.0
    %1859 = vmatpush2.xpose.msra.mxu0 0.0
    %1860 = vmatprep.subr.mxu0 0.0
    %1861 = vmatpush2.xpose.msra.mxu0 0.0
    %1862 = vmatprep.subr.mxu0 0.0
    %1863 = vmatpush2.xpose.msra.mxu0 0.0
    %1864 = vmatprep.subr.mxu0 0.0
    %1865 = vmatpush2.xpose.msra.mxu0 0.0
    %1866 = vmatprep.subr.mxu0 0.0
    %1867 = vmatpush2.xpose.msra.mxu0 0.0
    %1868 = vmatprep.subr.mxu0 0.0
    %1869 = vmatpush2.xpose.msra.mxu0 0.0
    %1870 = vmatprep.subr.mxu0 0.0
    %1871 = vmatpush2.xpose.msra.mxu0 0.0
    %1872 = vmatprep.subr.mxu0 0.0
    %1873 = vmatpush2.xpose.msra.mxu0 0.0
    %1874 = vmatprep.subr.mxu0 0.0
    %1875 = vmatpush2.xpose.msra.mxu0 0.0
    %1876 = vmatprep.subr.mxu0 0.0
    %1877 = vmatpush2.xpose.msra.mxu0 0.0
    %1878 = vmatprep.subr.mxu0 0.0
    %1879 = vmatpush2.xpose.msra.mxu0 0.0
    %1880 = vmatprep.subr.mxu0 0.0
    %1881 = vmatpush2.xpose.msra.mxu0 0.0
    %1882 = vmatprep.subr.mxu0 0.0
    %1883 = vmatpush2.xpose.msra.mxu0 0.0
    %1884 = vmatprep.mubr.f32.mxu0 0.0
    %1885 = vmatmul.mubr.f32.gmra.mxu0 %v1816
    %v1886 = vpop.f32.mrf.mxu0
    %v1887 = vadd.f32 0.0, %v1886
    %v1888 = vpop.f32.mrf.mxu0
    %1889 = vdwg.mxu0
    %v1890 = vsel %vm646, %v1809, -inf
    %1891 = vmax.xlane.f32.xlu0 %v1890
    %v1892 = vpop.xlane.xlu0 %1891
    %v1893 = vsel %vm646, %v1887, -inf
    %1894 = vmax.xlane.f32.xlu0 %v1893
    %v1895 = vpop.xlane.xlu0 %1894
    %v1896 = vsub.f32 %v1809, %v1892
    %v1897 = vsub.f32 %v1887, %v1895
    %v1898 = vmul.f32 %v1896, 1.442695
    %v1899 = vpow.pop %v1898
    %v1900 = vmul.f32 %v1897, 1.442695
    %v1901 = vpow.pop %v1900
    %v1902 = vsel %vm646, %v1899, 0.0
    %1903 = vadd.xlane.f32.xlu0 %v1902
    %v1904 = vpop.xlane.xlu0 %1903
    %v1905 = vsel %vm646, %v1901, 0.0
    %1906 = vadd.xlane.f32.xlu0 %v1905
    %v1907 = vpop.xlane.xlu0 %1906
    %v1908 = vrcp.pop %v1904
    %v1909 = vrcp.pop %v1907
    %v1910 = vmul.f32 %v1899, %v1908
    %v1911 = vmul.f32 %v1901, %v1909
    %1912 = vrot.lane.b32.xlu0 %v485, 32
    %v1913 = vpop.permute.xlu0 %1912
    %v1916 = vsel %vm646, %v1910, 0
    %1918 = vmatprep.subr.mxu0 0.0
    %1919 = vmatpush1.msra.mxu0 0.0
    %1920 = vmatprep.subr.mxu0 0.0
    %1921 = vmatpush1.msra.mxu0 0.0
    %1922 = vmatprep.subr.mxu0 0.0
    %1923 = vmatpush1.msra.mxu0 0.0
    %1924 = vmatprep.subr.mxu0 0.0
    %1925 = vmatpush1.msra.mxu0 0.0
    %1926 = vmatprep.subr.mxu0 0.0
    %1927 = vmatpush1.msra.mxu0 0.0
    %1928 = vmatprep.subr.mxu0 0.0
    %1929 = vmatpush1.msra.mxu0 0.0
    %1930 = vmatprep.subr.mxu0 0.0
    %1931 = vmatpush1.msra.mxu0 0.0
    %1932 = vmatprep.subr.mxu0 0.0
    %1933 = vmatpush1.msra.mxu0 0.0
    %1934 = vmatprep.subr.mxu0 0.0
    %1935 = vmatpush1.msra.mxu0 0.0
    %1936 = vmatprep.subr.mxu0 0.0
    %1937 = vmatpush1.msra.mxu0 0.0
    %1938 = vmatprep.subr.mxu0 0.0
    %1939 = vmatpush1.msra.mxu0 0.0
    %1940 = vmatprep.subr.mxu0 0.0
    %1941 = vmatpush1.msra.mxu0 0.0
    %1942 = vmatprep.subr.mxu0 0.0
    %1943 = vmatpush1.msra.mxu0 0.0
    %1944 = vmatprep.subr.mxu0 0.0
    %1945 = vmatpush1.msra.mxu0 0.0
    %1946 = vmatprep.subr.mxu0 0.0
    %1947 = vmatpush1.msra.mxu0 0.0
    %1948 = vmatprep.subr.mxu0 0.0
    %1949 = vmatpush1.msra.mxu0 %v1913
    %1950 = vmatprep.subr.mxu0 0.0
    %1951 = vmatpush2.msra.mxu0 0.0
    %1952 = vmatprep.subr.mxu0 0.0
    %1953 = vmatpush2.msra.mxu0 0.0
    %1954 = vmatprep.subr.mxu0 0.0
    %1955 = vmatpush2.msra.mxu0 0.0
    %1956 = vmatprep.subr.mxu0 0.0
    %1957 = vmatpush2.msra.mxu0 0.0
    %1958 = vmatprep.subr.mxu0 0.0
    %1959 = vmatpush2.msra.mxu0 0.0
    %1960 = vmatprep.subr.mxu0 0.0
    %1961 = vmatpush2.msra.mxu0 0.0
    %1962 = vmatprep.subr.mxu0 0.0
    %1963 = vmatpush2.msra.mxu0 0.0
    %1964 = vmatprep.subr.mxu0 0.0
    %1965 = vmatpush2.msra.mxu0 0.0
    %1966 = vmatprep.subr.mxu0 0.0
    %1967 = vmatpush2.msra.mxu0 0.0
    %1968 = vmatprep.subr.mxu0 0.0
    %1969 = vmatpush2.msra.mxu0 0.0
    %1970 = vmatprep.subr.mxu0 0.0
    %1971 = vmatpush2.msra.mxu0 0.0
    %1972 = vmatprep.subr.mxu0 0.0
    %1973 = vmatpush2.msra.mxu0 0.0
    %1974 = vmatprep.subr.mxu0 0.0
    %1975 = vmatpush2.msra.mxu0 0.0
    %1976 = vmatprep.subr.mxu0 0.0
    %1977 = vmatpush2.msra.mxu0 0.0
    %1978 = vmatprep.subr.mxu0 0.0
    %1979 = vmatpush2.msra.mxu0 0.0
    %1980 = vmatprep.subr.mxu0 0.0
    %1981 = vmatpush2.msra.mxu0 0.0
    %1982 = vmatprep.mubr.f32.mxu0 0.0
    %1983 = vmatmul.mubr.f32.gmra.mxu0 %v1916
    %v1984 = vpop.f32.mrf.mxu0
    %v1985 = vadd.f32 0.0, %v1984
    %v1986 = vpop.f32.mrf.mxu0
    %1987 = vdwg.mxu0
    %1988 = vrot.lane.b32.xlu0 %v490, 32
    %v1989 = vpop.permute.xlu0 %1988
    %v1992 = vsel %vm646, %v1911, 0
    %1994 = vmatprep.subr.mxu0 0.0
    %1995 = vmatpush1.msra.mxu0 0.0
    %1996 = vmatprep.subr.mxu0 0.0
    %1997 = vmatpush1.msra.mxu0 0.0
    %1998 = vmatprep.subr.mxu0 0.0
    %1999 = vmatpush1.msra.mxu0 0.0
    %2000 = vmatprep.subr.mxu0 0.0
    %2001 = vmatpush1.msra.mxu0 0.0
    %2002 = vmatprep.subr.mxu0 0.0
    %2003 = vmatpush1.msra.mxu0 0.0
    %2004 = vmatprep.subr.mxu0 0.0
    %2005 = vmatpush1.msra.mxu0 0.0
    %2006 = vmatprep.subr.mxu0 0.0
    %2007 = vmatpush1.msra.mxu0 0.0
    %2008 = vmatprep.subr.mxu0 0.0
    %2009 = vmatpush1.msra.mxu0 0.0
    %2010 = vmatprep.subr.mxu0 0.0
    %2011 = vmatpush1.msra.mxu0 0.0
    %2012 = vmatprep.subr.mxu0 0.0
    %2013 = vmatpush1.msra.mxu0 0.0
    %2014 = vmatprep.subr.mxu0 0.0
    %2015 = vmatpush1.msra.mxu0 0.0
    %2016 = vmatprep.subr.mxu0 0.0
    %2017 = vmatpush1.msra.mxu0 0.0
    %2018 = vmatprep.subr.mxu0 0.0
    %2019 = vmatpush1.msra.mxu0 0.0
    %2020 = vmatprep.subr.mxu0 0.0
    %2021 = vmatpush1.msra.mxu0 0.0
    %2022 = vmatprep.subr.mxu0 0.0
    %2023 = vmatpush1.msra.mxu0 0.0
    %2024 = vmatprep.subr.mxu0 0.0
    %2025 = vmatpush1.msra.mxu0 %v1989
    %2026 = vmatprep.subr.mxu0 0.0
    %2027 = vmatpush2.msra.mxu0 0.0
    %2028 = vmatprep.subr.mxu0 0.0
    %2029 = vmatpush2.msra.mxu0 0.0
    %2030 = vmatprep.subr.mxu0 0.0
    %2031 = vmatpush2.msra.mxu0 0.0
    %2032 = vmatprep.subr.mxu0 0.0
    %2033 = vmatpush2.msra.mxu0 0.0
    %2034 = vmatprep.subr.mxu0 0.0
    %2035 = vmatpush2.msra.mxu0 0.0
    %2036 = vmatprep.subr.mxu0 0.0
    %2037 = vmatpush2.msra.mxu0 0.0
    %2038 = vmatprep.subr.mxu0 0.0
    %2039 = vmatpush2.msra.mxu0 0.0
    %2040 = vmatprep.subr.mxu0 0.0
    %2041 = vmatpush2.msra.mxu0 0.0
    %2042 = vmatprep.subr.mxu0 0.0
    %2043 = vmatpush2.msra.mxu0 0.0
    %2044 = vmatprep.subr.mxu0 0.0
    %2045 = vmatpush2.msra.mxu0 0.0
    %2046 = vmatprep.subr.mxu0 0.0
    %2047 = vmatpush2.msra.mxu0 0.0
    %2048 = vmatprep.subr.mxu0 0.0
    %2049 = vmatpush2.msra.mxu0 0.0
    %2050 = vmatprep.subr.mxu0 0.0
    %2051 = vmatpush2.msra.mxu0 0.0
    %2052 = vmatprep.subr.mxu0 0.0
    %2053 = vmatpush2.msra.mxu0 0.0
    %2054 = vmatprep.subr.mxu0 0.0
    %2055 = vmatpush2.msra.mxu0 0.0
    %2056 = vmatprep.subr.mxu0 0.0
    %2057 = vmatpush2.msra.mxu0 0.0
    %2058 = vmatprep.mubr.f32.mxu0 0.0
    %2059 = vmatmul.mubr.f32.gmra.mxu0 %v1992
    %v2060 = vpop.f32.mrf.mxu0
    %v2061 = vadd.f32 0.0, %v2060
    %v2062 = vpop.f32.mrf.mxu0
    %2063 = vdwg.mxu0
    %v2064 = vld [vmem:[#allocation10 + $0x60] sm:$0xff]
    %v2065 = vld [vmem:[#allocation10 + $0x68] sm:$0xff]
    %v2066 = vld [vmem:[#allocation10 + $0x70] sm:$0xff]
    %v2067 = vld [vmem:[#allocation10 + $0x78] sm:$0xff]
    %v2069 = vsel %vm493, %v1985, 0
    %v2072 = vsel %vm493, %v2061, 0
    %2074 = vmatprep.subr.mxu0 0.0
    %2075 = vmatpush1.msra.mxu0 0.0
    %2076 = vmatprep.subr.mxu0 0.0
    %2077 = vmatpush1.msra.mxu0 0.0
    %2078 = vmatprep.subr.mxu0 0.0
    %2079 = vmatpush1.msra.mxu0 0.0
    %2080 = vmatprep.subr.mxu0 0.0
    %2081 = vmatpush1.msra.mxu0 0.0
    %2082 = vmatprep.subr.mxu0 0.0
    %2083 = vmatpush1.msra.mxu0 0.0
    %2084 = vmatprep.subr.mxu0 0.0
    %2085 = vmatpush1.msra.mxu0 0.0
    %2086 = vmatprep.subr.mxu0 0.0
    %2087 = vmatpush1.msra.mxu0 0.0
    %2088 = vmatprep.subr.mxu0 0.0
    %2089 = vmatpush1.msra.mxu0 0.0
    %2090 = vmatprep.subr.mxu0 0.0
    %2091 = vmatpush1.msra.mxu0 0.0
    %2092 = vmatprep.subr.mxu0 0.0
    %2093 = vmatpush1.msra.mxu0 0.0
    %2094 = vmatprep.subr.mxu0 0.0
    %2095 = vmatpush1.msra.mxu0 0.0
    %2096 = vmatprep.subr.mxu0 0.0
    %2097 = vmatpush1.msra.mxu0 0.0
    %2098 = vmatprep.subr.mxu0 0.0
    %2099 = vmatpush1.msra.mxu0 %v2067
    %2100 = vmatprep.subr.mxu0 0.0
    %2101 = vmatpush1.msra.mxu0 %v2066
    %2102 = vmatprep.subr.mxu0 0.0
    %2103 = vmatpush1.msra.mxu0 %v2065
    %2104 = vmatprep.subr.mxu0 0.0
    %2105 = vmatpush1.msra.mxu0 %v2064
    %2106 = vmatprep.subr.mxu0 0.0
    %2107 = vmatpush2.msra.mxu0 0.0
    %2108 = vmatprep.subr.mxu0 0.0
    %2109 = vmatpush2.msra.mxu0 0.0
    %2110 = vmatprep.subr.mxu0 0.0
    %2111 = vmatpush2.msra.mxu0 0.0
    %2112 = vmatprep.subr.mxu0 0.0
    %2113 = vmatpush2.msra.mxu0 0.0
    %2114 = vmatprep.subr.mxu0 0.0
    %2115 = vmatpush2.msra.mxu0 0.0
    %2116 = vmatprep.subr.mxu0 0.0
    %2117 = vmatpush2.msra.mxu0 0.0
    %2118 = vmatprep.subr.mxu0 0.0
    %2119 = vmatpush2.msra.mxu0 0.0
    %2120 = vmatprep.subr.mxu0 0.0
    %2121 = vmatpush2.msra.mxu0 0.0
    %2122 = vmatprep.subr.mxu0 0.0
    %2123 = vmatpush2.msra.mxu0 0.0
    %2124 = vmatprep.subr.mxu0 0.0
    %2125 = vmatpush2.msra.mxu0 0.0
    %2126 = vmatprep.subr.mxu0 0.0
    %2127 = vmatpush2.msra.mxu0 0.0
    %2128 = vmatprep.subr.mxu0 0.0
    %2129 = vmatpush2.msra.mxu0 0.0
    %2130 = vmatprep.subr.mxu0 0.0
    %2131 = vmatpush2.msra.mxu0 0.0
    %2132 = vmatprep.subr.mxu0 0.0
    %2133 = vmatpush2.msra.mxu0 0.0
    %2134 = vmatprep.subr.mxu0 0.0
    %2135 = vmatpush2.msra.mxu0 0.0
    %2136 = vmatprep.subr.mxu0 0.0
    %2137 = vmatpush2.msra.mxu0 0.0
    %2138 = vmatprep.mubr.f32.mxu0 0.0
    %2139 = vmatmul.mubr.f32.gmra.mxu0 %v2069
    %v2140 = vpop.f32.mrf.mxu0
    %v2141 = vadd.f32 0.0, %v2140
    %v2142 = vpop.f32.mrf.mxu0
    %2143 = vmatprep.mubr.f32.mxu0 0.0
    %2144 = vmatmul.mubr.f32.gmra.mxu0 %v2072
    %v2145 = vpop.f32.mrf.mxu0
    %v2146 = vadd.f32 0.0, %v2145
    %v2147 = vpop.f32.mrf.mxu0
    %2148 = vdwg.mxu0
    %v2149 = vadd.f32 %v1732, %v2141
    %v2150 = vadd.f32 %v1733, %v2146
    %v2151 = vadd.f32 %v152, %v2149
    %v2152 = vadd.f32 %v153, %v2150
    %v2153 = vld [vmem:[%s10] sm:$0x1]
    %v2155 = vlaneseq
    %v2156 = vshrl.u32 %v2155, 7
    %v2157 = vsub.s32 0, %v2156
    %v2158 = vrot.slane %v2153, %v2157
    %v2160 = vadd.f32 %v2151, %v2158
    %v2161 = vadd.f32 %v2152, %v2158
    %v2162 = vld [vmem:[%s11] sm:$0x1]
    %v2163 = vld [vmem:[%s12] sm:$0x1]
    %2164 = vadd.xlane.f32.xlu0 %v2160
    %v2165 = vpop.xlane.xlu0 %2164
    %2166 = vadd.xlane.f32.xlu0 %v2161
    %v2167 = vpop.xlane.xlu0 %2166
    %v2168 = vmul.f32 %v2165, %v160
    %v2169 = vmul.f32 %v2167, %v160
    %v2170 = vmul.f32 %v2160, %v2160
    %v2171 = vmul.f32 %v2161, %v2161
    %2172 = vadd.xlane.f32.xlu0 %v2170
    %v2173 = vpop.xlane.xlu0 %2172
    %2174 = vadd.xlane.f32.xlu0 %v2171
    %v2175 = vpop.xlane.xlu0 %2174
    %v2176 = vmul.f32 %v2173, %v160
    %v2177 = vmul.f32 %v2175, %v160
    %v2178 = vmul.f32 %v2168, %v2168
    %v2179 = vmul.f32 %v2169, %v2169
    %v2180 = vsub.f32 %v2176, %v2178
    %v2181 = vsub.f32 %v2177, %v2179
    %v2182 = vsub.f32 %v2160, %v2168
    %v2183 = vsub.f32 %v2161, %v2169
    %v2184 = vadd.f32 %v2180, 1e-05
    %v2185 = vadd.f32 %v2181, 1e-05
    %v2186 = vrsqrt.pop %v2184
    %v2187 = vrsqrt.pop %v2185
    %v2188 = vmul.f32 %v2182, %v2186
    %v2189 = vmul.f32 %v2183, %v2187
    %v2191 = vlaneseq
    %v2192 = vshrl.u32 %v2191, 7
    %v2193 = vsub.s32 0, %v2192
    %v2194 = vrot.slane %v2162, %v2193
    %v2196 = vmul.f32 %v2188, %v2194
    %v2197 = vmul.f32 %v2189, %v2194
    %v2199 = vlaneseq
    %v2200 = vshrl.u32 %v2199, 7
    %v2201 = vsub.s32 0, %v2200
    %v2202 = vrot.slane %v2163, %v2201
    %v2204 = vadd.f32 %v2196, %v2202
    %v2205 = vadd.f32 %v2197, %v2202
    %v2206 = vld [vmem:[#allocation11] sm:$0xff]
    %v2207 = vld [vmem:[#allocation11 + $0x8] sm:$0xff]
    %v2208 = vld [vmem:[#allocation11 + $0x10] sm:$0xff]
    %v2209 = vld [vmem:[#allocation11 + $0x18] sm:$0xff]
    %v2210 = vld [vmem:[#allocation11 + $0x20] sm:$0xff]
    %v2211 = vld [vmem:[#allocation11 + $0x28] sm:$0xff]
    %v2212 = vld [vmem:[#allocation11 + $0x30] sm:$0xff]
    %v2213 = vld [vmem:[#allocation11 + $0x38] sm:$0xff]
    %v2214 = vld [vmem:[#allocation11 + $0x40] sm:$0xff]
    %v2215 = vld [vmem:[#allocation11 + $0x48] sm:$0xff]
    %v2216 = vld [vmem:[#allocation11 + $0x50] sm:$0xff]
    %v2217 = vld [vmem:[#allocation11 + $0x58] sm:$0xff]
    %v2218 = vld [vmem:[#allocation11 + $0x60] sm:$0xff]
    %v2219 = vld [vmem:[#allocation11 + $0x68] sm:$0xff]
    %v2220 = vld [vmem:[#allocation11 + $0x70] sm:$0xff]
    %v2221 = vld [vmem:[#allocation11 + $0x78] sm:$0xff]
    %v2222 = vld [vmem:[#allocation11 + $0x80] sm:$0xff]
    %v2223 = vld [vmem:[#allocation11 + $0x88] sm:$0xff]
    %v2224 = vld [vmem:[#allocation11 + $0x90] sm:$0xff]
    %v2225 = vld [vmem:[#allocation11 + $0x98] sm:$0xff]
    %v2226 = vld [vmem:[#allocation11 + $0xa0] sm:$0xff]
    %v2227 = vld [vmem:[#allocation11 + $0xa8] sm:$0xff]
    %v2228 = vld [vmem:[#allocation11 + $0xb0] sm:$0xff]
    %v2229 = vld [vmem:[#allocation11 + $0xb8] sm:$0xff]
    %v2230 = vld [vmem:[#allocation11 + $0xc0] sm:$0xff]
    %v2231 = vld [vmem:[#allocation11 + $0xc8] sm:$0xff]
    %v2232 = vld [vmem:[#allocation11 + $0xd0] sm:$0xff]
    %v2233 = vld [vmem:[#allocation11 + $0xd8] sm:$0xff]
    %v2234 = vld [vmem:[#allocation11 + $0xe0] sm:$0xff]
    %v2235 = vld [vmem:[#allocation11 + $0xe8] sm:$0xff]
    %v2236 = vld [vmem:[#allocation11 + $0xf0] sm:$0xff]
    %v2237 = vld [vmem:[#allocation11 + $0xf8] sm:$0xff]
    %v2238 = vld [vmem:[#allocation11 + $0x100] sm:$0xff]
    %v2239 = vld [vmem:[#allocation11 + $0x108] sm:$0xff]
    %v2240 = vld [vmem:[#allocation11 + $0x110] sm:$0xff]
    %v2241 = vld [vmem:[#allocation11 + $0x118] sm:$0xff]
    %v2242 = vld [vmem:[#allocation11 + $0x120] sm:$0xff]
    %v2243 = vld [vmem:[#allocation11 + $0x128] sm:$0xff]
    %v2244 = vld [vmem:[#allocation11 + $0x130] sm:$0xff]
    %v2245 = vld [vmem:[#allocation11 + $0x138] sm:$0xff]
    %v2246 = vld [vmem:[#allocation11 + $0x140] sm:$0xff]
    %v2247 = vld [vmem:[#allocation11 + $0x148] sm:$0xff]
    %v2248 = vld [vmem:[#allocation11 + $0x150] sm:$0xff]
    %v2249 = vld [vmem:[#allocation11 + $0x158] sm:$0xff]
    %v2250 = vld [vmem:[#allocation11 + $0x160] sm:$0xff]
    %v2251 = vld [vmem:[#allocation11 + $0x168] sm:$0xff]
    %v2252 = vld [vmem:[#allocation11 + $0x170] sm:$0xff]
    %v2253 = vld [vmem:[#allocation11 + $0x178] sm:$0xff]
    %v2254 = vld [vmem:[#allocation11 + $0x180] sm:$0xff]
    %v2255 = vld [vmem:[#allocation11 + $0x188] sm:$0xff]
    %v2256 = vld [vmem:[#allocation11 + $0x190] sm:$0xff]
    %v2257 = vld [vmem:[#allocation11 + $0x198] sm:$0xff]
    %v2258 = vld [vmem:[#allocation11 + $0x1a0] sm:$0xff]
    %v2259 = vld [vmem:[#allocation11 + $0x1a8] sm:$0xff]
    %v2260 = vld [vmem:[#allocation11 + $0x1b0] sm:$0xff]
    %v2261 = vld [vmem:[#allocation11 + $0x1b8] sm:$0xff]
    %v2262 = vld [vmem:[#allocation11 + $0x1c0] sm:$0xff]
    %v2263 = vld [vmem:[#allocation11 + $0x1c8] sm:$0xff]
    %v2264 = vld [vmem:[#allocation11 + $0x1d0] sm:$0xff]
    %v2265 = vld [vmem:[#allocation11 + $0x1d8] sm:$0xff]
    %v2266 = vld [vmem:[#allocation11 + $0x1e0] sm:$0xff]
    %v2267 = vld [vmem:[#allocation11 + $0x1e8] sm:$0xff]
    %v2268 = vld [vmem:[#allocation11 + $0x1f0] sm:$0xff]
    %v2269 = vld [vmem:[#allocation11 + $0x1f8] sm:$0xff]
    %v2270 = vld [vmem:[%s14] sm:$0xf]
    %v2272 = vlaneseq
    %v2273 = vshrl.u32 %v2272, 7
    %v2274 = vsub.s32 0, %v2273
    %v2275 = vrot.slane %v2270, %v2274
    %v2276 = vlaneseq
    %v2277 = vshrl.u32 %v2276, 7
    %v2278 = vsub.s32 1, %v2277
    %v2279 = vrot.slane %v2270, %v2278
    %v2280 = vlaneseq
    %v2281 = vshrl.u32 %v2280, 7
    %v2282 = vsub.s32 2, %v2281
    %v2283 = vrot.slane %v2270, %v2282
    %v2284 = vlaneseq
    %v2285 = vshrl.u32 %v2284, 7
    %v2286 = vsub.s32 3, %v2285
    %v2287 = vrot.slane %v2270, %v2286
    %2292 = vmatprep.subr.mxu0 %v2267
    %2293 = vmatpush1.msra.mxu0 %v2266
    %2294 = vmatprep.subr.mxu0 %v2263
    %2295 = vmatpush1.msra.mxu0 %v2262
    %2296 = vmatprep.subr.mxu0 %v2259
    %2297 = vmatpush1.msra.mxu0 %v2258
    %2298 = vmatprep.subr.mxu0 %v2255
    %2299 = vmatpush1.msra.mxu0 %v2254
    %2300 = vmatprep.subr.mxu0 %v2251
    %2301 = vmatpush1.msra.mxu0 %v2250
    %2302 = vmatprep.subr.mxu0 %v2247
    %2303 = vmatpush1.msra.mxu0 %v2246
    %2304 = vmatprep.subr.mxu0 %v2243
    %2305 = vmatpush1.msra.mxu0 %v2242
    %2306 = vmatprep.subr.mxu0 %v2239
    %2307 = vmatpush1.msra.mxu0 %v2238
    %2308 = vmatprep.subr.mxu0 %v2235
    %2309 = vmatpush1.msra.mxu0 %v2234
    %2310 = vmatprep.subr.mxu0 %v2231
    %2311 = vmatpush1.msra.mxu0 %v2230
    %2312 = vmatprep.subr.mxu0 %v2227
    %2313 = vmatpush1.msra.mxu0 %v2226
    %2314 = vmatprep.subr.mxu0 %v2223
    %2315 = vmatpush1.msra.mxu0 %v2222
    %2316 = vmatprep.subr.mxu0 %v2219
    %2317 = vmatpush1.msra.mxu0 %v2218
    %2318 = vmatprep.subr.mxu0 %v2215
    %2319 = vmatpush1.msra.mxu0 %v2214
    %2320 = vmatprep.subr.mxu0 %v2211
    %2321 = vmatpush1.msra.mxu0 %v2210
    %2322 = vmatprep.subr.mxu0 %v2207
    %2323 = vmatpush1.msra.mxu0 %v2206
    %2324 = vmatprep.subr.mxu0 0.0
    %2325 = vmatpush2.msra.mxu0 0.0
    %2326 = vmatprep.subr.mxu0 0.0
    %2327 = vmatpush2.msra.mxu0 0.0
    %2328 = vmatprep.subr.mxu0 0.0
    %2329 = vmatpush2.msra.mxu0 0.0
    %2330 = vmatprep.subr.mxu0 0.0
    %2331 = vmatpush2.msra.mxu0 0.0
    %2332 = vmatprep.subr.mxu0 0.0
    %2333 = vmatpush2.msra.mxu0 0.0
    %2334 = vmatprep.subr.mxu0 0.0
    %2335 = vmatpush2.msra.mxu0 0.0
    %2336 = vmatprep.subr.mxu0 0.0
    %2337 = vmatpush2.msra.mxu0 0.0
    %2338 = vmatprep.subr.mxu0 0.0
    %2339 = vmatpush2.msra.mxu0 0.0
    %2340 = vmatprep.subr.mxu0 0.0
    %2341 = vmatpush2.msra.mxu0 0.0
    %2342 = vmatprep.subr.mxu0 0.0
    %2343 = vmatpush2.msra.mxu0 0.0
    %2344 = vmatprep.subr.mxu0 0.0
    %2345 = vmatpush2.msra.mxu0 0.0
    %2346 = vmatprep.subr.mxu0 0.0
    %2347 = vmatpush2.msra.mxu0 0.0
    %2348 = vmatprep.subr.mxu0 0.0
    %2349 = vmatpush2.msra.mxu0 0.0
    %2350 = vmatprep.subr.mxu0 0.0
    %2351 = vmatpush2.msra.mxu0 0.0
    %2352 = vmatprep.subr.mxu0 0.0
    %2353 = vmatpush2.msra.mxu0 0.0
    %2354 = vmatprep.subr.mxu0 0.0
    %2355 = vmatpush2.msra.mxu0 0.0
    %2356 = vmatprep.mubr.f32.mxu0 0.0
    %2357 = vmatmul.mubr.f32.gmra.mxu0 %v2204
    %v2358 = vpop.f32.mrf.mxu0
    %v2359 = vadd.f32 %v2275, %v2358
    %v2360 = vpop.f32.mrf.mxu0
    %v2361 = vadd.f32 %v2279, %v2360
    %2362 = vmatprep.mubr.f32.mxu0 0.0
    %2363 = vmatmul.mubr.f32.gmra.mxu0 %v2205
    %v2364 = vpop.f32.mrf.mxu0
    %v2365 = vadd.f32 %v2275, %v2364
    %v2366 = vpop.f32.mrf.mxu0
    %v2367 = vadd.f32 %v2279, %v2366
    %2368 = vdwg.mxu0
    %2369 = vmatprep.subr.mxu0 %v2269
    %2370 = vmatpush1.msra.mxu0 %v2268
    %2371 = vmatprep.subr.mxu0 %v2265
    %2372 = vmatpush1.msra.mxu0 %v2264
    %2373 = vmatprep.subr.mxu0 %v2261
    %2374 = vmatpush1.msra.mxu0 %v2260
    %2375 = vmatprep.subr.mxu0 %v2257
    %2376 = vmatpush1.msra.mxu0 %v2256
    %2377 = vmatprep.subr.mxu0 %v2253
    %2378 = vmatpush1.msra.mxu0 %v2252
    %2379 = vmatprep.subr.mxu0 %v2249
    %2380 = vmatpush1.msra.mxu0 %v2248
    %2381 = vmatprep.subr.mxu0 %v2245
    %2382 = vmatpush1.msra.mxu0 %v2244
    %2383 = vmatprep.subr.mxu0 %v2241
    %2384 = vmatpush1.msra.mxu0 %v2240
    %2385 = vmatprep.subr.mxu0 %v2237
    %2386 = vmatpush1.msra.mxu0 %v2236
    %2387 = vmatprep.subr.mxu0 %v2233
    %2388 = vmatpush1.msra.mxu0 %v2232
    %2389 = vmatprep.subr.mxu0 %v2229
    %2390 = vmatpush1.msra.mxu0 %v2228
    %2391 = vmatprep.subr.mxu0 %v2225
    %2392 = vmatpush1.msra.mxu0 %v2224
    %2393 = vmatprep.subr.mxu0 %v2221
    %2394 = vmatpush1.msra.mxu0 %v2220
    %2395 = vmatprep.subr.mxu0 %v2217
    %2396 = vmatpush1.msra.mxu0 %v2216
    %2397 = vmatprep.subr.mxu0 %v2213
    %2398 = vmatpush1.msra.mxu0 %v2212
    %2399 = vmatprep.subr.mxu0 %v2209
    %2400 = vmatpush1.msra.mxu0 %v2208
    %2401 = vmatprep.subr.mxu0 0.0
    %2402 = vmatpush2.msra.mxu0 0.0
    %2403 = vmatprep.subr.mxu0 0.0
    %2404 = vmatpush2.msra.mxu0 0.0
    %2405 = vmatprep.subr.mxu0 0.0
    %2406 = vmatpush2.msra.mxu0 0.0
    %2407 = vmatprep.subr.mxu0 0.0
    %2408 = vmatpush2.msra.mxu0 0.0
    %2409 = vmatprep.subr.mxu0 0.0
    %2410 = vmatpush2.msra.mxu0 0.0
    %2411 = vmatprep.subr.mxu0 0.0
    %2412 = vmatpush2.msra.mxu0 0.0
    %2413 = vmatprep.subr.mxu0 0.0
    %2414 = vmatpush2.msra.mxu0 0.0
    %2415 = vmatprep.subr.mxu0 0.0
    %2416 = vmatpush2.msra.mxu0 0.0
    %2417 = vmatprep.subr.mxu0 0.0
    %2418 = vmatpush2.msra.mxu0 0.0
    %2419 = vmatprep.subr.mxu0 0.0
    %2420 = vmatpush2.msra.mxu0 0.0
    %2421 = vmatprep.subr.mxu0 0.0
    %2422 = vmatpush2.msra.mxu0 0.0
    %2423 = vmatprep.subr.mxu0 0.0
    %2424 = vmatpush2.msra.mxu0 0.0
    %2425 = vmatprep.subr.mxu0 0.0
    %2426 = vmatpush2.msra.mxu0 0.0
    %2427 = vmatprep.subr.mxu0 0.0
    %2428 = vmatpush2.msra.mxu0 0.0
    %2429 = vmatprep.subr.mxu0 0.0
    %2430 = vmatpush2.msra.mxu0 0.0
    %2431 = vmatprep.subr.mxu0 0.0
    %2432 = vmatpush2.msra.mxu0 0.0
    %2433 = vmatprep.mubr.f32.mxu0 0.0
    %2434 = vmatmul.mubr.f32.gmra.mxu0 %v2204
    %v2435 = vpop.f32.mrf.mxu0
    %v2436 = vadd.f32 %v2283, %v2435
    %v2437 = vpop.f32.mrf.mxu0
    %v2438 = vadd.f32 %v2287, %v2437
    %2439 = vmatprep.mubr.f32.mxu0 0.0
    %2440 = vmatmul.mubr.f32.gmra.mxu0 %v2205
    %v2441 = vpop.f32.mrf.mxu0
    %v2442 = vadd.f32 %v2283, %v2441
    %v2443 = vpop.f32.mrf.mxu0
    %v2444 = vadd.f32 %v2287, %v2443
    %2445 = vdwg.mxu0
    %v2446 = vmax.f32 %v2359, 0.0
    %v2447 = vmax.f32 %v2361, 0.0
    %v2448 = vmax.f32 %v2436, 0.0
    %v2449 = vmax.f32 %v2438, 0.0
    %v2450 = vmax.f32 %v2365, 0.0
    %v2451 = vmax.f32 %v2367, 0.0
    %v2452 = vmax.f32 %v2442, 0.0
    %v2453 = vmax.f32 %v2444, 0.0
    %v2454 = vld [vmem:[#allocation13] sm:$0xff]
    %v2455 = vld [vmem:[#allocation13 + $0x8] sm:$0xff]
    %v2456 = vld [vmem:[#allocation13 + $0x10] sm:$0xff]
    %v2457 = vld [vmem:[#allocation13 + $0x18] sm:$0xff]
    %v2458 = vld [vmem:[#allocation13 + $0x20] sm:$0xff]
    %v2459 = vld [vmem:[#allocation13 + $0x28] sm:$0xff]
    %v2460 = vld [vmem:[#allocation13 + $0x30] sm:$0xff]
    %v2461 = vld [vmem:[#allocation13 + $0x38] sm:$0xff]
    %v2462 = vld [vmem:[#allocation13 + $0x40] sm:$0xff]
    %v2463 = vld [vmem:[#allocation13 + $0x48] sm:$0xff]
    %v2464 = vld [vmem:[#allocation13 + $0x50] sm:$0xff]
    %v2465 = vld [vmem:[#allocation13 + $0x58] sm:$0xff]
    %v2466 = vld [vmem:[#allocation13 + $0x60] sm:$0xff]
    %v2467 = vld [vmem:[#allocation13 + $0x68] sm:$0xff]
    %v2468 = vld [vmem:[#allocation13 + $0x70] sm:$0xff]
    %v2469 = vld [vmem:[#allocation13 + $0x78] sm:$0xff]
    %v2470 = vld [vmem:[#allocation13 + $0x80] sm:$0xff]
    %v2471 = vld [vmem:[#allocation13 + $0x88] sm:$0xff]
    %v2472 = vld [vmem:[#allocation13 + $0x90] sm:$0xff]
    %v2473 = vld [vmem:[#allocation13 + $0x98] sm:$0xff]
    %v2474 = vld [vmem:[#allocation13 + $0xa0] sm:$0xff]
    %v2475 = vld [vmem:[#allocation13 + $0xa8] sm:$0xff]
    %v2476 = vld [vmem:[#allocation13 + $0xb0] sm:$0xff]
    %v2477 = vld [vmem:[#allocation13 + $0xb8] sm:$0xff]
    %v2478 = vld [vmem:[#allocation13 + $0xc0] sm:$0xff]
    %v2479 = vld [vmem:[#allocation13 + $0xc8] sm:$0xff]
    %v2480 = vld [vmem:[#allocation13 + $0xd0] sm:$0xff]
    %v2481 = vld [vmem:[#allocation13 + $0xd8] sm:$0xff]
    %v2482 = vld [vmem:[#allocation13 + $0xe0] sm:$0xff]
    %v2483 = vld [vmem:[#allocation13 + $0xe8] sm:$0xff]
    %v2484 = vld [vmem:[#allocation13 + $0xf0] sm:$0xff]
    %v2485 = vld [vmem:[#allocation13 + $0xf8] sm:$0xff]
    %v2486 = vld [vmem:[#allocation13 + $0x100] sm:$0xff]
    %v2487 = vld [vmem:[#allocation13 + $0x108] sm:$0xff]
    %v2488 = vld [vmem:[#allocation13 + $0x110] sm:$0xff]
    %v2489 = vld [vmem:[#allocation13 + $0x118] sm:$0xff]
    %v2490 = vld [vmem:[#allocation13 + $0x120] sm:$0xff]
    %v2491 = vld [vmem:[#allocation13 + $0x128] sm:$0xff]
    %v2492 = vld [vmem:[#allocation13 + $0x130] sm:$0xff]
    %v2493 = vld [vmem:[#allocation13 + $0x138] sm:$0xff]
    %v2494 = vld [vmem:[#allocation13 + $0x140] sm:$0xff]
    %v2495 = vld [vmem:[#allocation13 + $0x148] sm:$0xff]
    %v2496 = vld [vmem:[#allocation13 + $0x150] sm:$0xff]
    %v2497 = vld [vmem:[#allocation13 + $0x158] sm:$0xff]
    %v2498 = vld [vmem:[#allocation13 + $0x160] sm:$0xff]
    %v2499 = vld [vmem:[#allocation13 + $0x168] sm:$0xff]
    %v2500 = vld [vmem:[#allocation13 + $0x170] sm:$0xff]
    %v2501 = vld [vmem:[#allocation13 + $0x178] sm:$0xff]
    %v2502 = vld [vmem:[#allocation13 + $0x180] sm:$0xff]
    %v2503 = vld [vmem:[#allocation13 + $0x188] sm:$0xff]
    %v2504 = vld [vmem:[#allocation13 + $0x190] sm:$0xff]
    %v2505 = vld [vmem:[#allocation13 + $0x198] sm:$0xff]
    %v2506 = vld [vmem:[#allocation13 + $0x1a0] sm:$0xff]
    %v2507 = vld [vmem:[#allocation13 + $0x1a8] sm:$0xff]
    %v2508 = vld [vmem:[#allocation13 + $0x1b0] sm:$0xff]
    %v2509 = vld [vmem:[#allocation13 + $0x1b8] sm:$0xff]
    %v2510 = vld [vmem:[#allocation13 + $0x1c0] sm:$0xff]
    %v2511 = vld [vmem:[#allocation13 + $0x1c8] sm:$0xff]
    %v2512 = vld [vmem:[#allocation13 + $0x1d0] sm:$0xff]
    %v2513 = vld [vmem:[#allocation13 + $0x1d8] sm:$0xff]
    %v2514 = vld [vmem:[#allocation13 + $0x1e0] sm:$0xff]
    %v2515 = vld [vmem:[#allocation13 + $0x1e8] sm:$0xff]
    %v2516 = vld [vmem:[#allocation13 + $0x1f0] sm:$0xff]
    %v2517 = vld [vmem:[#allocation13 + $0x1f8] sm:$0xff]
    %v2518 = vld [vmem:[%s16] sm:$0x1]
    %v2520 = vlaneseq
    %v2521 = vshrl.u32 %v2520, 7
    %v2522 = vsub.s32 0, %v2521
    %v2523 = vrot.slane %v2518, %v2522
    %2525 = vmatprep.subr.mxu0 0.0
    %2526 = vmatpush1.msra.mxu0 %v2469
    %2527 = vmatprep.subr.mxu0 0.0
    %2528 = vmatpush1.msra.mxu0 %v2468
    %2529 = vmatprep.subr.mxu0 0.0
    %2530 = vmatpush1.msra.mxu0 %v2467
    %2531 = vmatprep.subr.mxu0 0.0
    %2532 = vmatpush1.msra.mxu0 %v2466
    %2533 = vmatprep.subr.mxu0 0.0
    %2534 = vmatpush1.msra.mxu0 %v2465
    %2535 = vmatprep.subr.mxu0 0.0
    %2536 = vmatpush1.msra.mxu0 %v2464
    %2537 = vmatprep.subr.mxu0 0.0
    %2538 = vmatpush1.msra.mxu0 %v2463
    %2539 = vmatprep.subr.mxu0 0.0
    %2540 = vmatpush1.msra.mxu0 %v2462
    %2541 = vmatprep.subr.mxu0 0.0
    %2542 = vmatpush1.msra.mxu0 %v2461
    %2543 = vmatprep.subr.mxu0 0.0
    %2544 = vmatpush1.msra.mxu0 %v2460
    %2545 = vmatprep.subr.mxu0 0.0
    %2546 = vmatpush1.msra.mxu0 %v2459
    %2547 = vmatprep.subr.mxu0 0.0
    %2548 = vmatpush1.msra.mxu0 %v2458
    %2549 = vmatprep.subr.mxu0 0.0
    %2550 = vmatpush1.msra.mxu0 %v2457
    %2551 = vmatprep.subr.mxu0 0.0
    %2552 = vmatpush1.msra.mxu0 %v2456
    %2553 = vmatprep.subr.mxu0 0.0
    %2554 = vmatpush1.msra.mxu0 %v2455
    %2555 = vmatprep.subr.mxu0 0.0
    %2556 = vmatpush1.msra.mxu0 %v2454
    %2557 = vmatprep.subr.mxu0 0.0
    %2558 = vmatpush2.msra.mxu0 %v2485
    %2559 = vmatprep.subr.mxu0 0.0
    %2560 = vmatpush2.msra.mxu0 %v2484
    %2561 = vmatprep.subr.mxu0 0.0
    %2562 = vmatpush2.msra.mxu0 %v2483
    %2563 = vmatprep.subr.mxu0 0.0
    %2564 = vmatpush2.msra.mxu0 %v2482
    %2565 = vmatprep.subr.mxu0 0.0
    %2566 = vmatpush2.msra.mxu0 %v2481
    %2567 = vmatprep.subr.mxu0 0.0
    %2568 = vmatpush2.msra.mxu0 %v2480
    %2569 = vmatprep.subr.mxu0 0.0
    %2570 = vmatpush2.msra.mxu0 %v2479
    %2571 = vmatprep.subr.mxu0 0.0
    %2572 = vmatpush2.msra.mxu0 %v2478
    %2573 = vmatprep.subr.mxu0 0.0
    %2574 = vmatpush2.msra.mxu0 %v2477
    %2575 = vmatprep.subr.mxu0 0.0
    %2576 = vmatpush2.msra.mxu0 %v2476
    %2577 = vmatprep.subr.mxu0 0.0
    %2578 = vmatpush2.msra.mxu0 %v2475
    %2579 = vmatprep.subr.mxu0 0.0
    %2580 = vmatpush2.msra.mxu0 %v2474
    %2581 = vmatprep.subr.mxu0 0.0
    %2582 = vmatpush2.msra.mxu0 %v2473
    %2583 = vmatprep.subr.mxu0 0.0
    %2584 = vmatpush2.msra.mxu0 %v2472
    %2585 = vmatprep.subr.mxu0 0.0
    %2586 = vmatpush2.msra.mxu0 %v2471
    %2587 = vmatprep.subr.mxu0 0.0
    %2588 = vmatpush2.msra.mxu0 %v2470
    %2589 = vmatprep.mubr.f32.mxu0 %v2447
    %2590 = vmatmul.mubr.f32.gmra.mxu0 %v2446
    %v2591 = vpop.f32.mrf.mxu0
    %v2592 = vadd.f32 %v2523, %v2591
    %v2593 = vpop.f32.mrf.mxu0
    %2594 = vmatprep.mubr.f32.mxu0 %v2451
    %2595 = vmatmul.mubr.f32.gmra.mxu0 %v2450
    %v2596 = vpop.f32.mrf.mxu0
    %v2597 = vadd.f32 %v2523, %v2596
    %v2598 = vpop.f32.mrf.mxu0
    %2599 = vdwg.mxu0
    %2600 = vmatprep.subr.mxu0 0.0
    %2601 = vmatpush1.msra.mxu0 %v2501
    %2602 = vmatprep.subr.mxu0 0.0
    %2603 = vmatpush1.msra.mxu0 %v2500
    %2604 = vmatprep.subr.mxu0 0.0
    %2605 = vmatpush1.msra.mxu0 %v2499
    %2606 = vmatprep.subr.mxu0 0.0
    %2607 = vmatpush1.msra.mxu0 %v2498
    %2608 = vmatprep.subr.mxu0 0.0
    %2609 = vmatpush1.msra.mxu0 %v2497
    %2610 = vmatprep.subr.mxu0 0.0
    %2611 = vmatpush1.msra.mxu0 %v2496
    %2612 = vmatprep.subr.mxu0 0.0
    %2613 = vmatpush1.msra.mxu0 %v2495
    %2614 = vmatprep.subr.mxu0 0.0
    %2615 = vmatpush1.msra.mxu0 %v2494
    %2616 = vmatprep.subr.mxu0 0.0
    %2617 = vmatpush1.msra.mxu0 %v2493
    %2618 = vmatprep.subr.mxu0 0.0
    %2619 = vmatpush1.msra.mxu0 %v2492
    %2620 = vmatprep.subr.mxu0 0.0
    %2621 = vmatpush1.msra.mxu0 %v2491
    %2622 = vmatprep.subr.mxu0 0.0
    %2623 = vmatpush1.msra.mxu0 %v2490
    %2624 = vmatprep.subr.mxu0 0.0
    %2625 = vmatpush1.msra.mxu0 %v2489
    %2626 = vmatprep.subr.mxu0 0.0
    %2627 = vmatpush1.msra.mxu0 %v2488
    %2628 = vmatprep.subr.mxu0 0.0
    %2629 = vmatpush1.msra.mxu0 %v2487
    %2630 = vmatprep.subr.mxu0 0.0
    %2631 = vmatpush1.msra.mxu0 %v2486
    %2632 = vmatprep.subr.mxu0 0.0
    %2633 = vmatpush2.msra.mxu0 %v2517
    %2634 = vmatprep.subr.mxu0 0.0
    %2635 = vmatpush2.msra.mxu0 %v2516
    %2636 = vmatprep.subr.mxu0 0.0
    %2637 = vmatpush2.msra.mxu0 %v2515
    %2638 = vmatprep.subr.mxu0 0.0
    %2639 = vmatpush2.msra.mxu0 %v2514
    %2640 = vmatprep.subr.mxu0 0.0
    %2641 = vmatpush2.msra.mxu0 %v2513
    %2642 = vmatprep.subr.mxu0 0.0
    %2643 = vmatpush2.msra.mxu0 %v2512
    %2644 = vmatprep.subr.mxu0 0.0
    %2645 = vmatpush2.msra.mxu0 %v2511
    %2646 = vmatprep.subr.mxu0 0.0
    %2647 = vmatpush2.msra.mxu0 %v2510
    %2648 = vmatprep.subr.mxu0 0.0
    %2649 = vmatpush2.msra.mxu0 %v2509
    %2650 = vmatprep.subr.mxu0 0.0
    %2651 = vmatpush2.msra.mxu0 %v2508
    %2652 = vmatprep.subr.mxu0 0.0
    %2653 = vmatpush2.msra.mxu0 %v2507
    %2654 = vmatprep.subr.mxu0 0.0
    %2655 = vmatpush2.msra.mxu0 %v2506
    %2656 = vmatprep.subr.mxu0 0.0
    %2657 = vmatpush2.msra.mxu0 %v2505
    %2658 = vmatprep.subr.mxu0 0.0
    %2659 = vmatpush2.msra.mxu0 %v2504
    %2660 = vmatprep.subr.mxu0 0.0
    %2661 = vmatpush2.msra.mxu0 %v2503
    %2662 = vmatprep.subr.mxu0 0.0
    %2663 = vmatpush2.msra.mxu0 %v2502
    %2664 = vmatprep.mubr.f32.mxu0 %v2449
    %2665 = vmatmul.mubr.f32.gmra.mxu0 %v2448
    %v2666 = vpop.f32.mrf.mxu0
    %v2667 = vadd.f32 %v2592, %v2666
    %v2668 = vpop.f32.mrf.mxu0
    %2669 = vmatprep.mubr.f32.mxu0 %v2453
    %2670 = vmatmul.mubr.f32.gmra.mxu0 %v2452
    %v2671 = vpop.f32.mrf.mxu0
    %v2672 = vadd.f32 %v2597, %v2671
    %v2673 = vpop.f32.mrf.mxu0
    %2674 = vdwg.mxu0
    %v2675 = vadd.f32 %v2160, %v2667
    %v2676 = vadd.f32 %v2161, %v2672
    %2677 = vst [vmem:[#allocation14] sm:$0xff] %v2675
    %2678 = vst [vmem:[#allocation14 + $0x8] sm:$0xff] %v2676
    // Predicated region
    $region98: #{tpu_custom_call.1} parent=1 // pred_check
      _
    $region99: #{tpu_custom_call.1} parent=1 // pred_check_branch
      %2680 = sbr.rel (0) target = $region101
    $region100: #{tpu_custom_call.1} parent=1 // pred_region
      %s2682 = ssub.s32 256, 256
      %2683 = vsyncadd [#allocation4], %s2682
      %s2684 = sshll.u32 [#allocation14], 4
      %s2685 = int_to_ptr.vmem [resolvable:$true] %s2684
      %2690 = dma.vmem_to_hbm [thread:$0]  %s2685, 256, %s17, [#allocation4], 128, 128, 8
    $region101: #{tpu_custom_call.1} parent=1 // pred_fallthru
      _
    // Predicated region
    $region102: #{tpu_custom_call.1} parent=1 // pred_check
      _
    $region103: #{tpu_custom_call.1} parent=1 // pred_check_branch
      %2692 = sbr.rel (0) target = $region105
    $region104: #{tpu_custom_call.1} parent=1 // pred_region
      %2693 = dma.done [#allocation4], 256
    $region105: #{tpu_custom_call.1} parent=1 // pred_fallthru
      _
    %2694 = vsyncpa [#allocation3], 1
    %2695 = vsyncpa [#allocation6], 1
    %2696 = vsyncpa [#allocation9], 1
    %2697 = vsyncpa [#allocation12], 1
    %2698 = vsyncpa [#allocation4], 1

</llo_original>
